<compile_context>
chip_gen: v6e
topology: v6e:2x2x1
jax: 0.10.0
libtpu: 0.0.40
codegen_flags: <defaults>
</compile_context>

<pallas_src>
import jax
import jax.numpy as jnp
from jax.experimental import pallas as pl
from jax.experimental.pallas import tpu as pltpu  # noqa: F401  (kept for TPU backend)


# ----------------------------------------------------------------------------
# Fused kernel: the whole inverted bottleneck for the full (small) batch.
# All refs are full-array VMEM blocks (no grid): BatchNorm batch statistics
# couple the entire batch, and at these shapes everything fits comfortably.
# ----------------------------------------------------------------------------
def _inverted_bottleneck_kernel(x_ref, w1_ref, wd_ref, w2_ref,
                                g1_ref, b1_ref, g2_ref, b2_ref,
                                g3_ref, b3_ref, o_ref):
    N, H, W, Cin = x_ref.shape
    Ch = w1_ref.shape[1]          # hidden = out_channels * 4
    Cout = w2_ref.shape[1]
    K = wd_ref.shape[0]           # depthwise kernel size (3)
    P = (K - 1) // 2              # 'same' padding for odd K
    M = N * H * W

    def bn_relu(y, g, b):
        # Train-mode BatchNorm2d: batch mean + biased variance over (N,H,W),
        # eps=1e-5, affine; fused with ReLU. All f32 (VPU/EUP friendly on v5e).
        mean = jnp.mean(y, axis=0, keepdims=True)                 # (1, C)
        var = jnp.mean((y - mean) ** 2, axis=0, keepdims=True)    # biased var
        inv = jax.lax.rsqrt(var + 1e-5)
        return jnp.maximum((y - mean) * inv * g + b, 0.0)

    # ---- pointwise_conv_1 (1x1 expansion): fold N,H,W into the matmul M dim.
    # bf16 operands, f32 accumulation on the MXU. Bias folded out (cancelled
    # by the train-mode BN mean subtraction).
    x = x_ref[...].reshape(M, Cin).astype(jnp.bfloat16)
    y1 = jnp.dot(x, w1_ref[...], preferred_element_type=jnp.float32)   # (M, Ch)
    y1 = bn_relu(y1, g1_ref[...], b1_ref[...])

    # ---- depthwise KxK conv, padding='same': zero-pad in VMEM (value-level
    # concat, no HBM traffic) and accumulate K*K shifted VPU taps.
    y1 = y1.reshape(N, H, W, Ch)
    if P > 0:
        zr = jnp.zeros((N, P, W, Ch), jnp.float32)
        yp = jnp.concatenate([zr, y1, zr], axis=1)                # (N, H+2P, W, Ch)
        zc = jnp.zeros((N, H + 2 * P, P, Ch), jnp.float32)
        yp = jnp.concatenate([zc, yp, zc], axis=2)                # (N, H+2P, W+2P, Ch)
    else:
        yp = y1

    acc = jnp.zeros((N, H, W, Ch), jnp.float32)
    for dy in range(K):
        for dx in range(K):
            tap = wd_ref[dy:dy + 1, dx:dx + 1, :].reshape(1, 1, 1, Ch)
            acc = acc + yp[:, dy:dy + H, dx:dx + W, :] * tap
    y2 = bn_relu(acc.reshape(M, Ch), g2_ref[...], b2_ref[...])

    # ---- pointwise_conv_2 (1x1 projection) + BN3 + ReLU.
    y3 = jnp.dot(y2.astype(jnp.bfloat16), w2_ref[...],
                 preferred_element_type=jnp.float32)              # (M, Cout)
    y3 = bn_relu(y3, g3_ref[...], b3_ref[...])

    # Final store (Cout=8 is narrower than a lane vreg; at 16 KB total this is
    # negligible after fusion — for large shapes fold W*Cout into lanes).
    o_ref[...] = y3.reshape(N, H, W, Cout).astype(o_ref.dtype)


def inverted_bottleneck_forward(x_nchw, params):
    """x_nchw: (N, Cin, H, W) -> (N, Cout, H, W), matching the PyTorch module
    in train() mode (batch-stat BatchNorm, ReLU activations)."""
    (w1, wd, w2, g1, b1, g2, b2, g3, b3) = params
    x = jnp.transpose(x_nchw, (0, 2, 3, 1))                       # NCHW -> NHWC
    N, H, W, _ = x.shape
    Cout = w2.shape[1]
    out = pl.pallas_call(
        _inverted_bottleneck_kernel,
        out_shape=jax.ShapeDtypeStruct((N, H, W, Cout), x.dtype),
    )(x, w1, wd, w2, g1, b1, g2, b2, g3, b3)
    return jnp.transpose(out, (0, 3, 1, 2))                       # NHWC -> NCHW


# ----------------------------------------------------------------------------
# Parameter construction (PyTorch-style uniform init; conv biases omitted —
# they are exactly cancelled by train-mode BatchNorm; BN affine at defaults).
# ----------------------------------------------------------------------------
def init_inverted_bottleneck_params(key, in_channels, out_channels, kernel_size=3):
    ch = out_channels * 4
    k1, kd, k2 = jax.random.split(key, 3)

    def uniform(k, shape, fan_in):
        bound = 1.0 / (float(fan_in) ** 0.5)
        return jax.random.uniform(k, shape, jnp.float32, -bound, bound)

    # pointwise_conv_1: PyTorch weight (ch, Cin, 1, 1) -> (Cin, ch), bf16 for MXU
    w1_pt = uniform(k1, (ch, in_channels, 1, 1), in_channels)
    w1 = jnp.transpose(w1_pt[:, :, 0, 0], (1, 0)).astype(jnp.bfloat16)

    # depthwise_conv: PyTorch weight (ch, 1, K, K) -> (K, K, ch), f32 (VPU taps)
    wd_pt = uniform(kd, (ch, 1, kernel_size, kernel_size), kernel_size * kernel_size)
    wd = jnp.transpose(wd_pt[:, 0, :, :], (1, 2, 0))

    # pointwise_conv_2: PyTorch weight (Cout, ch, 1, 1) -> (ch, Cout), bf16
    w2_pt = uniform(k2, (out_channels, ch, 1, 1), ch)
    w2 = jnp.transpose(w2_pt[:, :, 0, 0], (1, 0)).astype(jnp.bfloat16)

    # BatchNorm2d affine params (defaults gamma=1, beta=0), stored (1, C)
    g1 = jnp.ones((1, ch), jnp.float32)
    b1 = jnp.zeros((1, ch), jnp.float32)
    g2 = jnp.ones((1, ch), jnp.float32)
    b2 = jnp.zeros((1, ch), jnp.float32)
    g3 = jnp.ones((1, out_channels), jnp.float32)
    b3 = jnp.zeros((1, out_channels), jnp.float32)
    return (w1, wd, w2, g1, b1, g2, b2, g3, b3)


# ----------------------------------------------------------------------------
# Pure-JAX reference (same dropped-bias / train-mode-BN semantics) for a
# loose-tolerance sanity check of the fused kernel.
# ----------------------------------------------------------------------------
def _reference_forward(x_nchw, params):
    (w1, wd, w2, g1, b1, g2, b2, g3, b3) = params
    x = jnp.transpose(x_nchw, (0, 2, 3, 1)).astype(jnp.float32)   # NHWC

    def bn_relu(y, g, b):
        mean = jnp.mean(y, axis=(0, 1, 2), keepdims=True)
        var = jnp.mean((y - mean) ** 2, axis=(0, 1, 2), keepdims=True)
        yn = (y - mean) * jax.lax.rsqrt(var + 1e-5)
        return jnp.maximum(yn * g.reshape(1, 1, 1, -1) + b.reshape(1, 1, 1, -1), 0.0)

    y = bn_relu(jnp.einsum("nhwc,cd->nhwd", x, w1.astype(jnp.float32)), g1, b1)
    K = wd.shape[0]
    P = (K - 1) // 2
    H, W = y.shape[1], y.shape[2]
    yp = jnp.pad(y, ((0, 0), (P, P), (P, P), (0, 0)))
    acc = jnp.zeros_like(y)
    for dy in range(K):
        for dx in range(K):
            acc = acc + yp[:, dy:dy + H, dx:dx + W, :] * wd[dy, dx].reshape(1, 1, 1, -1)
    y = bn_relu(acc, g2, b2)
    y = bn_relu(jnp.einsum("nhwc,cd->nhwd", y, w2.astype(jnp.float32)), g3, b3)
    return jnp.transpose(y, (0, 3, 1, 2))


if __name__ == "__main__":
    key = jax.random.PRNGKey(0)
    kx, kp = jax.random.split(key)

    N, Cin, H, W = 2, 4, 16, 16
    Cout = 8                                  # hidden width = 4 * Cout = 32
    x = jax.random.normal(kx, (N, Cin, H, W), jnp.float32)

    params = init_inverted_bottleneck_params(kp, Cin, Cout, kernel_size=3)

    out = inverted_bottleneck_forward(x, params)
    out = jax.block_until_ready(out)
    assert out.shape == (N, Cout, H, W)

    ref = jax.block_until_ready(_reference_forward(x, params))
    max_err = float(jnp.max(jnp.abs(out - ref)))
    assert max_err < 5e-2, f"kernel/reference mismatch: max abs err {max_err}"

    print("KERNEL_OK")
</pallas_src>

<mosaic_0001>
module attributes {stable_mosaic.version = 11 : i64} {
  func.func @_inverted_bottleneck_kernel(%arg0: memref<2x16x16x4xf32, #tpu.memory_space<vmem>>, %arg1: memref<4x32xbf16, #tpu.memory_space<vmem>>, %arg2: memref<3x3x32xf32, #tpu.memory_space<vmem>>, %arg3: memref<32x8xbf16, #tpu.memory_space<vmem>>, %arg4: memref<1x32xf32, #tpu.memory_space<vmem>>, %arg5: memref<1x32xf32, #tpu.memory_space<vmem>>, %arg6: memref<1x32xf32, #tpu.memory_space<vmem>>, %arg7: memref<1x32xf32, #tpu.memory_space<vmem>>, %arg8: memref<1x8xf32, #tpu.memory_space<vmem>>, %arg9: memref<1x8xf32, #tpu.memory_space<vmem>>, %arg10: memref<2x16x16x8xf32, #tpu.memory_space<vmem>>) attributes {dimension_semantics = [], scalar_prefetch = 0 : i64, scratch_operands = 0 : i64, tpu.core_type = #tpu.core_type<tc>} {
    %c0 = arith.constant 0 : index
    %c0_0 = arith.constant 0 : index
    %c0_1 = arith.constant 0 : index
    %c0_2 = arith.constant 0 : index
    %0 = vector.load %arg0[%c0, %c0_0, %c0_1, %c0_2] : memref<2x16x16x4xf32, #tpu.memory_space<vmem>>, vector<2x16x16x4xf32>
    %1 = vector.shape_cast %0 : vector<2x16x16x4xf32> to vector<512x4xf32>
    %2 = arith.truncf %1 : vector<512x4xf32> to vector<512x4xbf16>
    %c0_3 = arith.constant 0 : index
    %c0_4 = arith.constant 0 : index
    %3 = vector.load %arg1[%c0_3, %c0_4] : memref<4x32xbf16, #tpu.memory_space<vmem>>, vector<4x32xbf16>
    %cst = arith.constant dense<0.000000e+00> : vector<512x32xf32>
    %4 = tpu.matmul %2, %3, %cst {dimension_numbers = #tpu.dot_dimension_numbers<[1], [0], [0], [1], [0, 0, 1, 1], [], []>} : vector<512x4xbf16>, vector<4x32xbf16>, vector<512x32xf32> -> vector<512x32xf32>
    %c0_5 = arith.constant 0 : index
    %c0_6 = arith.constant 0 : index
    %5 = vector.load %arg4[%c0_5, %c0_6] : memref<1x32xf32, #tpu.memory_space<vmem>>, vector<1x32xf32>
    %c0_7 = arith.constant 0 : index
    %c0_8 = arith.constant 0 : index
    %6 = vector.load %arg5[%c0_7, %c0_8] : memref<1x32xf32, #tpu.memory_space<vmem>>, vector<1x32xf32>
    %cst_9 = arith.constant dense<0.000000e+00> : vector<32xf32>
    %7 = vector.multi_reduction <add>, %4, %cst_9 [0] : vector<512x32xf32> to vector<32xf32>
    %8 = vector.shape_cast %7 : vector<32xf32> to vector<1x32xf32>
    %cst_10 = arith.constant 5.120000e+02 : f32
    %9 = vector.broadcast %cst_10 : f32 to vector<1x32xf32>
    %10 = arith.divf %8, %9 : vector<1x32xf32>
    %11 = vector.broadcast %10 : vector<1x32xf32> to vector<512x32xf32>
    %12 = arith.subf %4, %11 : vector<512x32xf32>
    %13 = arith.mulf %12, %12 : vector<512x32xf32>
    %cst_11 = arith.constant dense<0.000000e+00> : vector<32xf32>
    %14 = vector.multi_reduction <add>, %13, %cst_11 [0] : vector<512x32xf32> to vector<32xf32>
    %15 = vector.shape_cast %14 : vector<32xf32> to vector<1x32xf32>
    %cst_12 = arith.constant 5.120000e+02 : f32
    %16 = vector.broadcast %cst_12 : f32 to vector<1x32xf32>
    %17 = arith.divf %15, %16 : vector<1x32xf32>
    %cst_13 = arith.constant 9.99999974E-6 : f32
    %18 = vector.broadcast %cst_13 : f32 to vector<1x32xf32>
    %19 = arith.addf %17, %18 : vector<1x32xf32>
    %20 = math.rsqrt %19 : vector<1x32xf32>
    %21 = vector.broadcast %10 : vector<1x32xf32> to vector<512x32xf32>
    %22 = arith.subf %4, %21 : vector<512x32xf32>
    %23 = vector.broadcast %20 : vector<1x32xf32> to vector<512x32xf32>
    %24 = arith.mulf %22, %23 : vector<512x32xf32>
    %25 = vector.broadcast %5 : vector<1x32xf32> to vector<512x32xf32>
    %26 = arith.mulf %24, %25 : vector<512x32xf32>
    %27 = vector.broadcast %6 : vector<1x32xf32> to vector<512x32xf32>
    %28 = arith.addf %26, %27 : vector<512x32xf32>
    %cst_14 = arith.constant 0.000000e+00 : f32
    %29 = vector.broadcast %cst_14 : f32 to vector<512x32xf32>
    %30 = arith.maximumf %28, %29 : vector<512x32xf32>
    %31 = vector.shape_cast %30 : vector<512x32xf32> to vector<2x16x16x32xf32>
    %cst_15 = arith.constant 0.000000e+00 : f32
    %32 = vector.broadcast %cst_15 : f32 to vector<2x1x16x32xf32>
    %33 = tpu.concatenate %32, %31, %32 in 1 : vector<2x1x16x32xf32>, vector<2x16x16x32xf32>, vector<2x1x16x32xf32> -> vector<2x18x16x32xf32>
    %cst_16 = arith.constant 0.000000e+00 : f32
    %34 = vector.broadcast %cst_16 : f32 to vector<2x18x1x32xf32>
    %35 = tpu.concatenate %34, %33, %34 in 2 : vector<2x18x1x32xf32>, vector<2x18x16x32xf32>, vector<2x18x1x32xf32> -> vector<2x18x18x32xf32>
    %cst_17 = arith.constant 0.000000e+00 : f32
    %36 = vector.broadcast %cst_17 : f32 to vector<2x16x16x32xf32>
    %c0_18 = arith.constant 0 : index
    %c0_19 = arith.constant 0 : index
    %c0_20 = arith.constant 0 : index
    %37 = vector.load %arg2[%c0_18, %c0_19, %c0_20] : memref<3x3x32xf32, #tpu.memory_space<vmem>>, vector<1x1x32xf32>
    %38 = vector.shape_cast %37 : vector<1x1x32xf32> to vector<1x1x1x32xf32>
    %39 = vector.extract_strided_slice %35 {offsets = [0, 0, 0, 0], sizes = [2, 16, 16, 32], strides = [1, 1, 1, 1]} : vector<2x18x18x32xf32> to vector<2x16x16x32xf32>
    %40 = vector.broadcast %38 : vector<1x1x1x32xf32> to vector<2x16x16x32xf32>
    %41 = arith.mulf %39, %40 : vector<2x16x16x32xf32>
    %42 = arith.addf %36, %41 : vector<2x16x16x32xf32>
    %c0_21 = arith.constant 0 : index
    %c1 = arith.constant 1 : index
    %c0_22 = arith.constant 0 : index
    %43 = vector.load %arg2[%c0_21, %c1, %c0_22] : memref<3x3x32xf32, #tpu.memory_space<vmem>>, vector<1x1x32xf32>
    %44 = vector.shape_cast %43 : vector<1x1x32xf32> to vector<1x1x1x32xf32>
    %45 = vector.extract_strided_slice %35 {offsets = [0, 0, 1, 0], sizes = [2, 16, 16, 32], strides = [1, 1, 1, 1]} : vector<2x18x18x32xf32> to vector<2x16x16x32xf32>
    %46 = vector.broadcast %44 : vector<1x1x1x32xf32> to vector<2x16x16x32xf32>
    %47 = arith.mulf %45, %46 : vector<2x16x16x32xf32>
    %48 = arith.addf %42, %47 : vector<2x16x16x32xf32>
    %c0_23 = arith.constant 0 : index
    %c2 = arith.constant 2 : index
    %c0_24 = arith.constant 0 : index
    %49 = vector.load %arg2[%c0_23, %c2, %c0_24] : memref<3x3x32xf32, #tpu.memory_space<vmem>>, vector<1x1x32xf32>
    %50 = vector.shape_cast %49 : vector<1x1x32xf32> to vector<1x1x1x32xf32>
    %51 = vector.extract_strided_slice %35 {offsets = [0, 0, 2, 0], sizes = [2, 16, 16, 32], strides = [1, 1, 1, 1]} : vector<2x18x18x32xf32> to vector<2x16x16x32xf32>
    %52 = vector.broadcast %50 : vector<1x1x1x32xf32> to vector<2x16x16x32xf32>
    %53 = arith.mulf %51, %52 : vector<2x16x16x32xf32>
    %54 = arith.addf %48, %53 : vector<2x16x16x32xf32>
    %c1_25 = arith.constant 1 : index
    %c0_26 = arith.constant 0 : index
    %c0_27 = arith.constant 0 : index
    %55 = vector.load %arg2[%c1_25, %c0_26, %c0_27] : memref<3x3x32xf32, #tpu.memory_space<vmem>>, vector<1x1x32xf32>
    %56 = vector.shape_cast %55 : vector<1x1x32xf32> to vector<1x1x1x32xf32>
    %57 = vector.extract_strided_slice %35 {offsets = [0, 1, 0, 0], sizes = [2, 16, 16, 32], strides = [1, 1, 1, 1]} : vector<2x18x18x32xf32> to vector<2x16x16x32xf32>
    %58 = vector.broadcast %56 : vector<1x1x1x32xf32> to vector<2x16x16x32xf32>
    %59 = arith.mulf %57, %58 : vector<2x16x16x32xf32>
    %60 = arith.addf %54, %59 : vector<2x16x16x32xf32>
    %c1_28 = arith.constant 1 : index
    %c1_29 = arith.constant 1 : index
    %c0_30 = arith.constant 0 : index
    %61 = vector.load %arg2[%c1_28, %c1_29, %c0_30] : memref<3x3x32xf32, #tpu.memory_space<vmem>>, vector<1x1x32xf32>
    %62 = vector.shape_cast %61 : vector<1x1x32xf32> to vector<1x1x1x32xf32>
    %63 = vector.extract_strided_slice %35 {offsets = [0, 1, 1, 0], sizes = [2, 16, 16, 32], strides = [1, 1, 1, 1]} : vector<2x18x18x32xf32> to vector<2x16x16x32xf32>
    %64 = vector.broadcast %62 : vector<1x1x1x32xf32> to vector<2x16x16x32xf32>
    %65 = arith.mulf %63, %64 : vector<2x16x16x32xf32>
    %66 = arith.addf %60, %65 : vector<2x16x16x32xf32>
    %c1_31 = arith.constant 1 : index
    %c2_32 = arith.constant 2 : index
    %c0_33 = arith.constant 0 : index
    %67 = vector.load %arg2[%c1_31, %c2_32, %c0_33] : memref<3x3x32xf32, #tpu.memory_space<vmem>>, vector<1x1x32xf32>
    %68 = vector.shape_cast %67 : vector<1x1x32xf32> to vector<1x1x1x32xf32>
    %69 = vector.extract_strided_slice %35 {offsets = [0, 1, 2, 0], sizes = [2, 16, 16, 32], strides = [1, 1, 1, 1]} : vector<2x18x18x32xf32> to vector<2x16x16x32xf32>
    %70 = vector.broadcast %68 : vector<1x1x1x32xf32> to vector<2x16x16x32xf32>
    %71 = arith.mulf %69, %70 : vector<2x16x16x32xf32>
    %72 = arith.addf %66, %71 : vector<2x16x16x32xf32>
    %c2_34 = arith.constant 2 : index
    %c0_35 = arith.constant 0 : index
    %c0_36 = arith.constant 0 : index
    %73 = vector.load %arg2[%c2_34, %c0_35, %c0_36] : memref<3x3x32xf32, #tpu.memory_space<vmem>>, vector<1x1x32xf32>
    %74 = vector.shape_cast %73 : vector<1x1x32xf32> to vector<1x1x1x32xf32>
    %75 = vector.extract_strided_slice %35 {offsets = [0, 2, 0, 0], sizes = [2, 16, 16, 32], strides = [1, 1, 1, 1]} : vector<2x18x18x32xf32> to vector<2x16x16x32xf32>
    %76 = vector.broadcast %74 : vector<1x1x1x32xf32> to vector<2x16x16x32xf32>
    %77 = arith.mulf %75, %76 : vector<2x16x16x32xf32>
    %78 = arith.addf %72, %77 : vector<2x16x16x32xf32>
    %c2_37 = arith.constant 2 : index
    %c1_38 = arith.constant 1 : index
    %c0_39 = arith.constant 0 : index
    %79 = vector.load %arg2[%c2_37, %c1_38, %c0_39] : memref<3x3x32xf32, #tpu.memory_space<vmem>>, vector<1x1x32xf32>
    %80 = vector.shape_cast %79 : vector<1x1x32xf32> to vector<1x1x1x32xf32>
    %81 = vector.extract_strided_slice %35 {offsets = [0, 2, 1, 0], sizes = [2, 16, 16, 32], strides = [1, 1, 1, 1]} : vector<2x18x18x32xf32> to vector<2x16x16x32xf32>
    %82 = vector.broadcast %80 : vector<1x1x1x32xf32> to vector<2x16x16x32xf32>
    %83 = arith.mulf %81, %82 : vector<2x16x16x32xf32>
    %84 = arith.addf %78, %83 : vector<2x16x16x32xf32>
    %c2_40 = arith.constant 2 : index
    %c2_41 = arith.constant 2 : index
    %c0_42 = arith.constant 0 : index
    %85 = vector.load %arg2[%c2_40, %c2_41, %c0_42] : memref<3x3x32xf32, #tpu.memory_space<vmem>>, vector<1x1x32xf32>
    %86 = vector.shape_cast %85 : vector<1x1x32xf32> to vector<1x1x1x32xf32>
    %87 = vector.extract_strided_slice %35 {offsets = [0, 2, 2, 0], sizes = [2, 16, 16, 32], strides = [1, 1, 1, 1]} : vector<2x18x18x32xf32> to vector<2x16x16x32xf32>
    %88 = vector.broadcast %86 : vector<1x1x1x32xf32> to vector<2x16x16x32xf32>
    %89 = arith.mulf %87, %88 : vector<2x16x16x32xf32>
    %90 = arith.addf %84, %89 : vector<2x16x16x32xf32>
    %91 = vector.shape_cast %90 : vector<2x16x16x32xf32> to vector<512x32xf32>
    %c0_43 = arith.constant 0 : index
    %c0_44 = arith.constant 0 : index
    %92 = vector.load %arg6[%c0_43, %c0_44] : memref<1x32xf32, #tpu.memory_space<vmem>>, vector<1x32xf32>
    %c0_45 = arith.constant 0 : index
    %c0_46 = arith.constant 0 : index
    %93 = vector.load %arg7[%c0_45, %c0_46] : memref<1x32xf32, #tpu.memory_space<vmem>>, vector<1x32xf32>
    %cst_47 = arith.constant dense<0.000000e+00> : vector<32xf32>
    %94 = vector.multi_reduction <add>, %91, %cst_47 [0] : vector<512x32xf32> to vector<32xf32>
    %95 = vector.shape_cast %94 : vector<32xf32> to vector<1x32xf32>
    %cst_48 = arith.constant 5.120000e+02 : f32
    %96 = vector.broadcast %cst_48 : f32 to vector<1x32xf32>
    %97 = arith.divf %95, %96 : vector<1x32xf32>
    %98 = vector.broadcast %97 : vector<1x32xf32> to vector<512x32xf32>
    %99 = arith.subf %91, %98 : vector<512x32xf32>
    %100 = arith.mulf %99, %99 : vector<512x32xf32>
    %cst_49 = arith.constant dense<0.000000e+00> : vector<32xf32>
    %101 = vector.multi_reduction <add>, %100, %cst_49 [0] : vector<512x32xf32> to vector<32xf32>
    %102 = vector.shape_cast %101 : vector<32xf32> to vector<1x32xf32>
    %cst_50 = arith.constant 5.120000e+02 : f32
    %103 = vector.broadcast %cst_50 : f32 to vector<1x32xf32>
    %104 = arith.divf %102, %103 : vector<1x32xf32>
    %cst_51 = arith.constant 9.99999974E-6 : f32
    %105 = vector.broadcast %cst_51 : f32 to vector<1x32xf32>
    %106 = arith.addf %104, %105 : vector<1x32xf32>
    %107 = math.rsqrt %106 : vector<1x32xf32>
    %108 = vector.broadcast %97 : vector<1x32xf32> to vector<512x32xf32>
    %109 = arith.subf %91, %108 : vector<512x32xf32>
    %110 = vector.broadcast %107 : vector<1x32xf32> to vector<512x32xf32>
    %111 = arith.mulf %109, %110 : vector<512x32xf32>
    %112 = vector.broadcast %92 : vector<1x32xf32> to vector<512x32xf32>
    %113 = arith.mulf %111, %112 : vector<512x32xf32>
    %114 = vector.broadcast %93 : vector<1x32xf32> to vector<512x32xf32>
    %115 = arith.addf %113, %114 : vector<512x32xf32>
    %cst_52 = arith.constant 0.000000e+00 : f32
    %116 = vector.broadcast %cst_52 : f32 to vector<512x32xf32>
    %117 = arith.maximumf %115, %116 : vector<512x32xf32>
    %118 = arith.truncf %117 : vector<512x32xf32> to vector<512x32xbf16>
    %c0_53 = arith.constant 0 : index
    %c0_54 = arith.constant 0 : index
    %119 = vector.load %arg3[%c0_53, %c0_54] : memref<32x8xbf16, #tpu.memory_space<vmem>>, vector<32x8xbf16>
    %cst_55 = arith.constant dense<0.000000e+00> : vector<512x8xf32>
    %120 = tpu.matmul %118, %119, %cst_55 {dimension_numbers = #tpu.dot_dimension_numbers<[1], [0], [0], [1], [0, 0, 1, 1], [], []>} : vector<512x32xbf16>, vector<32x8xbf16>, vector<512x8xf32> -> vector<512x8xf32>
    %c0_56 = arith.constant 0 : index
    %c0_57 = arith.constant 0 : index
    %121 = vector.load %arg8[%c0_56, %c0_57] : memref<1x8xf32, #tpu.memory_space<vmem>>, vector<1x8xf32>
    %c0_58 = arith.constant 0 : index
    %c0_59 = arith.constant 0 : index
    %122 = vector.load %arg9[%c0_58, %c0_59] : memref<1x8xf32, #tpu.memory_space<vmem>>, vector<1x8xf32>
    %cst_60 = arith.constant dense<0.000000e+00> : vector<8xf32>
    %123 = vector.multi_reduction <add>, %120, %cst_60 [0] : vector<512x8xf32> to vector<8xf32>
    %124 = vector.shape_cast %123 : vector<8xf32> to vector<1x8xf32>
    %cst_61 = arith.constant 5.120000e+02 : f32
    %125 = vector.broadcast %cst_61 : f32 to vector<1x8xf32>
    %126 = arith.divf %124, %125 : vector<1x8xf32>
    %127 = vector.broadcast %126 : vector<1x8xf32> to vector<512x8xf32>
    %128 = arith.subf %120, %127 : vector<512x8xf32>
    %129 = arith.mulf %128, %128 : vector<512x8xf32>
    %cst_62 = arith.constant dense<0.000000e+00> : vector<8xf32>
    %130 = vector.multi_reduction <add>, %129, %cst_62 [0] : vector<512x8xf32> to vector<8xf32>
    %131 = vector.shape_cast %130 : vector<8xf32> to vector<1x8xf32>
    %cst_63 = arith.constant 5.120000e+02 : f32
    %132 = vector.broadcast %cst_63 : f32 to vector<1x8xf32>
    %133 = arith.divf %131, %132 : vector<1x8xf32>
    %cst_64 = arith.constant 9.99999974E-6 : f32
    %134 = vector.broadcast %cst_64 : f32 to vector<1x8xf32>
    %135 = arith.addf %133, %134 : vector<1x8xf32>
    %136 = math.rsqrt %135 : vector<1x8xf32>
    %137 = vector.broadcast %126 : vector<1x8xf32> to vector<512x8xf32>
    %138 = arith.subf %120, %137 : vector<512x8xf32>
    %139 = vector.broadcast %136 : vector<1x8xf32> to vector<512x8xf32>
    %140 = arith.mulf %138, %139 : vector<512x8xf32>
    %141 = vector.broadcast %121 : vector<1x8xf32> to vector<512x8xf32>
    %142 = arith.mulf %140, %141 : vector<512x8xf32>
    %143 = vector.broadcast %122 : vector<1x8xf32> to vector<512x8xf32>
    %144 = arith.addf %142, %143 : vector<512x8xf32>
    %cst_65 = arith.constant 0.000000e+00 : f32
    %145 = vector.broadcast %cst_65 : f32 to vector<512x8xf32>
    %146 = arith.maximumf %144, %145 : vector<512x8xf32>
    %147 = vector.shape_cast %146 : vector<512x8xf32> to vector<2x16x16x8xf32>
    %c0_66 = arith.constant 0 : index
    %c0_67 = arith.constant 0 : index
    %c0_68 = arith.constant 0 : index
    %c0_69 = arith.constant 0 : index
    %148 = vector.load %arg10[%c0_66, %c0_67, %c0_68, %c0_69] : memref<2x16x16x8xf32, #tpu.memory_space<vmem>>, vector<2x16x16x8xf32>
    tpu.vector_store %arg10[%c0_66, %c0_67, %c0_68, %c0_69], %147 {strides = array<i32>} : memref<2x16x16x8xf32, #tpu.memory_space<vmem>>, vector<2x16x16x8xf32>,
    return
  }
}

</mosaic_0001>

<llo_original>
// kernel: tpu_custom_call.1
$region0: #{tpu_custom_call.1}
  #allocation0 [shape = 'u32[]', space=smem, size = 0x4, offset = 0x4, fixed_abs, tag = 'smem constant byte address 0x4 - core index']
  #allocation1 [shape = 'u32[144,128]{1,0:T(1,128)}', space=vmem, size = 0x12000, scoped, tag = 'internal scratch']
  %s0 = inlined_call_operand.vmem [shape: f32[2,16,16,4], index: 0, kind: input, shape index: {}]
  %s1 = inlined_call_operand.vmem [shape: bf16[4,32], index: 1, kind: input, shape index: {}]
  %s2 = inlined_call_operand.vmem [shape: f32[3,3,32], index: 2, kind: input, shape index: {}]
  %s3 = inlined_call_operand.vmem [shape: bf16[32,8], index: 3, kind: input, shape index: {}]
  %s4 = inlined_call_operand.vmem [shape: f32[1,32], index: 4, kind: input, shape index: {}]
  %s5 = inlined_call_operand.vmem [shape: f32[1,32], index: 5, kind: input, shape index: {}]
  %s6 = inlined_call_operand.vmem [shape: f32[1,32], index: 6, kind: input, shape index: {}]
  %s7 = inlined_call_operand.vmem [shape: f32[1,32], index: 7, kind: input, shape index: {}]
  %s8 = inlined_call_operand.vmem [shape: f32[1,8], index: 8, kind: input, shape index: {}]
  %s9 = inlined_call_operand.vmem [shape: f32[1,8], index: 9, kind: input, shape index: {}]
  %s10 = inlined_call_operand.vmem [shape: f32[2,16,16,8], index: 10, kind: output, shape index: {}]
  %s11 = sld [smem:[#allocation0]]
  $region50: #{tpu_custom_call.1} parent=0
    _
  %s13 = ssub.s32 1, %s11
  %s14 = scalar_select 0, %s13, %s11
  // Predicated region
  $region2: #{tpu_custom_call.1} parent=0 // pred_check
    _
  $region3: #{tpu_custom_call.1} parent=0 // pred_check_branch
    %16 = sbr.rel (0) target = $region5
  $region4: #{tpu_custom_call.1} parent=0 // pred_region
    _
  $region5: #{tpu_custom_call.1} parent=0 // pred_fallthru
    _
  // Predicated region
  $region6: #{tpu_custom_call.1} parent=0 // pred_check
    _
  $region7: #{tpu_custom_call.1} parent=0 // pred_check_branch
    %18 = sbr.rel (0) target = $region9
  $region8: #{tpu_custom_call.1} parent=0 // pred_region
    _
  $region9: #{tpu_custom_call.1} parent=0 // pred_fallthru
    _
  // Predicated region
  $region10: #{tpu_custom_call.1} parent=0 // pred_check
    _
  $region11: #{tpu_custom_call.1} parent=0 // pred_check_branch
    %20 = sbr.rel (0) target = $region13
  $region12: #{tpu_custom_call.1} parent=0 // pred_region
    _
  $region13: #{tpu_custom_call.1} parent=0 // pred_fallthru
    _
  // Predicated region
  $region14: #{tpu_custom_call.1} parent=0 // pred_check
    _
  $region15: #{tpu_custom_call.1} parent=0 // pred_check_branch
    %22 = sbr.rel (0) target = $region17
  $region16: #{tpu_custom_call.1} parent=0 // pred_region
    _
  $region17: #{tpu_custom_call.1} parent=0 // pred_fallthru
    _
  // Predicated region
  $region18: #{tpu_custom_call.1} parent=0 // pred_check
    _
  $region19: #{tpu_custom_call.1} parent=0 // pred_check_branch
    %24 = sbr.rel (0) target = $region21
  $region20: #{tpu_custom_call.1} parent=0 // pred_region
    _
  $region21: #{tpu_custom_call.1} parent=0 // pred_fallthru
    _
  // Predicated region
  $region22: #{tpu_custom_call.1} parent=0 // pred_check
    _
  $region23: #{tpu_custom_call.1} parent=0 // pred_check_branch
    %26 = sbr.rel (0) target = $region25
  $region24: #{tpu_custom_call.1} parent=0 // pred_region
    _
  $region25: #{tpu_custom_call.1} parent=0 // pred_fallthru
    _
  // Predicated region
  $region26: #{tpu_custom_call.1} parent=0 // pred_check
    _
  $region27: #{tpu_custom_call.1} parent=0 // pred_check_branch
    %28 = sbr.rel (0) target = $region29
  $region28: #{tpu_custom_call.1} parent=0 // pred_region
    _
  $region29: #{tpu_custom_call.1} parent=0 // pred_fallthru
    _
  // Predicated region
  $region30: #{tpu_custom_call.1} parent=0 // pred_check
    _
  $region31: #{tpu_custom_call.1} parent=0 // pred_check_branch
    %30 = sbr.rel (0) target = $region33
  $region32: #{tpu_custom_call.1} parent=0 // pred_region
    _
  $region33: #{tpu_custom_call.1} parent=0 // pred_fallthru
    _
  // Predicated region
  $region34: #{tpu_custom_call.1} parent=0 // pred_check
    _
  $region35: #{tpu_custom_call.1} parent=0 // pred_check_branch
    %32 = sbr.rel (0) target = $region37
  $region36: #{tpu_custom_call.1} parent=0 // pred_region
    _
  $region37: #{tpu_custom_call.1} parent=0 // pred_fallthru
    _
  // Predicated region
  $region38: #{tpu_custom_call.1} parent=0 // pred_check
    _
  $region39: #{tpu_custom_call.1} parent=0 // pred_check_branch
    %34 = sbr.rel (0) target = $region41
  $region40: #{tpu_custom_call.1} parent=0 // pred_region
    _
  $region41: #{tpu_custom_call.1} parent=0 // pred_fallthru
    _
  %v36 = vld [vmem:[%s0] sm:$0xff]
  %v37 = vld [vmem:[%s0 + $0x8] sm:$0xff]
  %v38 = vld [vmem:[%s0 + $0x10] sm:$0xff]
  %v39 = vld [vmem:[%s0 + $0x18] sm:$0xff]
  %v40 = vld [vmem:[%s0 + $0x20] sm:$0xff]
  %v41 = vld [vmem:[%s0 + $0x28] sm:$0xff]
  %v42 = vld [vmem:[%s0 + $0x30] sm:$0xff]
  %v43 = vld [vmem:[%s0 + $0x38] sm:$0xff]
  %v44 = vld [vmem:[%s0 + $0x40] sm:$0xff]
  %v45 = vld [vmem:[%s0 + $0x48] sm:$0xff]
  %v46 = vld [vmem:[%s0 + $0x50] sm:$0xff]
  %v47 = vld [vmem:[%s0 + $0x58] sm:$0xff]
  %v48 = vld [vmem:[%s0 + $0x60] sm:$0xff]
  %v49 = vld [vmem:[%s0 + $0x68] sm:$0xff]
  %v50 = vld [vmem:[%s0 + $0x70] sm:$0xff]
  %v51 = vld [vmem:[%s0 + $0x78] sm:$0xff]
  %v52 = vld [vmem:[%s0 + $0x80] sm:$0xff]
  %v53 = vld [vmem:[%s0 + $0x88] sm:$0xff]
  %v54 = vld [vmem:[%s0 + $0x90] sm:$0xff]
  %v55 = vld [vmem:[%s0 + $0x98] sm:$0xff]
  %v56 = vld [vmem:[%s0 + $0xa0] sm:$0xff]
  %v57 = vld [vmem:[%s0 + $0xa8] sm:$0xff]
  %v58 = vld [vmem:[%s0 + $0xb0] sm:$0xff]
  %v59 = vld [vmem:[%s0 + $0xb8] sm:$0xff]
  %v60 = vld [vmem:[%s0 + $0xc0] sm:$0xff]
  %v61 = vld [vmem:[%s0 + $0xc8] sm:$0xff]
  %v62 = vld [vmem:[%s0 + $0xd0] sm:$0xff]
  %v63 = vld [vmem:[%s0 + $0xd8] sm:$0xff]
  %v64 = vld [vmem:[%s0 + $0xe0] sm:$0xff]
  %v65 = vld [vmem:[%s0 + $0xe8] sm:$0xff]
  %v66 = vld [vmem:[%s0 + $0xf0] sm:$0xff]
  %v67 = vld [vmem:[%s0 + $0xf8] sm:$0xff]
  %v68 = vld [vmem:[%s0 + $0x100] sm:$0xff]
  %v69 = vld [vmem:[%s0 + $0x108] sm:$0xff]
  %v70 = vld [vmem:[%s0 + $0x110] sm:$0xff]
  %v71 = vld [vmem:[%s0 + $0x118] sm:$0xff]
  %v72 = vld [vmem:[%s0 + $0x120] sm:$0xff]
  %v73 = vld [vmem:[%s0 + $0x128] sm:$0xff]
  %v74 = vld [vmem:[%s0 + $0x130] sm:$0xff]
  %v75 = vld [vmem:[%s0 + $0x138] sm:$0xff]
  %v76 = vld [vmem:[%s0 + $0x140] sm:$0xff]
  %v77 = vld [vmem:[%s0 + $0x148] sm:$0xff]
  %v78 = vld [vmem:[%s0 + $0x150] sm:$0xff]
  %v79 = vld [vmem:[%s0 + $0x158] sm:$0xff]
  %v80 = vld [vmem:[%s0 + $0x160] sm:$0xff]
  %v81 = vld [vmem:[%s0 + $0x168] sm:$0xff]
  %v82 = vld [vmem:[%s0 + $0x170] sm:$0xff]
  %v83 = vld [vmem:[%s0 + $0x178] sm:$0xff]
  %v84 = vld [vmem:[%s0 + $0x180] sm:$0xff]
  %v85 = vld [vmem:[%s0 + $0x188] sm:$0xff]
  %v86 = vld [vmem:[%s0 + $0x190] sm:$0xff]
  %v87 = vld [vmem:[%s0 + $0x198] sm:$0xff]
  %v88 = vld [vmem:[%s0 + $0x1a0] sm:$0xff]
  %v89 = vld [vmem:[%s0 + $0x1a8] sm:$0xff]
  %v90 = vld [vmem:[%s0 + $0x1b0] sm:$0xff]
  %v91 = vld [vmem:[%s0 + $0x1b8] sm:$0xff]
  %v92 = vld [vmem:[%s0 + $0x1c0] sm:$0xff]
  %v93 = vld [vmem:[%s0 + $0x1c8] sm:$0xff]
  %v94 = vld [vmem:[%s0 + $0x1d0] sm:$0xff]
  %v95 = vld [vmem:[%s0 + $0x1d8] sm:$0xff]
  %v96 = vld [vmem:[%s0 + $0x1e0] sm:$0xff]
  %v97 = vld [vmem:[%s0 + $0x1e8] sm:$0xff]
  %v98 = vld [vmem:[%s0 + $0x1f0] sm:$0xff]
  %v99 = vld [vmem:[%s0 + $0x1f8] sm:$0xff]
  %v100 = vpack.c.bf16 %v37, %v36
  %v101 = vpack.c.bf16 %v39, %v38
  %v102 = vpack.c.bf16 %v41, %v40
  %v103 = vpack.c.bf16 %v43, %v42
  %v104 = vpack.c.bf16 %v45, %v44
  %v105 = vpack.c.bf16 %v47, %v46
  %v106 = vpack.c.bf16 %v49, %v48
  %v107 = vpack.c.bf16 %v51, %v50
  %v108 = vpack.c.bf16 %v53, %v52
  %v109 = vpack.c.bf16 %v55, %v54
  %v110 = vpack.c.bf16 %v57, %v56
  %v111 = vpack.c.bf16 %v59, %v58
  %v112 = vpack.c.bf16 %v61, %v60
  %v113 = vpack.c.bf16 %v63, %v62
  %v114 = vpack.c.bf16 %v65, %v64
  %v115 = vpack.c.bf16 %v67, %v66
  %v116 = vpack.c.bf16 %v69, %v68
  %v117 = vpack.c.bf16 %v71, %v70
  %v118 = vpack.c.bf16 %v73, %v72
  %v119 = vpack.c.bf16 %v75, %v74
  %v120 = vpack.c.bf16 %v77, %v76
  %v121 = vpack.c.bf16 %v79, %v78
  %v122 = vpack.c.bf16 %v81, %v80
  %v123 = vpack.c.bf16 %v83, %v82
  %v124 = vpack.c.bf16 %v85, %v84
  %v125 = vpack.c.bf16 %v87, %v86
  %v126 = vpack.c.bf16 %v89, %v88
  %v127 = vpack.c.bf16 %v91, %v90
  %v128 = vpack.c.bf16 %v93, %v92
  %v129 = vpack.c.bf16 %v95, %v94
  %v130 = vpack.c.bf16 %v97, %v96
  %v131 = vpack.c.bf16 %v99, %v98
  %v132 = vld [vmem:[%s1] sm:$0x3]
  %vm133 = vcmask 31744
  %v135 = vsel %vm133, %v100, 0
  %v138 = vsel %vm133, %v101, 0
  %v141 = vsel %vm133, %v102, 0
  %v144 = vsel %vm133, %v103, 0
  %v147 = vsel %vm133, %v104, 0
  %v150 = vsel %vm133, %v105, 0
  %v153 = vsel %vm133, %v106, 0
  %v156 = vsel %vm133, %v107, 0
  %v159 = vsel %vm133, %v108, 0
  %v162 = vsel %vm133, %v109, 0
  %v165 = vsel %vm133, %v110, 0
  %v168 = vsel %vm133, %v111, 0
  %v171 = vsel %vm133, %v112, 0
  %v174 = vsel %vm133, %v113, 0
  %v177 = vsel %vm133, %v114, 0
  %v180 = vsel %vm133, %v115, 0
  %v183 = vsel %vm133, %v116, 0
  %v186 = vsel %vm133, %v117, 0
  %v189 = vsel %vm133, %v118, 0
  %v192 = vsel %vm133, %v119, 0
  %v195 = vsel %vm133, %v120, 0
  %v198 = vsel %vm133, %v121, 0
  %v201 = vsel %vm133, %v122, 0
  %v204 = vsel %vm133, %v123, 0
  %v207 = vsel %vm133, %v124, 0
  %v210 = vsel %vm133, %v125, 0
  %v213 = vsel %vm133, %v126, 0
  %v216 = vsel %vm133, %v127, 0
  %v219 = vsel %vm133, %v128, 0
  %v222 = vsel %vm133, %v129, 0
  %v225 = vsel %vm133, %v130, 0
  %v228 = vsel %vm133, %v131, 0
  %vm230 = vcmask 1041408
  %v232 = vsel %vm230, %v132, 0
  %234 = vmatprep.subr.bf16.mxu0 0
  %235 = vmatpush1.bf16.msra.mxu0 0
  %236 = vmatprep.subr.bf16.mxu0 0
  %237 = vmatpush1.bf16.msra.mxu0 0
  %238 = vmatprep.subr.bf16.mxu0 0
  %239 = vmatpush1.bf16.msra.mxu0 0
  %240 = vmatprep.subr.bf16.mxu0 0
  %241 = vmatpush1.bf16.msra.mxu0 0
  %242 = vmatprep.subr.bf16.mxu0 0
  %243 = vmatpush1.bf16.msra.mxu0 0
  %244 = vmatprep.subr.bf16.mxu0 0
  %245 = vmatpush1.bf16.msra.mxu0 0
  %246 = vmatprep.subr.bf16.mxu0 0
  %247 = vmatpush1.bf16.msra.mxu0 0
  %248 = vmatprep.subr.bf16.mxu0 0
  %249 = vmatpush1.bf16.msra.mxu0 %v232
  %250 = vmatprep.subr.bf16.mxu0 0
  %251 = vmatpush2.bf16.msra.mxu0 0
  %252 = vmatprep.subr.bf16.mxu0 0
  %253 = vmatpush2.bf16.msra.mxu0 0
  %254 = vmatprep.subr.bf16.mxu0 0
  %255 = vmatpush2.bf16.msra.mxu0 0
  %256 = vmatprep.subr.bf16.mxu0 0
  %257 = vmatpush2.bf16.msra.mxu0 0
  %258 = vmatprep.subr.bf16.mxu0 0
  %259 = vmatpush2.bf16.msra.mxu0 0
  %260 = vmatprep.subr.bf16.mxu0 0
  %261 = vmatpush2.bf16.msra.mxu0 0
  %262 = vmatprep.subr.bf16.mxu0 0
  %263 = vmatpush2.bf16.msra.mxu0 0
  %264 = vmatprep.subr.bf16.mxu0 0
  %265 = vmatpush2.bf16.msra.mxu0 0
  %266 = vmatprep.mubr.bf16.mxu0 0
  %267 = vmatmul.mubr.bf16.gmra.mxu0 %v135
  %v268 = vpop.f32.mrf.mxu0
  %v269 = vadd.f32 0.0, %v268
  %v270 = vpop.f32.mrf.mxu0
  %v271 = vpop.f32.mrf.mxu0
  %v272 = vadd.f32 0.0, %v271
  %v273 = vpop.f32.mrf.mxu0
  %274 = vmatprep.mubr.bf16.mxu0 0
  %275 = vmatmul.mubr.bf16.gmra.mxu0 %v138
  %v276 = vpop.f32.mrf.mxu0
  %v277 = vadd.f32 0.0, %v276
  %v278 = vpop.f32.mrf.mxu0
  %v279 = vpop.f32.mrf.mxu0
  %v280 = vadd.f32 0.0, %v279
  %v281 = vpop.f32.mrf.mxu0
  %282 = vmatprep.mubr.bf16.mxu0 0
  %283 = vmatmul.mubr.bf16.gmra.mxu0 %v141
  %v284 = vpop.f32.mrf.mxu0
  %v285 = vadd.f32 0.0, %v284
  %v286 = vpop.f32.mrf.mxu0
  %v287 = vpop.f32.mrf.mxu0
  %v288 = vadd.f32 0.0, %v287
  %v289 = vpop.f32.mrf.mxu0
  %290 = vmatprep.mubr.bf16.mxu0 0
  %291 = vmatmul.mubr.bf16.gmra.mxu0 %v144
  %v292 = vpop.f32.mrf.mxu0
  %v293 = vadd.f32 0.0, %v292
  %v294 = vpop.f32.mrf.mxu0
  %v295 = vpop.f32.mrf.mxu0
  %v296 = vadd.f32 0.0, %v295
  %v297 = vpop.f32.mrf.mxu0
  %298 = vmatprep.mubr.bf16.mxu0 0
  %299 = vmatmul.mubr.bf16.gmra.mxu0 %v147
  %v300 = vpop.f32.mrf.mxu0
  %v301 = vadd.f32 0.0, %v300
  %v302 = vpop.f32.mrf.mxu0
  %v303 = vpop.f32.mrf.mxu0
  %v304 = vadd.f32 0.0, %v303
  %v305 = vpop.f32.mrf.mxu0
  %306 = vmatprep.mubr.bf16.mxu0 0
  %307 = vmatmul.mubr.bf16.gmra.mxu0 %v150
  %v308 = vpop.f32.mrf.mxu0
  %v309 = vadd.f32 0.0, %v308
  %v310 = vpop.f32.mrf.mxu0
  %v311 = vpop.f32.mrf.mxu0
  %v312 = vadd.f32 0.0, %v311
  %v313 = vpop.f32.mrf.mxu0
  %314 = vmatprep.mubr.bf16.mxu0 0
  %315 = vmatmul.mubr.bf16.gmra.mxu0 %v153
  %v316 = vpop.f32.mrf.mxu0
  %v317 = vadd.f32 0.0, %v316
  %v318 = vpop.f32.mrf.mxu0
  %v319 = vpop.f32.mrf.mxu0
  %v320 = vadd.f32 0.0, %v319
  %v321 = vpop.f32.mrf.mxu0
  %322 = vmatprep.mubr.bf16.mxu0 0
  %323 = vmatmul.mubr.bf16.gmra.mxu0 %v156
  %v324 = vpop.f32.mrf.mxu0
  %v325 = vadd.f32 0.0, %v324
  %v326 = vpop.f32.mrf.mxu0
  %v327 = vpop.f32.mrf.mxu0
  %v328 = vadd.f32 0.0, %v327
  %v329 = vpop.f32.mrf.mxu0
  %330 = vmatprep.mubr.bf16.mxu0 0
  %331 = vmatmul.mubr.bf16.gmra.mxu0 %v159
  %v332 = vpop.f32.mrf.mxu0
  %v333 = vadd.f32 0.0, %v332
  %v334 = vpop.f32.mrf.mxu0
  %v335 = vpop.f32.mrf.mxu0
  %v336 = vadd.f32 0.0, %v335
  %v337 = vpop.f32.mrf.mxu0
  %338 = vmatprep.mubr.bf16.mxu0 0
  %339 = vmatmul.mubr.bf16.gmra.mxu0 %v162
  %v340 = vpop.f32.mrf.mxu0
  %v341 = vadd.f32 0.0, %v340
  %v342 = vpop.f32.mrf.mxu0
  %v343 = vpop.f32.mrf.mxu0
  %v344 = vadd.f32 0.0, %v343
  %v345 = vpop.f32.mrf.mxu0
  %346 = vmatprep.mubr.bf16.mxu0 0
  %347 = vmatmul.mubr.bf16.gmra.mxu0 %v165
  %v348 = vpop.f32.mrf.mxu0
  %v349 = vadd.f32 0.0, %v348
  %v350 = vpop.f32.mrf.mxu0
  %v351 = vpop.f32.mrf.mxu0
  %v352 = vadd.f32 0.0, %v351
  %v353 = vpop.f32.mrf.mxu0
  %354 = vmatprep.mubr.bf16.mxu0 0
  %355 = vmatmul.mubr.bf16.gmra.mxu0 %v168
  %v356 = vpop.f32.mrf.mxu0
  %v357 = vadd.f32 0.0, %v356
  %v358 = vpop.f32.mrf.mxu0
  %v359 = vpop.f32.mrf.mxu0
  %v360 = vadd.f32 0.0, %v359
  %v361 = vpop.f32.mrf.mxu0
  %362 = vmatprep.mubr.bf16.mxu0 0
  %363 = vmatmul.mubr.bf16.gmra.mxu0 %v171
  %v364 = vpop.f32.mrf.mxu0
  %v365 = vadd.f32 0.0, %v364
  %v366 = vpop.f32.mrf.mxu0
  %v367 = vpop.f32.mrf.mxu0
  %v368 = vadd.f32 0.0, %v367
  %v369 = vpop.f32.mrf.mxu0
  %370 = vmatprep.mubr.bf16.mxu0 0
  %371 = vmatmul.mubr.bf16.gmra.mxu0 %v174
  %v372 = vpop.f32.mrf.mxu0
  %v373 = vadd.f32 0.0, %v372
  %v374 = vpop.f32.mrf.mxu0
  %v375 = vpop.f32.mrf.mxu0
  %v376 = vadd.f32 0.0, %v375
  %v377 = vpop.f32.mrf.mxu0
  %378 = vmatprep.mubr.bf16.mxu0 0
  %379 = vmatmul.mubr.bf16.gmra.mxu0 %v177
  %v380 = vpop.f32.mrf.mxu0
  %v381 = vadd.f32 0.0, %v380
  %v382 = vpop.f32.mrf.mxu0
  %v383 = vpop.f32.mrf.mxu0
  %v384 = vadd.f32 0.0, %v383
  %v385 = vpop.f32.mrf.mxu0
  %386 = vmatprep.mubr.bf16.mxu0 0
  %387 = vmatmul.mubr.bf16.gmra.mxu0 %v180
  %v388 = vpop.f32.mrf.mxu0
  %v389 = vadd.f32 0.0, %v388
  %v390 = vpop.f32.mrf.mxu0
  %v391 = vpop.f32.mrf.mxu0
  %v392 = vadd.f32 0.0, %v391
  %v393 = vpop.f32.mrf.mxu0
  %394 = vmatprep.mubr.bf16.mxu0 0
  %395 = vmatmul.mubr.bf16.gmra.mxu0 %v183
  %v396 = vpop.f32.mrf.mxu0
  %v397 = vadd.f32 0.0, %v396
  %v398 = vpop.f32.mrf.mxu0
  %v399 = vpop.f32.mrf.mxu0
  %v400 = vadd.f32 0.0, %v399
  %v401 = vpop.f32.mrf.mxu0
  %402 = vmatprep.mubr.bf16.mxu0 0
  %403 = vmatmul.mubr.bf16.gmra.mxu0 %v186
  %v404 = vpop.f32.mrf.mxu0
  %v405 = vadd.f32 0.0, %v404
  %v406 = vpop.f32.mrf.mxu0
  %v407 = vpop.f32.mrf.mxu0
  %v408 = vadd.f32 0.0, %v407
  %v409 = vpop.f32.mrf.mxu0
  %410 = vmatprep.mubr.bf16.mxu0 0
  %411 = vmatmul.mubr.bf16.gmra.mxu0 %v189
  %v412 = vpop.f32.mrf.mxu0
  %v413 = vadd.f32 0.0, %v412
  %v414 = vpop.f32.mrf.mxu0
  %v415 = vpop.f32.mrf.mxu0
  %v416 = vadd.f32 0.0, %v415
  %v417 = vpop.f32.mrf.mxu0
  %418 = vmatprep.mubr.bf16.mxu0 0
  %419 = vmatmul.mubr.bf16.gmra.mxu0 %v192
  %v420 = vpop.f32.mrf.mxu0
  %v421 = vadd.f32 0.0, %v420
  %v422 = vpop.f32.mrf.mxu0
  %v423 = vpop.f32.mrf.mxu0
  %v424 = vadd.f32 0.0, %v423
  %v425 = vpop.f32.mrf.mxu0
  %426 = vmatprep.mubr.bf16.mxu0 0
  %427 = vmatmul.mubr.bf16.gmra.mxu0 %v195
  %v428 = vpop.f32.mrf.mxu0
  %v429 = vadd.f32 0.0, %v428
  %v430 = vpop.f32.mrf.mxu0
  %v431 = vpop.f32.mrf.mxu0
  %v432 = vadd.f32 0.0, %v431
  %v433 = vpop.f32.mrf.mxu0
  %434 = vmatprep.mubr.bf16.mxu0 0
  %435 = vmatmul.mubr.bf16.gmra.mxu0 %v198
  %v436 = vpop.f32.mrf.mxu0
  %v437 = vadd.f32 0.0, %v436
  %v438 = vpop.f32.mrf.mxu0
  %v439 = vpop.f32.mrf.mxu0
  %v440 = vadd.f32 0.0, %v439
  %v441 = vpop.f32.mrf.mxu0
  %442 = vmatprep.mubr.bf16.mxu0 0
  %443 = vmatmul.mubr.bf16.gmra.mxu0 %v201
  %v444 = vpop.f32.mrf.mxu0
  %v445 = vadd.f32 0.0, %v444
  %v446 = vpop.f32.mrf.mxu0
  %v447 = vpop.f32.mrf.mxu0
  %v448 = vadd.f32 0.0, %v447
  %v449 = vpop.f32.mrf.mxu0
  %450 = vmatprep.mubr.bf16.mxu0 0
  %451 = vmatmul.mubr.bf16.gmra.mxu0 %v204
  %v452 = vpop.f32.mrf.mxu0
  %v453 = vadd.f32 0.0, %v452
  %v454 = vpop.f32.mrf.mxu0
  %v455 = vpop.f32.mrf.mxu0
  %v456 = vadd.f32 0.0, %v455
  %v457 = vpop.f32.mrf.mxu0
  %458 = vmatprep.mubr.bf16.mxu0 0
  %459 = vmatmul.mubr.bf16.gmra.mxu0 %v207
  %v460 = vpop.f32.mrf.mxu0
  %v461 = vadd.f32 0.0, %v460
  %v462 = vpop.f32.mrf.mxu0
  %v463 = vpop.f32.mrf.mxu0
  %v464 = vadd.f32 0.0, %v463
  %v465 = vpop.f32.mrf.mxu0
  %466 = vmatprep.mubr.bf16.mxu0 0
  %467 = vmatmul.mubr.bf16.gmra.mxu0 %v210
  %v468 = vpop.f32.mrf.mxu0
  %v469 = vadd.f32 0.0, %v468
  %v470 = vpop.f32.mrf.mxu0
  %v471 = vpop.f32.mrf.mxu0
  %v472 = vadd.f32 0.0, %v471
  %v473 = vpop.f32.mrf.mxu0
  %474 = vmatprep.mubr.bf16.mxu0 0
  %475 = vmatmul.mubr.bf16.gmra.mxu0 %v213
  %v476 = vpop.f32.mrf.mxu0
  %v477 = vadd.f32 0.0, %v476
  %v478 = vpop.f32.mrf.mxu0
  %v479 = vpop.f32.mrf.mxu0
  %v480 = vadd.f32 0.0, %v479
  %v481 = vpop.f32.mrf.mxu0
  %482 = vmatprep.mubr.bf16.mxu0 0
  %483 = vmatmul.mubr.bf16.gmra.mxu0 %v216
  %v484 = vpop.f32.mrf.mxu0
  %v485 = vadd.f32 0.0, %v484
  %v486 = vpop.f32.mrf.mxu0
  %v487 = vpop.f32.mrf.mxu0
  %v488 = vadd.f32 0.0, %v487
  %v489 = vpop.f32.mrf.mxu0
  %490 = vmatprep.mubr.bf16.mxu0 0
  %491 = vmatmul.mubr.bf16.gmra.mxu0 %v219
  %v492 = vpop.f32.mrf.mxu0
  %v493 = vadd.f32 0.0, %v492
  %v494 = vpop.f32.mrf.mxu0
  %v495 = vpop.f32.mrf.mxu0
  %v496 = vadd.f32 0.0, %v495
  %v497 = vpop.f32.mrf.mxu0
  %498 = vmatprep.mubr.bf16.mxu0 0
  %499 = vmatmul.mubr.bf16.gmra.mxu0 %v222
  %v500 = vpop.f32.mrf.mxu0
  %v501 = vadd.f32 0.0, %v500
  %v502 = vpop.f32.mrf.mxu0
  %v503 = vpop.f32.mrf.mxu0
  %v504 = vadd.f32 0.0, %v503
  %v505 = vpop.f32.mrf.mxu0
  %506 = vmatprep.mubr.bf16.mxu0 0
  %507 = vmatmul.mubr.bf16.gmra.mxu0 %v225
  %v508 = vpop.f32.mrf.mxu0
  %v509 = vadd.f32 0.0, %v508
  %v510 = vpop.f32.mrf.mxu0
  %v511 = vpop.f32.mrf.mxu0
  %v512 = vadd.f32 0.0, %v511
  %v513 = vpop.f32.mrf.mxu0
  %514 = vmatprep.mubr.bf16.mxu0 0
  %515 = vmatmul.mubr.bf16.gmra.mxu0 %v228
  %v516 = vpop.f32.mrf.mxu0
  %v517 = vadd.f32 0.0, %v516
  %v518 = vpop.f32.mrf.mxu0
  %v519 = vpop.f32.mrf.mxu0
  %v520 = vadd.f32 0.0, %v519
  %v521 = vpop.f32.mrf.mxu0
  %522 = vdwg.mxu0
  %v523 = vld [vmem:[%s4] sm:$0x1]
  %v524 = vld [vmem:[%s5] sm:$0x1]
  %vm525 = vcmask 261120
  %v526 = vsel %vm525, %v269, 0.0
  %v527 = vsel %vm525, %v272, 0.0
  %v528 = vadd.f32 %v526, %v527
  %v529 = vsel %vm525, %v277, 0.0
  %v530 = vadd.f32 %v528, %v529
  %v531 = vsel %vm525, %v280, 0.0
  %v532 = vadd.f32 %v530, %v531
  %v533 = vsel %vm525, %v285, 0.0
  %v534 = vadd.f32 %v532, %v533
  %v535 = vsel %vm525, %v288, 0.0
  %v536 = vadd.f32 %v534, %v535
  %v537 = vsel %vm525, %v293, 0.0
  %v538 = vadd.f32 %v536, %v537
  %v539 = vsel %vm525, %v296, 0.0
  %v540 = vadd.f32 %v538, %v539
  %v541 = vsel %vm525, %v301, 0.0
  %v542 = vadd.f32 %v540, %v541
  %v543 = vsel %vm525, %v304, 0.0
  %v544 = vadd.f32 %v542, %v543
  %v545 = vsel %vm525, %v309, 0.0
  %v546 = vadd.f32 %v544, %v545
  %v547 = vsel %vm525, %v312, 0.0
  %v548 = vadd.f32 %v546, %v547
  %v549 = vsel %vm525, %v317, 0.0
  %v550 = vadd.f32 %v548, %v549
  %v551 = vsel %vm525, %v320, 0.0
  %v552 = vadd.f32 %v550, %v551
  %v553 = vsel %vm525, %v325, 0.0
  %v554 = vadd.f32 %v552, %v553
  %v555 = vsel %vm525, %v328, 0.0
  %v556 = vadd.f32 %v554, %v555
  %v557 = vsel %vm525, %v333, 0.0
  %v558 = vadd.f32 %v556, %v557
  %v559 = vsel %vm525, %v336, 0.0
  %v560 = vadd.f32 %v558, %v559
  %v561 = vsel %vm525, %v341, 0.0
  %v562 = vadd.f32 %v560, %v561
  %v563 = vsel %vm525, %v344, 0.0
  %v564 = vadd.f32 %v562, %v563
  %v565 = vsel %vm525, %v349, 0.0
  %v566 = vadd.f32 %v564, %v565
  %v567 = vsel %vm525, %v352, 0.0
  %v568 = vadd.f32 %v566, %v567
  %v569 = vsel %vm525, %v357, 0.0
  %v570 = vadd.f32 %v568, %v569
  %v571 = vsel %vm525, %v360, 0.0
  %v572 = vadd.f32 %v570, %v571
  %v573 = vsel %vm525, %v365, 0.0
  %v574 = vadd.f32 %v572, %v573
  %v575 = vsel %vm525, %v368, 0.0
  %v576 = vadd.f32 %v574, %v575
  %v577 = vsel %vm525, %v373, 0.0
  %v578 = vadd.f32 %v576, %v577
  %v579 = vsel %vm525, %v376, 0.0
  %v580 = vadd.f32 %v578, %v579
  %v581 = vsel %vm525, %v381, 0.0
  %v582 = vadd.f32 %v580, %v581
  %v583 = vsel %vm525, %v384, 0.0
  %v584 = vadd.f32 %v582, %v583
  %v585 = vsel %vm525, %v389, 0.0
  %v586 = vadd.f32 %v584, %v585
  %v587 = vsel %vm525, %v392, 0.0
  %v588 = vadd.f32 %v586, %v587
  %v589 = vsel %vm525, %v397, 0.0
  %v590 = vadd.f32 %v588, %v589
  %v591 = vsel %vm525, %v400, 0.0
  %v592 = vadd.f32 %v590, %v591
  %v593 = vsel %vm525, %v405, 0.0
  %v594 = vadd.f32 %v592, %v593
  %v595 = vsel %vm525, %v408, 0.0
  %v596 = vadd.f32 %v594, %v595
  %v597 = vsel %vm525, %v413, 0.0
  %v598 = vadd.f32 %v596, %v597
  %v599 = vsel %vm525, %v416, 0.0
  %v600 = vadd.f32 %v598, %v599
  %v601 = vsel %vm525, %v421, 0.0
  %v602 = vadd.f32 %v600, %v601
  %v603 = vsel %vm525, %v424, 0.0
  %v604 = vadd.f32 %v602, %v603
  %v605 = vsel %vm525, %v429, 0.0
  %v606 = vadd.f32 %v604, %v605
  %v607 = vsel %vm525, %v432, 0.0
  %v608 = vadd.f32 %v606, %v607
  %v609 = vsel %vm525, %v437, 0.0
  %v610 = vadd.f32 %v608, %v609
  %v611 = vsel %vm525, %v440, 0.0
  %v612 = vadd.f32 %v610, %v611
  %v613 = vsel %vm525, %v445, 0.0
  %v614 = vadd.f32 %v612, %v613
  %v615 = vsel %vm525, %v448, 0.0
  %v616 = vadd.f32 %v614, %v615
  %v617 = vsel %vm525, %v453, 0.0
  %v618 = vadd.f32 %v616, %v617
  %v619 = vsel %vm525, %v456, 0.0
  %v620 = vadd.f32 %v618, %v619
  %v621 = vsel %vm525, %v461, 0.0
  %v622 = vadd.f32 %v620, %v621
  %v623 = vsel %vm525, %v464, 0.0
  %v624 = vadd.f32 %v622, %v623
  %v625 = vsel %vm525, %v469, 0.0
  %v626 = vadd.f32 %v624, %v625
  %v627 = vsel %vm525, %v472, 0.0
  %v628 = vadd.f32 %v626, %v627
  %v629 = vsel %vm525, %v477, 0.0
  %v630 = vadd.f32 %v628, %v629
  %v631 = vsel %vm525, %v480, 0.0
  %v632 = vadd.f32 %v630, %v631
  %v633 = vsel %vm525, %v485, 0.0
  %v634 = vadd.f32 %v632, %v633
  %v635 = vsel %vm525, %v488, 0.0
  %v636 = vadd.f32 %v634, %v635
  %v637 = vsel %vm525, %v493, 0.0
  %v638 = vadd.f32 %v636, %v637
  %v639 = vsel %vm525, %v496, 0.0
  %v640 = vadd.f32 %v638, %v639
  %v641 = vsel %vm525, %v501, 0.0
  %v642 = vadd.f32 %v640, %v641
  %v643 = vsel %vm525, %v504, 0.0
  %v644 = vadd.f32 %v642, %v643
  %v645 = vsel %vm525, %v509, 0.0
  %v646 = vadd.f32 %v644, %v645
  %v647 = vsel %vm525, %v512, 0.0
  %v648 = vadd.f32 %v646, %v647
  %v649 = vsel %vm525, %v517, 0.0
  %v650 = vadd.f32 %v648, %v649
  %v651 = vsel %vm525, %v520, 0.0
  %v652 = vadd.f32 %v650, %v651
  %v653 = vrot.slane %v652, 4
  %v654 = vadd.f32 %v652, %v653
  %v655 = vrot.slane %v654, 2
  %v656 = vadd.f32 %v654, %v655
  %v657 = vrot.slane %v656, 1
  %v658 = vadd.f32 %v656, %v657
  %v659 = vrcp.pop 512.0
  %v660 = vmul.f32 %v658, %v659
  %v661 = vsub.f32 %v269, %v660
  %v662 = vsub.f32 %v272, %v660
  %v663 = vsub.f32 %v277, %v660
  %v664 = vsub.f32 %v280, %v660
  %v665 = vsub.f32 %v285, %v660
  %v666 = vsub.f32 %v288, %v660
  %v667 = vsub.f32 %v293, %v660
  %v668 = vsub.f32 %v296, %v660
  %v669 = vsub.f32 %v301, %v660
  %v670 = vsub.f32 %v304, %v660
  %v671 = vsub.f32 %v309, %v660
  %v672 = vsub.f32 %v312, %v660
  %v673 = vsub.f32 %v317, %v660
  %v674 = vsub.f32 %v320, %v660
  %v675 = vsub.f32 %v325, %v660
  %v676 = vsub.f32 %v328, %v660
  %v677 = vsub.f32 %v333, %v660
  %v678 = vsub.f32 %v336, %v660
  %v679 = vsub.f32 %v341, %v660
  %v680 = vsub.f32 %v344, %v660
  %v681 = vsub.f32 %v349, %v660
  %v682 = vsub.f32 %v352, %v660
  %v683 = vsub.f32 %v357, %v660
  %v684 = vsub.f32 %v360, %v660
  %v685 = vsub.f32 %v365, %v660
  %v686 = vsub.f32 %v368, %v660
  %v687 = vsub.f32 %v373, %v660
  %v688 = vsub.f32 %v376, %v660
  %v689 = vsub.f32 %v381, %v660
  %v690 = vsub.f32 %v384, %v660
  %v691 = vsub.f32 %v389, %v660
  %v692 = vsub.f32 %v392, %v660
  %v693 = vsub.f32 %v397, %v660
  %v694 = vsub.f32 %v400, %v660
  %v695 = vsub.f32 %v405, %v660
  %v696 = vsub.f32 %v408, %v660
  %v697 = vsub.f32 %v413, %v660
  %v698 = vsub.f32 %v416, %v660
  %v699 = vsub.f32 %v421, %v660
  %v700 = vsub.f32 %v424, %v660
  %v701 = vsub.f32 %v429, %v660
  %v702 = vsub.f32 %v432, %v660
  %v703 = vsub.f32 %v437, %v660
  %v704 = vsub.f32 %v440, %v660
  %v705 = vsub.f32 %v445, %v660
  %v706 = vsub.f32 %v448, %v660
  %v707 = vsub.f32 %v453, %v660
  %v708 = vsub.f32 %v456, %v660
  %v709 = vsub.f32 %v461, %v660
  %v710 = vsub.f32 %v464, %v660
  %v711 = vsub.f32 %v469, %v660
  %v712 = vsub.f32 %v472, %v660
  %v713 = vsub.f32 %v477, %v660
  %v714 = vsub.f32 %v480, %v660
  %v715 = vsub.f32 %v485, %v660
  %v716 = vsub.f32 %v488, %v660
  %v717 = vsub.f32 %v493, %v660
  %v718 = vsub.f32 %v496, %v660
  %v719 = vsub.f32 %v501, %v660
  %v720 = vsub.f32 %v504, %v660
  %v721 = vsub.f32 %v509, %v660
  %v722 = vsub.f32 %v512, %v660
  %v723 = vsub.f32 %v517, %v660
  %v724 = vsub.f32 %v520, %v660
  %v725 = vmul.f32 %v661, %v661
  %v726 = vmul.f32 %v662, %v662
  %v727 = vmul.f32 %v663, %v663
  %v728 = vmul.f32 %v664, %v664
  %v729 = vmul.f32 %v665, %v665
  %v730 = vmul.f32 %v666, %v666
  %v731 = vmul.f32 %v667, %v667
  %v732 = vmul.f32 %v668, %v668
  %v733 = vmul.f32 %v669, %v669
  %v734 = vmul.f32 %v670, %v670
  %v735 = vmul.f32 %v671, %v671
  %v736 = vmul.f32 %v672, %v672
  %v737 = vmul.f32 %v673, %v673
  %v738 = vmul.f32 %v674, %v674
  %v739 = vmul.f32 %v675, %v675
  %v740 = vmul.f32 %v676, %v676
  %v741 = vmul.f32 %v677, %v677
  %v742 = vmul.f32 %v678, %v678
  %v743 = vmul.f32 %v679, %v679
  %v744 = vmul.f32 %v680, %v680
  %v745 = vmul.f32 %v681, %v681
  %v746 = vmul.f32 %v682, %v682
  %v747 = vmul.f32 %v683, %v683
  %v748 = vmul.f32 %v684, %v684
  %v749 = vmul.f32 %v685, %v685
  %v750 = vmul.f32 %v686, %v686
  %v751 = vmul.f32 %v687, %v687
  %v752 = vmul.f32 %v688, %v688
  %v753 = vmul.f32 %v689, %v689
  %v754 = vmul.f32 %v690, %v690
  %v755 = vmul.f32 %v691, %v691
  %v756 = vmul.f32 %v692, %v692
  %v757 = vmul.f32 %v693, %v693
  %v758 = vmul.f32 %v694, %v694
  %v759 = vmul.f32 %v695, %v695
  %v760 = vmul.f32 %v696, %v696
  %v761 = vmul.f32 %v697, %v697
  %v762 = vmul.f32 %v698, %v698
  %v763 = vmul.f32 %v699, %v699
  %v764 = vmul.f32 %v700, %v700
  %v765 = vmul.f32 %v701, %v701
  %v766 = vmul.f32 %v702, %v702
  %v767 = vmul.f32 %v703, %v703
  %v768 = vmul.f32 %v704, %v704
  %v769 = vmul.f32 %v705, %v705
  %v770 = vmul.f32 %v706, %v706
  %v771 = vmul.f32 %v707, %v707
  %v772 = vmul.f32 %v708, %v708
  %v773 = vmul.f32 %v709, %v709
  %v774 = vmul.f32 %v710, %v710
  %v775 = vmul.f32 %v711, %v711
  %v776 = vmul.f32 %v712, %v712
  %v777 = vmul.f32 %v713, %v713
  %v778 = vmul.f32 %v714, %v714
  %v779 = vmul.f32 %v715, %v715
  %v780 = vmul.f32 %v716, %v716
  %v781 = vmul.f32 %v717, %v717
  %v782 = vmul.f32 %v718, %v718
  %v783 = vmul.f32 %v719, %v719
  %v784 = vmul.f32 %v720, %v720
  %v785 = vmul.f32 %v721, %v721
  %v786 = vmul.f32 %v722, %v722
  %v787 = vmul.f32 %v723, %v723
  %v788 = vmul.f32 %v724, %v724
  %v789 = vsel %vm525, %v725, 0.0
  %v790 = vsel %vm525, %v726, 0.0
  %v791 = vadd.f32 %v789, %v790
  %v792 = vsel %vm525, %v727, 0.0
  %v793 = vadd.f32 %v791, %v792
  %v794 = vsel %vm525, %v728, 0.0
  %v795 = vadd.f32 %v793, %v794
  %v796 = vsel %vm525, %v729, 0.0
  %v797 = vadd.f32 %v795, %v796
  %v798 = vsel %vm525, %v730, 0.0
  %v799 = vadd.f32 %v797, %v798
  %v800 = vsel %vm525, %v731, 0.0
  %v801 = vadd.f32 %v799, %v800
  %v802 = vsel %vm525, %v732, 0.0
  %v803 = vadd.f32 %v801, %v802
  %v804 = vsel %vm525, %v733, 0.0
  %v805 = vadd.f32 %v803, %v804
  %v806 = vsel %vm525, %v734, 0.0
  %v807 = vadd.f32 %v805, %v806
  %v808 = vsel %vm525, %v735, 0.0
  %v809 = vadd.f32 %v807, %v808
  %v810 = vsel %vm525, %v736, 0.0
  %v811 = vadd.f32 %v809, %v810
  %v812 = vsel %vm525, %v737, 0.0
  %v813 = vadd.f32 %v811, %v812
  %v814 = vsel %vm525, %v738, 0.0
  %v815 = vadd.f32 %v813, %v814
  %v816 = vsel %vm525, %v739, 0.0
  %v817 = vadd.f32 %v815, %v816
  %v818 = vsel %vm525, %v740, 0.0
  %v819 = vadd.f32 %v817, %v818
  %v820 = vsel %vm525, %v741, 0.0
  %v821 = vadd.f32 %v819, %v820
  %v822 = vsel %vm525, %v742, 0.0
  %v823 = vadd.f32 %v821, %v822
  %v824 = vsel %vm525, %v743, 0.0
  %v825 = vadd.f32 %v823, %v824
  %v826 = vsel %vm525, %v744, 0.0
  %v827 = vadd.f32 %v825, %v826
  %v828 = vsel %vm525, %v745, 0.0
  %v829 = vadd.f32 %v827, %v828
  %v830 = vsel %vm525, %v746, 0.0
  %v831 = vadd.f32 %v829, %v830
  %v832 = vsel %vm525, %v747, 0.0
  %v833 = vadd.f32 %v831, %v832
  %v834 = vsel %vm525, %v748, 0.0
  %v835 = vadd.f32 %v833, %v834
  %v836 = vsel %vm525, %v749, 0.0
  %v837 = vadd.f32 %v835, %v836
  %v838 = vsel %vm525, %v750, 0.0
  %v839 = vadd.f32 %v837, %v838
  %v840 = vsel %vm525, %v751, 0.0
  %v841 = vadd.f32 %v839, %v840
  %v842 = vsel %vm525, %v752, 0.0
  %v843 = vadd.f32 %v841, %v842
  %v844 = vsel %vm525, %v753, 0.0
  %v845 = vadd.f32 %v843, %v844
  %v846 = vsel %vm525, %v754, 0.0
  %v847 = vadd.f32 %v845, %v846
  %v848 = vsel %vm525, %v755, 0.0
  %v849 = vadd.f32 %v847, %v848
  %v850 = vsel %vm525, %v756, 0.0
  %v851 = vadd.f32 %v849, %v850
  %v852 = vsel %vm525, %v757, 0.0
  %v853 = vadd.f32 %v851, %v852
  %v854 = vsel %vm525, %v758, 0.0
  %v855 = vadd.f32 %v853, %v854
  %v856 = vsel %vm525, %v759, 0.0
  %v857 = vadd.f32 %v855, %v856
  %v858 = vsel %vm525, %v760, 0.0
  %v859 = vadd.f32 %v857, %v858
  %v860 = vsel %vm525, %v761, 0.0
  %v861 = vadd.f32 %v859, %v860
  %v862 = vsel %vm525, %v762, 0.0
  %v863 = vadd.f32 %v861, %v862
  %v864 = vsel %vm525, %v763, 0.0
  %v865 = vadd.f32 %v863, %v864
  %v866 = vsel %vm525, %v764, 0.0
  %v867 = vadd.f32 %v865, %v866
  %v868 = vsel %vm525, %v765, 0.0
  %v869 = vadd.f32 %v867, %v868
  %v870 = vsel %vm525, %v766, 0.0
  %v871 = vadd.f32 %v869, %v870
  %v872 = vsel %vm525, %v767, 0.0
  %v873 = vadd.f32 %v871, %v872
  %v874 = vsel %vm525, %v768, 0.0
  %v875 = vadd.f32 %v873, %v874
  %v876 = vsel %vm525, %v769, 0.0
  %v877 = vadd.f32 %v875, %v876
  %v878 = vsel %vm525, %v770, 0.0
  %v879 = vadd.f32 %v877, %v878
  %v880 = vsel %vm525, %v771, 0.0
  %v881 = vadd.f32 %v879, %v880
  %v882 = vsel %vm525, %v772, 0.0
  %v883 = vadd.f32 %v881, %v882
  %v884 = vsel %vm525, %v773, 0.0
  %v885 = vadd.f32 %v883, %v884
  %v886 = vsel %vm525, %v774, 0.0
  %v887 = vadd.f32 %v885, %v886
  %v888 = vsel %vm525, %v775, 0.0
  %v889 = vadd.f32 %v887, %v888
  %v890 = vsel %vm525, %v776, 0.0
  %v891 = vadd.f32 %v889, %v890
  %v892 = vsel %vm525, %v777, 0.0
  %v893 = vadd.f32 %v891, %v892
  %v894 = vsel %vm525, %v778, 0.0
  %v895 = vadd.f32 %v893, %v894
  %v896 = vsel %vm525, %v779, 0.0
  %v897 = vadd.f32 %v895, %v896
  %v898 = vsel %vm525, %v780, 0.0
  %v899 = vadd.f32 %v897, %v898
  %v900 = vsel %vm525, %v781, 0.0
  %v901 = vadd.f32 %v899, %v900
  %v902 = vsel %vm525, %v782, 0.0
  %v903 = vadd.f32 %v901, %v902
  %v904 = vsel %vm525, %v783, 0.0
  %v905 = vadd.f32 %v903, %v904
  %v906 = vsel %vm525, %v784, 0.0
  %v907 = vadd.f32 %v905, %v906
  %v908 = vsel %vm525, %v785, 0.0
  %v909 = vadd.f32 %v907, %v908
  %v910 = vsel %vm525, %v786, 0.0
  %v911 = vadd.f32 %v909, %v910
  %v912 = vsel %vm525, %v787, 0.0
  %v913 = vadd.f32 %v911, %v912
  %v914 = vsel %vm525, %v788, 0.0
  %v915 = vadd.f32 %v913, %v914
  %v916 = vrot.slane %v915, 4
  %v917 = vadd.f32 %v915, %v916
  %v918 = vrot.slane %v917, 2
  %v919 = vadd.f32 %v917, %v918
  %v920 = vrot.slane %v919, 1
  %v921 = vadd.f32 %v919, %v920
  %v922 = vmul.f32 %v921, %v659
  %v923 = vadd.f32 %v922, 1e-05
  %v924 = vrsqrt.pop %v923
  %v925 = vmul.f32 %v661, %v924
  %v926 = vmul.f32 %v662, %v924
  %v927 = vmul.f32 %v663, %v924
  %v928 = vmul.f32 %v664, %v924
  %v929 = vmul.f32 %v665, %v924
  %v930 = vmul.f32 %v666, %v924
  %v931 = vmul.f32 %v667, %v924
  %v932 = vmul.f32 %v668, %v924
  %v933 = vmul.f32 %v669, %v924
  %v934 = vmul.f32 %v670, %v924
  %v935 = vmul.f32 %v671, %v924
  %v936 = vmul.f32 %v672, %v924
  %v937 = vmul.f32 %v673, %v924
  %v938 = vmul.f32 %v674, %v924
  %v939 = vmul.f32 %v675, %v924
  %v940 = vmul.f32 %v676, %v924
  %v941 = vmul.f32 %v677, %v924
  %v942 = vmul.f32 %v678, %v924
  %v943 = vmul.f32 %v679, %v924
  %v944 = vmul.f32 %v680, %v924
  %v945 = vmul.f32 %v681, %v924
  %v946 = vmul.f32 %v682, %v924
  %v947 = vmul.f32 %v683, %v924
  %v948 = vmul.f32 %v684, %v924
  %v949 = vmul.f32 %v685, %v924
  %v950 = vmul.f32 %v686, %v924
  %v951 = vmul.f32 %v687, %v924
  %v952 = vmul.f32 %v688, %v924
  %v953 = vmul.f32 %v689, %v924
  %v954 = vmul.f32 %v690, %v924
  %v955 = vmul.f32 %v691, %v924
  %v956 = vmul.f32 %v692, %v924
  %v957 = vmul.f32 %v693, %v924
  %v958 = vmul.f32 %v694, %v924
  %v959 = vmul.f32 %v695, %v924
  %v960 = vmul.f32 %v696, %v924
  %v961 = vmul.f32 %v697, %v924
  %v962 = vmul.f32 %v698, %v924
  %v963 = vmul.f32 %v699, %v924
  %v964 = vmul.f32 %v700, %v924
  %v965 = vmul.f32 %v701, %v924
  %v966 = vmul.f32 %v702, %v924
  %v967 = vmul.f32 %v703, %v924
  %v968 = vmul.f32 %v704, %v924
  %v969 = vmul.f32 %v705, %v924
  %v970 = vmul.f32 %v706, %v924
  %v971 = vmul.f32 %v707, %v924
  %v972 = vmul.f32 %v708, %v924
  %v973 = vmul.f32 %v709, %v924
  %v974 = vmul.f32 %v710, %v924
  %v975 = vmul.f32 %v711, %v924
  %v976 = vmul.f32 %v712, %v924
  %v977 = vmul.f32 %v713, %v924
  %v978 = vmul.f32 %v714, %v924
  %v979 = vmul.f32 %v715, %v924
  %v980 = vmul.f32 %v716, %v924
  %v981 = vmul.f32 %v717, %v924
  %v982 = vmul.f32 %v718, %v924
  %v983 = vmul.f32 %v719, %v924
  %v984 = vmul.f32 %v720, %v924
  %v985 = vmul.f32 %v721, %v924
  %v986 = vmul.f32 %v722, %v924
  %v987 = vmul.f32 %v723, %v924
  %v988 = vmul.f32 %v724, %v924
  %v990 = vlaneseq
  %v991 = vshrl.u32 %v990, 7
  %v992 = vsub.s32 0, %v991
  %v993 = vrot.slane %v523, %v992
  %v995 = vmul.f32 %v925, %v993
  %v996 = vmul.f32 %v926, %v993
  %v997 = vmul.f32 %v927, %v993
  %v998 = vmul.f32 %v928, %v993
  %v999 = vmul.f32 %v929, %v993
  %v1000 = vmul.f32 %v930, %v993
  %v1001 = vmul.f32 %v931, %v993
  %v1002 = vmul.f32 %v932, %v993
  %v1003 = vmul.f32 %v933, %v993
  %v1004 = vmul.f32 %v934, %v993
  %v1005 = vmul.f32 %v935, %v993
  %v1006 = vmul.f32 %v936, %v993
  %v1007 = vmul.f32 %v937, %v993
  %v1008 = vmul.f32 %v938, %v993
  %v1009 = vmul.f32 %v939, %v993
  %v1010 = vmul.f32 %v940, %v993
  %v1011 = vmul.f32 %v941, %v993
  %v1012 = vmul.f32 %v942, %v993
  %v1013 = vmul.f32 %v943, %v993
  %v1014 = vmul.f32 %v944, %v993
  %v1015 = vmul.f32 %v945, %v993
  %v1016 = vmul.f32 %v946, %v993
  %v1017 = vmul.f32 %v947, %v993
  %v1018 = vmul.f32 %v948, %v993
  %v1019 = vmul.f32 %v949, %v993
  %v1020 = vmul.f32 %v950, %v993
  %v1021 = vmul.f32 %v951, %v993
  %v1022 = vmul.f32 %v952, %v993
  %v1023 = vmul.f32 %v953, %v993
  %v1024 = vmul.f32 %v954, %v993
  %v1025 = vmul.f32 %v955, %v993
  %v1026 = vmul.f32 %v956, %v993
  %v1027 = vmul.f32 %v957, %v993
  %v1028 = vmul.f32 %v958, %v993
  %v1029 = vmul.f32 %v959, %v993
  %v1030 = vmul.f32 %v960, %v993
  %v1031 = vmul.f32 %v961, %v993
  %v1032 = vmul.f32 %v962, %v993
  %v1033 = vmul.f32 %v963, %v993
  %v1034 = vmul.f32 %v964, %v993
  %v1035 = vmul.f32 %v965, %v993
  %v1036 = vmul.f32 %v966, %v993
  %v1037 = vmul.f32 %v967, %v993
  %v1038 = vmul.f32 %v968, %v993
  %v1039 = vmul.f32 %v969, %v993
  %v1040 = vmul.f32 %v970, %v993
  %v1041 = vmul.f32 %v971, %v993
  %v1042 = vmul.f32 %v972, %v993
  %v1043 = vmul.f32 %v973, %v993
  %v1044 = vmul.f32 %v974, %v993
  %v1045 = vmul.f32 %v975, %v993
  %v1046 = vmul.f32 %v976, %v993
  %v1047 = vmul.f32 %v977, %v993
  %v1048 = vmul.f32 %v978, %v993
  %v1049 = vmul.f32 %v979, %v993
  %v1050 = vmul.f32 %v980, %v993
  %v1051 = vmul.f32 %v981, %v993
  %v1052 = vmul.f32 %v982, %v993
  %v1053 = vmul.f32 %v983, %v993
  %v1054 = vmul.f32 %v984, %v993
  %v1055 = vmul.f32 %v985, %v993
  %v1056 = vmul.f32 %v986, %v993
  %v1057 = vmul.f32 %v987, %v993
  %v1058 = vmul.f32 %v988, %v993
  %v1060 = vlaneseq
  %v1061 = vshrl.u32 %v1060, 7
  %v1062 = vsub.s32 0, %v1061
  %v1063 = vrot.slane %v524, %v1062
  %v1065 = vadd.f32 %v995, %v1063
  %v1066 = vadd.f32 %v996, %v1063
  %v1067 = vadd.f32 %v997, %v1063
  %v1068 = vadd.f32 %v998, %v1063
  %v1069 = vadd.f32 %v999, %v1063
  %v1070 = vadd.f32 %v1000, %v1063
  %v1071 = vadd.f32 %v1001, %v1063
  %v1072 = vadd.f32 %v1002, %v1063
  %v1073 = vadd.f32 %v1003, %v1063
  %v1074 = vadd.f32 %v1004, %v1063
  %v1075 = vadd.f32 %v1005, %v1063
  %v1076 = vadd.f32 %v1006, %v1063
  %v1077 = vadd.f32 %v1007, %v1063
  %v1078 = vadd.f32 %v1008, %v1063
  %v1079 = vadd.f32 %v1009, %v1063
  %v1080 = vadd.f32 %v1010, %v1063
  %v1081 = vadd.f32 %v1011, %v1063
  %v1082 = vadd.f32 %v1012, %v1063
  %v1083 = vadd.f32 %v1013, %v1063
  %v1084 = vadd.f32 %v1014, %v1063
  %v1085 = vadd.f32 %v1015, %v1063
  %v1086 = vadd.f32 %v1016, %v1063
  %v1087 = vadd.f32 %v1017, %v1063
  %v1088 = vadd.f32 %v1018, %v1063
  %v1089 = vadd.f32 %v1019, %v1063
  %v1090 = vadd.f32 %v1020, %v1063
  %v1091 = vadd.f32 %v1021, %v1063
  %v1092 = vadd.f32 %v1022, %v1063
  %v1093 = vadd.f32 %v1023, %v1063
  %v1094 = vadd.f32 %v1024, %v1063
  %v1095 = vadd.f32 %v1025, %v1063
  %v1096 = vadd.f32 %v1026, %v1063
  %v1097 = vadd.f32 %v1027, %v1063
  %v1098 = vadd.f32 %v1028, %v1063
  %v1099 = vadd.f32 %v1029, %v1063
  %v1100 = vadd.f32 %v1030, %v1063
  %v1101 = vadd.f32 %v1031, %v1063
  %v1102 = vadd.f32 %v1032, %v1063
  %v1103 = vadd.f32 %v1033, %v1063
  %v1104 = vadd.f32 %v1034, %v1063
  %v1105 = vadd.f32 %v1035, %v1063
  %v1106 = vadd.f32 %v1036, %v1063
  %v1107 = vadd.f32 %v1037, %v1063
  %v1108 = vadd.f32 %v1038, %v1063
  %v1109 = vadd.f32 %v1039, %v1063
  %v1110 = vadd.f32 %v1040, %v1063
  %v1111 = vadd.f32 %v1041, %v1063
  %v1112 = vadd.f32 %v1042, %v1063
  %v1113 = vadd.f32 %v1043, %v1063
  %v1114 = vadd.f32 %v1044, %v1063
  %v1115 = vadd.f32 %v1045, %v1063
  %v1116 = vadd.f32 %v1046, %v1063
  %v1117 = vadd.f32 %v1047, %v1063
  %v1118 = vadd.f32 %v1048, %v1063
  %v1119 = vadd.f32 %v1049, %v1063
  %v1120 = vadd.f32 %v1050, %v1063
  %v1121 = vadd.f32 %v1051, %v1063
  %v1122 = vadd.f32 %v1052, %v1063
  %v1123 = vadd.f32 %v1053, %v1063
  %v1124 = vadd.f32 %v1054, %v1063
  %v1125 = vadd.f32 %v1055, %v1063
  %v1126 = vadd.f32 %v1056, %v1063
  %v1127 = vadd.f32 %v1057, %v1063
  %v1128 = vadd.f32 %v1058, %v1063
  %v1129 = vmax.f32 %v1065, 0.0
  %v1130 = vmax.f32 %v1066, 0.0
  %v1131 = vmax.f32 %v1067, 0.0
  %v1132 = vmax.f32 %v1068, 0.0
  %v1133 = vmax.f32 %v1069, 0.0
  %v1134 = vmax.f32 %v1070, 0.0
  %v1135 = vmax.f32 %v1071, 0.0
  %v1136 = vmax.f32 %v1072, 0.0
  %v1137 = vmax.f32 %v1073, 0.0
  %v1138 = vmax.f32 %v1074, 0.0
  %v1139 = vmax.f32 %v1075, 0.0
  %v1140 = vmax.f32 %v1076, 0.0
  %v1141 = vmax.f32 %v1077, 0.0
  %v1142 = vmax.f32 %v1078, 0.0
  %v1143 = vmax.f32 %v1079, 0.0
  %v1144 = vmax.f32 %v1080, 0.0
  %v1145 = vmax.f32 %v1081, 0.0
  %v1146 = vmax.f32 %v1082, 0.0
  %v1147 = vmax.f32 %v1083, 0.0
  %v1148 = vmax.f32 %v1084, 0.0
  %v1149 = vmax.f32 %v1085, 0.0
  %v1150 = vmax.f32 %v1086, 0.0
  %v1151 = vmax.f32 %v1087, 0.0
  %v1152 = vmax.f32 %v1088, 0.0
  %v1153 = vmax.f32 %v1089, 0.0
  %v1154 = vmax.f32 %v1090, 0.0
  %v1155 = vmax.f32 %v1091, 0.0
  %v1156 = vmax.f32 %v1092, 0.0
  %v1157 = vmax.f32 %v1093, 0.0
  %v1158 = vmax.f32 %v1094, 0.0
  %v1159 = vmax.f32 %v1095, 0.0
  %v1160 = vmax.f32 %v1096, 0.0
  %v1161 = vmax.f32 %v1097, 0.0
  %v1162 = vmax.f32 %v1098, 0.0
  %v1163 = vmax.f32 %v1099, 0.0
  %v1164 = vmax.f32 %v1100, 0.0
  %v1165 = vmax.f32 %v1101, 0.0
  %v1166 = vmax.f32 %v1102, 0.0
  %v1167 = vmax.f32 %v1103, 0.0
  %v1168 = vmax.f32 %v1104, 0.0
  %v1169 = vmax.f32 %v1105, 0.0
  %v1170 = vmax.f32 %v1106, 0.0
  %v1171 = vmax.f32 %v1107, 0.0
  %v1172 = vmax.f32 %v1108, 0.0
  %v1173 = vmax.f32 %v1109, 0.0
  %v1174 = vmax.f32 %v1110, 0.0
  %v1175 = vmax.f32 %v1111, 0.0
  %v1176 = vmax.f32 %v1112, 0.0
  %v1177 = vmax.f32 %v1113, 0.0
  %v1178 = vmax.f32 %v1114, 0.0
  %v1179 = vmax.f32 %v1115, 0.0
  %v1180 = vmax.f32 %v1116, 0.0
  %v1181 = vmax.f32 %v1117, 0.0
  %v1182 = vmax.f32 %v1118, 0.0
  %v1183 = vmax.f32 %v1119, 0.0
  %v1184 = vmax.f32 %v1120, 0.0
  %v1185 = vmax.f32 %v1121, 0.0
  %v1186 = vmax.f32 %v1122, 0.0
  %v1187 = vmax.f32 %v1123, 0.0
  %v1188 = vmax.f32 %v1124, 0.0
  %v1189 = vmax.f32 %v1125, 0.0
  %v1190 = vmax.f32 %v1126, 0.0
  %v1191 = vmax.f32 %v1127, 0.0
  %v1192 = vmax.f32 %v1128, 0.0
  %vm1258 = vcmask 1040384
  %v1259 = vrot.slane 0.0, 7
  %v1260 = vsel %vm1258, %v1259, %v1259
  %v1261 = vrot.slane %v1129, 7
  %v1262 = vrot.slane %v1130, 7
  %v1263 = vsel %vm1258, %v1261, %v1262
  %v1264 = vrot.slane %v1131, 7
  %v1265 = vrot.slane %v1132, 7
  %v1266 = vsel %vm1258, %v1264, %v1265
  %v1267 = vrot.slane %v1133, 7
  %v1268 = vrot.slane %v1134, 7
  %v1269 = vsel %vm1258, %v1267, %v1268
  %v1270 = vrot.slane %v1135, 7
  %v1271 = vrot.slane %v1136, 7
  %v1272 = vsel %vm1258, %v1270, %v1271
  %v1273 = vrot.slane %v1137, 7
  %v1274 = vrot.slane %v1138, 7
  %v1275 = vsel %vm1258, %v1273, %v1274
  %v1276 = vrot.slane %v1139, 7
  %v1277 = vrot.slane %v1140, 7
  %v1278 = vsel %vm1258, %v1276, %v1277
  %v1279 = vrot.slane %v1141, 7
  %v1280 = vrot.slane %v1142, 7
  %v1281 = vsel %vm1258, %v1279, %v1280
  %v1282 = vrot.slane %v1143, 7
  %v1283 = vrot.slane %v1144, 7
  %v1284 = vsel %vm1258, %v1282, %v1283
  %v1285 = vrot.slane %v1145, 7
  %v1286 = vrot.slane %v1146, 7
  %v1287 = vsel %vm1258, %v1285, %v1286
  %v1288 = vrot.slane %v1147, 7
  %v1289 = vrot.slane %v1148, 7
  %v1290 = vsel %vm1258, %v1288, %v1289
  %v1291 = vrot.slane %v1149, 7
  %v1292 = vrot.slane %v1150, 7
  %v1293 = vsel %vm1258, %v1291, %v1292
  %v1294 = vrot.slane %v1151, 7
  %v1295 = vrot.slane %v1152, 7
  %v1296 = vsel %vm1258, %v1294, %v1295
  %v1297 = vrot.slane %v1153, 7
  %v1298 = vrot.slane %v1154, 7
  %v1299 = vsel %vm1258, %v1297, %v1298
  %v1300 = vrot.slane %v1155, 7
  %v1301 = vrot.slane %v1156, 7
  %v1302 = vsel %vm1258, %v1300, %v1301
  %v1303 = vrot.slane %v1157, 7
  %v1304 = vrot.slane %v1158, 7
  %v1305 = vsel %vm1258, %v1303, %v1304
  %v1306 = vrot.slane %v1159, 7
  %v1307 = vrot.slane %v1160, 7
  %v1308 = vsel %vm1258, %v1306, %v1307
  %v1309 = vrot.slane %v1161, 7
  %v1310 = vrot.slane %v1162, 7
  %v1311 = vsel %vm1258, %v1309, %v1310
  %v1312 = vrot.slane %v1163, 7
  %v1313 = vrot.slane %v1164, 7
  %v1314 = vsel %vm1258, %v1312, %v1313
  %v1315 = vrot.slane %v1165, 7
  %v1316 = vrot.slane %v1166, 7
  %v1317 = vsel %vm1258, %v1315, %v1316
  %v1318 = vrot.slane %v1167, 7
  %v1319 = vrot.slane %v1168, 7
  %v1320 = vsel %vm1258, %v1318, %v1319
  %v1321 = vrot.slane %v1169, 7
  %v1322 = vrot.slane %v1170, 7
  %v1323 = vsel %vm1258, %v1321, %v1322
  %v1324 = vrot.slane %v1171, 7
  %v1325 = vrot.slane %v1172, 7
  %v1326 = vsel %vm1258, %v1324, %v1325
  %v1327 = vrot.slane %v1173, 7
  %v1328 = vrot.slane %v1174, 7
  %v1329 = vsel %vm1258, %v1327, %v1328
  %v1330 = vrot.slane %v1175, 7
  %v1331 = vrot.slane %v1176, 7
  %v1332 = vsel %vm1258, %v1330, %v1331
  %v1333 = vrot.slane %v1177, 7
  %v1334 = vrot.slane %v1178, 7
  %v1335 = vsel %vm1258, %v1333, %v1334
  %v1336 = vrot.slane %v1179, 7
  %v1337 = vrot.slane %v1180, 7
  %v1338 = vsel %vm1258, %v1336, %v1337
  %v1339 = vrot.slane %v1181, 7
  %v1340 = vrot.slane %v1182, 7
  %v1341 = vsel %vm1258, %v1339, %v1340
  %v1342 = vrot.slane %v1183, 7
  %v1343 = vrot.slane %v1184, 7
  %v1344 = vsel %vm1258, %v1342, %v1343
  %v1345 = vrot.slane %v1185, 7
  %v1346 = vrot.slane %v1186, 7
  %v1347 = vsel %vm1258, %v1345, %v1346
  %v1348 = vrot.slane %v1187, 7
  %v1349 = vrot.slane %v1188, 7
  %v1350 = vsel %vm1258, %v1348, %v1349
  %v1351 = vrot.slane %v1189, 7
  %v1352 = vrot.slane %v1190, 7
  %v1353 = vsel %vm1258, %v1351, %v1352
  %v1354 = vrot.slane %v1191, 7
  %v1355 = vrot.slane %v1192, 7
  %v1356 = vsel %vm1258, %v1354, %v1355
  %v1455 = vsel %vm1258, 0.0, %v1259
  %v1456 = vsel %vm1258, 0.0, %v1261
  %v1457 = vsel %vm1258, 0.0, %v1264
  %v1458 = vsel %vm1258, 0.0, %v1267
  %v1459 = vsel %vm1258, 0.0, %v1270
  %v1460 = vsel %vm1258, 0.0, %v1273
  %v1461 = vsel %vm1258, 0.0, %v1276
  %v1462 = vsel %vm1258, 0.0, %v1279
  %v1463 = vsel %vm1258, 0.0, %v1282
  %v1464 = vsel %vm1258, 0.0, %v1285
  %v1465 = vsel %vm1258, 0.0, %v1288
  %v1466 = vsel %vm1258, 0.0, %v1291
  %v1467 = vsel %vm1258, 0.0, %v1294
  %v1468 = vsel %vm1258, 0.0, %v1297
  %v1469 = vsel %vm1258, 0.0, %v1300
  %v1470 = vsel %vm1258, 0.0, %v1303
  %v1471 = vsel %vm1258, 0.0, %v1306
  %v1472 = vsel %vm1258, 0.0, %v1309
  %v1473 = vsel %vm1258, 0.0, %v1312
  %v1474 = vsel %vm1258, 0.0, %v1315
  %v1475 = vsel %vm1258, 0.0, %v1318
  %v1476 = vsel %vm1258, 0.0, %v1321
  %v1477 = vsel %vm1258, 0.0, %v1324
  %v1478 = vsel %vm1258, 0.0, %v1327
  %v1479 = vsel %vm1258, 0.0, %v1330
  %v1480 = vsel %vm1258, 0.0, %v1333
  %v1481 = vsel %vm1258, 0.0, %v1336
  %v1482 = vsel %vm1258, 0.0, %v1339
  %v1483 = vsel %vm1258, 0.0, %v1342
  %v1484 = vsel %vm1258, 0.0, %v1345
  %v1485 = vsel %vm1258, 0.0, %v1348
  %v1486 = vsel %vm1258, 0.0, %v1351
  %v1487 = vsel %vm1258, 0.0, %v1354
  %v1488 = vsel %vm1258, %v1259, 0.0
  %v1489 = vsel %vm1258, %v1262, 0.0
  %v1490 = vsel %vm1258, %v1265, 0.0
  %v1491 = vsel %vm1258, %v1268, 0.0
  %v1492 = vsel %vm1258, %v1271, 0.0
  %v1493 = vsel %vm1258, %v1274, 0.0
  %v1494 = vsel %vm1258, %v1277, 0.0
  %v1495 = vsel %vm1258, %v1280, 0.0
  %v1496 = vsel %vm1258, %v1283, 0.0
  %v1497 = vsel %vm1258, %v1286, 0.0
  %v1498 = vsel %vm1258, %v1289, 0.0
  %v1499 = vsel %vm1258, %v1292, 0.0
  %v1500 = vsel %vm1258, %v1295, 0.0
  %v1501 = vsel %vm1258, %v1298, 0.0
  %v1502 = vsel %vm1258, %v1301, 0.0
  %v1503 = vsel %vm1258, %v1304, 0.0
  %v1504 = vsel %vm1258, %v1307, 0.0
  %v1505 = vsel %vm1258, %v1310, 0.0
  %v1506 = vsel %vm1258, %v1313, 0.0
  %v1507 = vsel %vm1258, %v1316, 0.0
  %v1508 = vsel %vm1258, %v1319, 0.0
  %v1509 = vsel %vm1258, %v1322, 0.0
  %v1510 = vsel %vm1258, %v1325, 0.0
  %v1511 = vsel %vm1258, %v1328, 0.0
  %v1512 = vsel %vm1258, %v1331, 0.0
  %v1513 = vsel %vm1258, %v1334, 0.0
  %v1514 = vsel %vm1258, %v1337, 0.0
  %v1515 = vsel %vm1258, %v1340, 0.0
  %v1516 = vsel %vm1258, %v1343, 0.0
  %v1517 = vsel %vm1258, %v1346, 0.0
  %v1518 = vsel %vm1258, %v1349, 0.0
  %v1519 = vsel %vm1258, %v1352, 0.0
  %v1520 = vsel %vm1258, %v1355, 0.0
  %v1521 = vld [vmem:[%s2] sm:$0x1]
  %v1522 = vlaneseq
  %v1523 = vshrl.u32 %v1522, 7
  %v1524 = vsub.s32 0, %v1523
  %v1525 = vrot.slane %v1521, %v1524
  %v1526 = vmul.f32 %v1455, %v1525
  %v1527 = vmul.f32 %v1260, %v1525
  %v1528 = vmul.f32 %v1456, %v1525
  %v1529 = vmul.f32 %v1263, %v1525
  %v1530 = vmul.f32 %v1457, %v1525
  %v1531 = vmul.f32 %v1266, %v1525
  %v1532 = vmul.f32 %v1458, %v1525
  %v1533 = vmul.f32 %v1269, %v1525
  %v1534 = vmul.f32 %v1459, %v1525
  %v1535 = vmul.f32 %v1272, %v1525
  %v1536 = vmul.f32 %v1460, %v1525
  %v1537 = vmul.f32 %v1275, %v1525
  %v1538 = vmul.f32 %v1461, %v1525
  %v1539 = vmul.f32 %v1278, %v1525
  %v1540 = vmul.f32 %v1462, %v1525
  %v1541 = vmul.f32 %v1281, %v1525
  %v1542 = vmul.f32 %v1463, %v1525
  %v1543 = vmul.f32 %v1284, %v1525
  %v1544 = vmul.f32 %v1464, %v1525
  %v1545 = vmul.f32 %v1287, %v1525
  %v1546 = vmul.f32 %v1465, %v1525
  %v1547 = vmul.f32 %v1290, %v1525
  %v1548 = vmul.f32 %v1466, %v1525
  %v1549 = vmul.f32 %v1293, %v1525
  %v1550 = vmul.f32 %v1467, %v1525
  %v1551 = vmul.f32 %v1296, %v1525
  %v1552 = vmul.f32 %v1468, %v1525
  %v1553 = vmul.f32 %v1299, %v1525
  %v1554 = vmul.f32 %v1469, %v1525
  %v1555 = vmul.f32 %v1302, %v1525
  %v1556 = vmul.f32 %v1470, %v1525
  %v1557 = vmul.f32 %v1305, %v1525
  %v1558 = vmul.f32 %v1472, %v1525
  %v1559 = vmul.f32 %v1311, %v1525
  %v1560 = vmul.f32 %v1473, %v1525
  %v1561 = vmul.f32 %v1314, %v1525
  %v1562 = vmul.f32 %v1474, %v1525
  %v1563 = vmul.f32 %v1317, %v1525
  %v1564 = vmul.f32 %v1475, %v1525
  %v1565 = vmul.f32 %v1320, %v1525
  %v1566 = vmul.f32 %v1476, %v1525
  %v1567 = vmul.f32 %v1323, %v1525
  %v1568 = vmul.f32 %v1477, %v1525
  %v1569 = vmul.f32 %v1326, %v1525
  %v1570 = vmul.f32 %v1478, %v1525
  %v1571 = vmul.f32 %v1329, %v1525
  %v1572 = vmul.f32 %v1479, %v1525
  %v1573 = vmul.f32 %v1332, %v1525
  %v1574 = vmul.f32 %v1480, %v1525
  %v1575 = vmul.f32 %v1335, %v1525
  %v1576 = vmul.f32 %v1481, %v1525
  %v1577 = vmul.f32 %v1338, %v1525
  %v1578 = vmul.f32 %v1482, %v1525
  %v1579 = vmul.f32 %v1341, %v1525
  %v1580 = vmul.f32 %v1483, %v1525
  %v1581 = vmul.f32 %v1344, %v1525
  %v1582 = vmul.f32 %v1484, %v1525
  %v1583 = vmul.f32 %v1347, %v1525
  %v1584 = vmul.f32 %v1485, %v1525
  %v1585 = vmul.f32 %v1350, %v1525
  %v1586 = vmul.f32 %v1486, %v1525
  %v1587 = vmul.f32 %v1353, %v1525
  %v1588 = vadd.f32 %v1526, 0.0
  %v1589 = vadd.f32 %v1527, 0.0
  %v1590 = vadd.f32 %v1528, 0.0
  %v1591 = vadd.f32 %v1529, 0.0
  %v1592 = vadd.f32 %v1530, 0.0
  %v1593 = vadd.f32 %v1531, 0.0
  %v1594 = vadd.f32 %v1532, 0.0
  %v1595 = vadd.f32 %v1533, 0.0
  %v1596 = vadd.f32 %v1534, 0.0
  %v1597 = vadd.f32 %v1535, 0.0
  %v1598 = vadd.f32 %v1536, 0.0
  %v1599 = vadd.f32 %v1537, 0.0
  %v1600 = vadd.f32 %v1538, 0.0
  %v1601 = vadd.f32 %v1539, 0.0
  %v1602 = vadd.f32 %v1540, 0.0
  %v1603 = vadd.f32 %v1541, 0.0
  %v1604 = vadd.f32 %v1542, 0.0
  %v1605 = vadd.f32 %v1543, 0.0
  %v1606 = vadd.f32 %v1544, 0.0
  %v1607 = vadd.f32 %v1545, 0.0
  %v1608 = vadd.f32 %v1546, 0.0
  %v1609 = vadd.f32 %v1547, 0.0
  %v1610 = vadd.f32 %v1548, 0.0
  %v1611 = vadd.f32 %v1549, 0.0
  %v1612 = vadd.f32 %v1550, 0.0
  %v1613 = vadd.f32 %v1551, 0.0
  %v1614 = vadd.f32 %v1552, 0.0
  %v1615 = vadd.f32 %v1553, 0.0
  %v1616 = vadd.f32 %v1554, 0.0
  %v1617 = vadd.f32 %v1555, 0.0
  %v1618 = vadd.f32 %v1556, 0.0
  %v1619 = vadd.f32 %v1557, 0.0
  %v1620 = vadd.f32 %v1558, 0.0
  %v1621 = vadd.f32 %v1559, 0.0
  %v1622 = vadd.f32 %v1560, 0.0
  %v1623 = vadd.f32 %v1561, 0.0
  %v1624 = vadd.f32 %v1562, 0.0
  %v1625 = vadd.f32 %v1563, 0.0
  %v1626 = vadd.f32 %v1564, 0.0
  %v1627 = vadd.f32 %v1565, 0.0
  %v1628 = vadd.f32 %v1566, 0.0
  %v1629 = vadd.f32 %v1567, 0.0
  %v1630 = vadd.f32 %v1568, 0.0
  %v1631 = vadd.f32 %v1569, 0.0
  %v1632 = vadd.f32 %v1570, 0.0
  %v1633 = vadd.f32 %v1571, 0.0
  %v1634 = vadd.f32 %v1572, 0.0
  %v1635 = vadd.f32 %v1573, 0.0
  %v1636 = vadd.f32 %v1574, 0.0
  %v1637 = vadd.f32 %v1575, 0.0
  %v1638 = vadd.f32 %v1576, 0.0
  %v1639 = vadd.f32 %v1577, 0.0
  %v1640 = vadd.f32 %v1578, 0.0
  %v1641 = vadd.f32 %v1579, 0.0
  %v1642 = vadd.f32 %v1580, 0.0
  %v1643 = vadd.f32 %v1581, 0.0
  %v1644 = vadd.f32 %v1582, 0.0
  %v1645 = vadd.f32 %v1583, 0.0
  %v1646 = vadd.f32 %v1584, 0.0
  %v1647 = vadd.f32 %v1585, 0.0
  %v1648 = vadd.f32 %v1586, 0.0
  %v1649 = vadd.f32 %v1587, 0.0
  %v1650 = vld [vmem:[%s2 + $0x1] sm:$0x1]
  %v1651 = vlaneseq
  %v1652 = vshrl.u32 %v1651, 7
  %v1653 = vsub.s32 0, %v1652
  %v1654 = vrot.slane %v1650, %v1653
  %v1655 = vmul.f32 %v1455, %v1654
  %v1656 = vmul.f32 %v1260, %v1654
  %v1657 = vmul.f32 %v1488, %v1654
  %v1658 = vmul.f32 %v1456, %v1654
  %v1659 = vmul.f32 %v1263, %v1654
  %v1660 = vmul.f32 %v1489, %v1654
  %v1661 = vmul.f32 %v1457, %v1654
  %v1662 = vmul.f32 %v1266, %v1654
  %v1663 = vmul.f32 %v1490, %v1654
  %v1664 = vmul.f32 %v1458, %v1654
  %v1665 = vmul.f32 %v1269, %v1654
  %v1666 = vmul.f32 %v1491, %v1654
  %v1667 = vmul.f32 %v1459, %v1654
  %v1668 = vmul.f32 %v1272, %v1654
  %v1669 = vmul.f32 %v1492, %v1654
  %v1670 = vmul.f32 %v1460, %v1654
  %v1671 = vmul.f32 %v1275, %v1654
  %v1672 = vmul.f32 %v1493, %v1654
  %v1673 = vmul.f32 %v1461, %v1654
  %v1674 = vmul.f32 %v1278, %v1654
  %v1675 = vmul.f32 %v1494, %v1654
  %v1676 = vmul.f32 %v1462, %v1654
  %v1677 = vmul.f32 %v1281, %v1654
  %v1678 = vmul.f32 %v1495, %v1654
  %v1679 = vmul.f32 %v1463, %v1654
  %v1680 = vmul.f32 %v1284, %v1654
  %v1681 = vmul.f32 %v1496, %v1654
  %v1682 = vmul.f32 %v1464, %v1654
  %v1683 = vmul.f32 %v1287, %v1654
  %v1684 = vmul.f32 %v1497, %v1654
  %v1685 = vmul.f32 %v1465, %v1654
  %v1686 = vmul.f32 %v1290, %v1654
  %v1687 = vmul.f32 %v1498, %v1654
  %v1688 = vmul.f32 %v1466, %v1654
  %v1689 = vmul.f32 %v1293, %v1654
  %v1690 = vmul.f32 %v1499, %v1654
  %v1691 = vmul.f32 %v1467, %v1654
  %v1692 = vmul.f32 %v1296, %v1654
  %v1693 = vmul.f32 %v1500, %v1654
  %v1694 = vmul.f32 %v1468, %v1654
  %v1695 = vmul.f32 %v1299, %v1654
  %v1696 = vmul.f32 %v1501, %v1654
  %v1697 = vmul.f32 %v1469, %v1654
  %v1698 = vmul.f32 %v1302, %v1654
  %v1699 = vmul.f32 %v1502, %v1654
  %v1700 = vmul.f32 %v1470, %v1654
  %v1701 = vmul.f32 %v1305, %v1654
  %v1702 = vmul.f32 %v1503, %v1654
  %v1703 = vmul.f32 %v1472, %v1654
  %v1704 = vmul.f32 %v1311, %v1654
  %v1705 = vmul.f32 %v1505, %v1654
  %v1706 = vmul.f32 %v1473, %v1654
  %v1707 = vmul.f32 %v1314, %v1654
  %v1708 = vmul.f32 %v1506, %v1654
  %v1709 = vmul.f32 %v1474, %v1654
  %v1710 = vmul.f32 %v1317, %v1654
  %v1711 = vmul.f32 %v1507, %v1654
  %v1712 = vmul.f32 %v1475, %v1654
  %v1713 = vmul.f32 %v1320, %v1654
  %v1714 = vmul.f32 %v1508, %v1654
  %v1715 = vmul.f32 %v1476, %v1654
  %v1716 = vmul.f32 %v1323, %v1654
  %v1717 = vmul.f32 %v1509, %v1654
  %v1718 = vmul.f32 %v1477, %v1654
  %v1719 = vmul.f32 %v1326, %v1654
  %v1720 = vmul.f32 %v1510, %v1654
  %v1721 = vmul.f32 %v1478, %v1654
  %v1722 = vmul.f32 %v1329, %v1654
  %v1723 = vmul.f32 %v1511, %v1654
  %v1724 = vmul.f32 %v1479, %v1654
  %v1725 = vmul.f32 %v1332, %v1654
  %v1726 = vmul.f32 %v1512, %v1654
  %v1727 = vmul.f32 %v1480, %v1654
  %v1728 = vmul.f32 %v1335, %v1654
  %v1729 = vmul.f32 %v1513, %v1654
  %v1730 = vmul.f32 %v1481, %v1654
  %v1731 = vmul.f32 %v1338, %v1654
  %v1732 = vmul.f32 %v1514, %v1654
  %v1733 = vmul.f32 %v1482, %v1654
  %v1734 = vmul.f32 %v1341, %v1654
  %v1735 = vmul.f32 %v1515, %v1654
  %v1736 = vmul.f32 %v1483, %v1654
  %v1737 = vmul.f32 %v1344, %v1654
  %v1738 = vmul.f32 %v1516, %v1654
  %v1739 = vmul.f32 %v1484, %v1654
  %v1740 = vmul.f32 %v1347, %v1654
  %v1741 = vmul.f32 %v1517, %v1654
  %v1742 = vmul.f32 %v1485, %v1654
  %v1743 = vmul.f32 %v1350, %v1654
  %v1744 = vmul.f32 %v1518, %v1654
  %v1745 = vmul.f32 %v1486, %v1654
  %v1746 = vmul.f32 %v1353, %v1654
  %v1747 = vmul.f32 %v1519, %v1654
  %vm1841 = vcmask 1046528
  %v1842 = vrot.slane %v1655, 1
  %v1843 = vrot.slane %v1656, 1
  %v1844 = vsel %vm1841, %v1842, %v1843
  %v1845 = vrot.slane %v1657, 1
  %v1846 = vsel %vm1841, %v1843, %v1845
  %v1847 = vrot.slane %v1658, 1
  %v1848 = vrot.slane %v1659, 1
  %v1849 = vsel %vm1841, %v1847, %v1848
  %v1850 = vrot.slane %v1660, 1
  %v1851 = vsel %vm1841, %v1848, %v1850
  %v1852 = vrot.slane %v1661, 1
  %v1853 = vrot.slane %v1662, 1
  %v1854 = vsel %vm1841, %v1852, %v1853
  %v1855 = vrot.slane %v1663, 1
  %v1856 = vsel %vm1841, %v1853, %v1855
  %v1857 = vrot.slane %v1664, 1
  %v1858 = vrot.slane %v1665, 1
  %v1859 = vsel %vm1841, %v1857, %v1858
  %v1860 = vrot.slane %v1666, 1
  %v1861 = vsel %vm1841, %v1858, %v1860
  %v1862 = vrot.slane %v1667, 1
  %v1863 = vrot.slane %v1668, 1
  %v1864 = vsel %vm1841, %v1862, %v1863
  %v1865 = vrot.slane %v1669, 1
  %v1866 = vsel %vm1841, %v1863, %v1865
  %v1867 = vrot.slane %v1670, 1
  %v1868 = vrot.slane %v1671, 1
  %v1869 = vsel %vm1841, %v1867, %v1868
  %v1870 = vrot.slane %v1672, 1
  %v1871 = vsel %vm1841, %v1868, %v1870
  %v1872 = vrot.slane %v1673, 1
  %v1873 = vrot.slane %v1674, 1
  %v1874 = vsel %vm1841, %v1872, %v1873
  %v1875 = vrot.slane %v1675, 1
  %v1876 = vsel %vm1841, %v1873, %v1875
  %v1877 = vrot.slane %v1676, 1
  %v1878 = vrot.slane %v1677, 1
  %v1879 = vsel %vm1841, %v1877, %v1878
  %v1880 = vrot.slane %v1678, 1
  %v1881 = vsel %vm1841, %v1878, %v1880
  %v1882 = vrot.slane %v1679, 1
  %v1883 = vrot.slane %v1680, 1
  %v1884 = vsel %vm1841, %v1882, %v1883
  %v1885 = vrot.slane %v1681, 1
  %v1886 = vsel %vm1841, %v1883, %v1885
  %v1887 = vrot.slane %v1682, 1
  %v1888 = vrot.slane %v1683, 1
  %v1889 = vsel %vm1841, %v1887, %v1888
  %v1890 = vrot.slane %v1684, 1
  %v1891 = vsel %vm1841, %v1888, %v1890
  %v1892 = vrot.slane %v1685, 1
  %v1893 = vrot.slane %v1686, 1
  %v1894 = vsel %vm1841, %v1892, %v1893
  %v1895 = vrot.slane %v1687, 1
  %v1896 = vsel %vm1841, %v1893, %v1895
  %v1897 = vrot.slane %v1688, 1
  %v1898 = vrot.slane %v1689, 1
  %v1899 = vsel %vm1841, %v1897, %v1898
  %v1900 = vrot.slane %v1690, 1
  %v1901 = vsel %vm1841, %v1898, %v1900
  %v1902 = vrot.slane %v1691, 1
  %v1903 = vrot.slane %v1692, 1
  %v1904 = vsel %vm1841, %v1902, %v1903
  %v1905 = vrot.slane %v1693, 1
  %v1906 = vsel %vm1841, %v1903, %v1905
  %v1907 = vrot.slane %v1694, 1
  %v1908 = vrot.slane %v1695, 1
  %v1909 = vsel %vm1841, %v1907, %v1908
  %v1910 = vrot.slane %v1696, 1
  %v1911 = vsel %vm1841, %v1908, %v1910
  %v1912 = vrot.slane %v1697, 1
  %v1913 = vrot.slane %v1698, 1
  %v1914 = vsel %vm1841, %v1912, %v1913
  %v1915 = vrot.slane %v1699, 1
  %v1916 = vsel %vm1841, %v1913, %v1915
  %v1917 = vrot.slane %v1700, 1
  %v1918 = vrot.slane %v1701, 1
  %v1919 = vsel %vm1841, %v1917, %v1918
  %v1920 = vrot.slane %v1702, 1
  %v1921 = vsel %vm1841, %v1918, %v1920
  %v1922 = vrot.slane %v1703, 1
  %v1923 = vrot.slane %v1704, 1
  %v1924 = vsel %vm1841, %v1922, %v1923
  %v1925 = vrot.slane %v1705, 1
  %v1926 = vsel %vm1841, %v1923, %v1925
  %v1927 = vrot.slane %v1706, 1
  %v1928 = vrot.slane %v1707, 1
  %v1929 = vsel %vm1841, %v1927, %v1928
  %v1930 = vrot.slane %v1708, 1
  %v1931 = vsel %vm1841, %v1928, %v1930
  %v1932 = vrot.slane %v1709, 1
  %v1933 = vrot.slane %v1710, 1
  %v1934 = vsel %vm1841, %v1932, %v1933
  %v1935 = vrot.slane %v1711, 1
  %v1936 = vsel %vm1841, %v1933, %v1935
  %v1937 = vrot.slane %v1712, 1
  %v1938 = vrot.slane %v1713, 1
  %v1939 = vsel %vm1841, %v1937, %v1938
  %v1940 = vrot.slane %v1714, 1
  %v1941 = vsel %vm1841, %v1938, %v1940
  %v1942 = vrot.slane %v1715, 1
  %v1943 = vrot.slane %v1716, 1
  %v1944 = vsel %vm1841, %v1942, %v1943
  %v1945 = vrot.slane %v1717, 1
  %v1946 = vsel %vm1841, %v1943, %v1945
  %v1947 = vrot.slane %v1718, 1
  %v1948 = vrot.slane %v1719, 1
  %v1949 = vsel %vm1841, %v1947, %v1948
  %v1950 = vrot.slane %v1720, 1
  %v1951 = vsel %vm1841, %v1948, %v1950
  %v1952 = vrot.slane %v1721, 1
  %v1953 = vrot.slane %v1722, 1
  %v1954 = vsel %vm1841, %v1952, %v1953
  %v1955 = vrot.slane %v1723, 1
  %v1956 = vsel %vm1841, %v1953, %v1955
  %v1957 = vrot.slane %v1724, 1
  %v1958 = vrot.slane %v1725, 1
  %v1959 = vsel %vm1841, %v1957, %v1958
  %v1960 = vrot.slane %v1726, 1
  %v1961 = vsel %vm1841, %v1958, %v1960
  %v1962 = vrot.slane %v1727, 1
  %v1963 = vrot.slane %v1728, 1
  %v1964 = vsel %vm1841, %v1962, %v1963
  %v1965 = vrot.slane %v1729, 1
  %v1966 = vsel %vm1841, %v1963, %v1965
  %v1967 = vrot.slane %v1730, 1
  %v1968 = vrot.slane %v1731, 1
  %v1969 = vsel %vm1841, %v1967, %v1968
  %v1970 = vrot.slane %v1732, 1
  %v1971 = vsel %vm1841, %v1968, %v1970
  %v1972 = vrot.slane %v1733, 1
  %v1973 = vrot.slane %v1734, 1
  %v1974 = vsel %vm1841, %v1972, %v1973
  %v1975 = vrot.slane %v1735, 1
  %v1976 = vsel %vm1841, %v1973, %v1975
  %v1977 = vrot.slane %v1736, 1
  %v1978 = vrot.slane %v1737, 1
  %v1979 = vsel %vm1841, %v1977, %v1978
  %v1980 = vrot.slane %v1738, 1
  %v1981 = vsel %vm1841, %v1978, %v1980
  %v1982 = vrot.slane %v1739, 1
  %v1983 = vrot.slane %v1740, 1
  %v1984 = vsel %vm1841, %v1982, %v1983
  %v1985 = vrot.slane %v1741, 1
  %v1986 = vsel %vm1841, %v1983, %v1985
  %v1987 = vrot.slane %v1742, 1
  %v1988 = vrot.slane %v1743, 1
  %v1989 = vsel %vm1841, %v1987, %v1988
  %v1990 = vrot.slane %v1744, 1
  %v1991 = vsel %vm1841, %v1988, %v1990
  %v1992 = vrot.slane %v1745, 1
  %v1993 = vrot.slane %v1746, 1
  %v1994 = vsel %vm1841, %v1992, %v1993
  %v1995 = vrot.slane %v1747, 1
  %v1996 = vsel %vm1841, %v1993, %v1995
  %v2059 = vadd.f32 %v1588, %v1844
  %v2060 = vadd.f32 %v1589, %v1846
  %v2061 = vadd.f32 %v1590, %v1849
  %v2062 = vadd.f32 %v1591, %v1851
  %v2063 = vadd.f32 %v1592, %v1854
  %v2064 = vadd.f32 %v1593, %v1856
  %v2065 = vadd.f32 %v1594, %v1859
  %v2066 = vadd.f32 %v1595, %v1861
  %v2067 = vadd.f32 %v1596, %v1864
  %v2068 = vadd.f32 %v1597, %v1866
  %v2069 = vadd.f32 %v1598, %v1869
  %v2070 = vadd.f32 %v1599, %v1871
  %v2071 = vadd.f32 %v1600, %v1874
  %v2072 = vadd.f32 %v1601, %v1876
  %v2073 = vadd.f32 %v1602, %v1879
  %v2074 = vadd.f32 %v1603, %v1881
  %v2075 = vadd.f32 %v1604, %v1884
  %v2076 = vadd.f32 %v1605, %v1886
  %v2077 = vadd.f32 %v1606, %v1889
  %v2078 = vadd.f32 %v1607, %v1891
  %v2079 = vadd.f32 %v1608, %v1894
  %v2080 = vadd.f32 %v1609, %v1896
  %v2081 = vadd.f32 %v1610, %v1899
  %v2082 = vadd.f32 %v1611, %v1901
  %v2083 = vadd.f32 %v1612, %v1904
  %v2084 = vadd.f32 %v1613, %v1906
  %v2085 = vadd.f32 %v1614, %v1909
  %v2086 = vadd.f32 %v1615, %v1911
  %v2087 = vadd.f32 %v1616, %v1914
  %v2088 = vadd.f32 %v1617, %v1916
  %v2089 = vadd.f32 %v1618, %v1919
  %v2090 = vadd.f32 %v1619, %v1921
  %v2091 = vadd.f32 %v1620, %v1924
  %v2092 = vadd.f32 %v1621, %v1926
  %v2093 = vadd.f32 %v1622, %v1929
  %v2094 = vadd.f32 %v1623, %v1931
  %v2095 = vadd.f32 %v1624, %v1934
  %v2096 = vadd.f32 %v1625, %v1936
  %v2097 = vadd.f32 %v1626, %v1939
  %v2098 = vadd.f32 %v1627, %v1941
  %v2099 = vadd.f32 %v1628, %v1944
  %v2100 = vadd.f32 %v1629, %v1946
  %v2101 = vadd.f32 %v1630, %v1949
  %v2102 = vadd.f32 %v1631, %v1951
  %v2103 = vadd.f32 %v1632, %v1954
  %v2104 = vadd.f32 %v1633, %v1956
  %v2105 = vadd.f32 %v1634, %v1959
  %v2106 = vadd.f32 %v1635, %v1961
  %v2107 = vadd.f32 %v1636, %v1964
  %v2108 = vadd.f32 %v1637, %v1966
  %v2109 = vadd.f32 %v1638, %v1969
  %v2110 = vadd.f32 %v1639, %v1971
  %v2111 = vadd.f32 %v1640, %v1974
  %v2112 = vadd.f32 %v1641, %v1976
  %v2113 = vadd.f32 %v1642, %v1979
  %v2114 = vadd.f32 %v1643, %v1981
  %v2115 = vadd.f32 %v1644, %v1984
  %v2116 = vadd.f32 %v1645, %v1986
  %v2117 = vadd.f32 %v1646, %v1989
  %v2118 = vadd.f32 %v1647, %v1991
  %v2119 = vadd.f32 %v1648, %v1994
  %v2120 = vadd.f32 %v1649, %v1996
  %v2121 = vld [vmem:[%s2 + $0x2] sm:$0x1]
  %v2122 = vlaneseq
  %v2123 = vshrl.u32 %v2122, 7
  %v2124 = vsub.s32 0, %v2123
  %v2125 = vrot.slane %v2121, %v2124
  %v2126 = vmul.f32 %v1455, %v2125
  %v2127 = vmul.f32 %v1260, %v2125
  %v2128 = vmul.f32 %v1488, %v2125
  %v2129 = vmul.f32 %v1456, %v2125
  %v2130 = vmul.f32 %v1263, %v2125
  %v2131 = vmul.f32 %v1489, %v2125
  %v2132 = vmul.f32 %v1457, %v2125
  %v2133 = vmul.f32 %v1266, %v2125
  %v2134 = vmul.f32 %v1490, %v2125
  %v2135 = vmul.f32 %v1458, %v2125
  %v2136 = vmul.f32 %v1269, %v2125
  %v2137 = vmul.f32 %v1491, %v2125
  %v2138 = vmul.f32 %v1459, %v2125
  %v2139 = vmul.f32 %v1272, %v2125
  %v2140 = vmul.f32 %v1492, %v2125
  %v2141 = vmul.f32 %v1460, %v2125
  %v2142 = vmul.f32 %v1275, %v2125
  %v2143 = vmul.f32 %v1493, %v2125
  %v2144 = vmul.f32 %v1461, %v2125
  %v2145 = vmul.f32 %v1278, %v2125
  %v2146 = vmul.f32 %v1494, %v2125
  %v2147 = vmul.f32 %v1462, %v2125
  %v2148 = vmul.f32 %v1281, %v2125
  %v2149 = vmul.f32 %v1495, %v2125
  %v2150 = vmul.f32 %v1463, %v2125
  %v2151 = vmul.f32 %v1284, %v2125
  %v2152 = vmul.f32 %v1496, %v2125
  %v2153 = vmul.f32 %v1464, %v2125
  %v2154 = vmul.f32 %v1287, %v2125
  %v2155 = vmul.f32 %v1497, %v2125
  %v2156 = vmul.f32 %v1465, %v2125
  %v2157 = vmul.f32 %v1290, %v2125
  %v2158 = vmul.f32 %v1498, %v2125
  %v2159 = vmul.f32 %v1466, %v2125
  %v2160 = vmul.f32 %v1293, %v2125
  %v2161 = vmul.f32 %v1499, %v2125
  %v2162 = vmul.f32 %v1467, %v2125
  %v2163 = vmul.f32 %v1296, %v2125
  %v2164 = vmul.f32 %v1500, %v2125
  %v2165 = vmul.f32 %v1468, %v2125
  %v2166 = vmul.f32 %v1299, %v2125
  %v2167 = vmul.f32 %v1501, %v2125
  %v2168 = vmul.f32 %v1469, %v2125
  %v2169 = vmul.f32 %v1302, %v2125
  %v2170 = vmul.f32 %v1502, %v2125
  %v2171 = vmul.f32 %v1470, %v2125
  %v2172 = vmul.f32 %v1305, %v2125
  %v2173 = vmul.f32 %v1503, %v2125
  %v2174 = vmul.f32 %v1472, %v2125
  %v2175 = vmul.f32 %v1311, %v2125
  %v2176 = vmul.f32 %v1505, %v2125
  %v2177 = vmul.f32 %v1473, %v2125
  %v2178 = vmul.f32 %v1314, %v2125
  %v2179 = vmul.f32 %v1506, %v2125
  %v2180 = vmul.f32 %v1474, %v2125
  %v2181 = vmul.f32 %v1317, %v2125
  %v2182 = vmul.f32 %v1507, %v2125
  %v2183 = vmul.f32 %v1475, %v2125
  %v2184 = vmul.f32 %v1320, %v2125
  %v2185 = vmul.f32 %v1508, %v2125
  %v2186 = vmul.f32 %v1476, %v2125
  %v2187 = vmul.f32 %v1323, %v2125
  %v2188 = vmul.f32 %v1509, %v2125
  %v2189 = vmul.f32 %v1477, %v2125
  %v2190 = vmul.f32 %v1326, %v2125
  %v2191 = vmul.f32 %v1510, %v2125
  %v2192 = vmul.f32 %v1478, %v2125
  %v2193 = vmul.f32 %v1329, %v2125
  %v2194 = vmul.f32 %v1511, %v2125
  %v2195 = vmul.f32 %v1479, %v2125
  %v2196 = vmul.f32 %v1332, %v2125
  %v2197 = vmul.f32 %v1512, %v2125
  %v2198 = vmul.f32 %v1480, %v2125
  %v2199 = vmul.f32 %v1335, %v2125
  %v2200 = vmul.f32 %v1513, %v2125
  %v2201 = vmul.f32 %v1481, %v2125
  %v2202 = vmul.f32 %v1338, %v2125
  %v2203 = vmul.f32 %v1514, %v2125
  %v2204 = vmul.f32 %v1482, %v2125
  %v2205 = vmul.f32 %v1341, %v2125
  %v2206 = vmul.f32 %v1515, %v2125
  %v2207 = vmul.f32 %v1483, %v2125
  %v2208 = vmul.f32 %v1344, %v2125
  %v2209 = vmul.f32 %v1516, %v2125
  %v2210 = vmul.f32 %v1484, %v2125
  %v2211 = vmul.f32 %v1347, %v2125
  %v2212 = vmul.f32 %v1517, %v2125
  %v2213 = vmul.f32 %v1485, %v2125
  %v2214 = vmul.f32 %v1350, %v2125
  %v2215 = vmul.f32 %v1518, %v2125
  %v2216 = vmul.f32 %v1486, %v2125
  %v2217 = vmul.f32 %v1353, %v2125
  %v2218 = vmul.f32 %v1519, %v2125
  %vm2312 = vcmask 1045504
  %v2313 = vrot.slane %v2126, 2
  %v2314 = vrot.slane %v2127, 2
  %v2315 = vsel %vm2312, %v2313, %v2314
  %v2316 = vrot.slane %v2128, 2
  %v2317 = vsel %vm2312, %v2314, %v2316
  %v2318 = vrot.slane %v2129, 2
  %v2319 = vrot.slane %v2130, 2
  %v2320 = vsel %vm2312, %v2318, %v2319
  %v2321 = vrot.slane %v2131, 2
  %v2322 = vsel %vm2312, %v2319, %v2321
  %v2323 = vrot.slane %v2132, 2
  %v2324 = vrot.slane %v2133, 2
  %v2325 = vsel %vm2312, %v2323, %v2324
  %v2326 = vrot.slane %v2134, 2
  %v2327 = vsel %vm2312, %v2324, %v2326
  %v2328 = vrot.slane %v2135, 2
  %v2329 = vrot.slane %v2136, 2
  %v2330 = vsel %vm2312, %v2328, %v2329
  %v2331 = vrot.slane %v2137, 2
  %v2332 = vsel %vm2312, %v2329, %v2331
  %v2333 = vrot.slane %v2138, 2
  %v2334 = vrot.slane %v2139, 2
  %v2335 = vsel %vm2312, %v2333, %v2334
  %v2336 = vrot.slane %v2140, 2
  %v2337 = vsel %vm2312, %v2334, %v2336
  %v2338 = vrot.slane %v2141, 2
  %v2339 = vrot.slane %v2142, 2
  %v2340 = vsel %vm2312, %v2338, %v2339
  %v2341 = vrot.slane %v2143, 2
  %v2342 = vsel %vm2312, %v2339, %v2341
  %v2343 = vrot.slane %v2144, 2
  %v2344 = vrot.slane %v2145, 2
  %v2345 = vsel %vm2312, %v2343, %v2344
  %v2346 = vrot.slane %v2146, 2
  %v2347 = vsel %vm2312, %v2344, %v2346
  %v2348 = vrot.slane %v2147, 2
  %v2349 = vrot.slane %v2148, 2
  %v2350 = vsel %vm2312, %v2348, %v2349
  %v2351 = vrot.slane %v2149, 2
  %v2352 = vsel %vm2312, %v2349, %v2351
  %v2353 = vrot.slane %v2150, 2
  %v2354 = vrot.slane %v2151, 2
  %v2355 = vsel %vm2312, %v2353, %v2354
  %v2356 = vrot.slane %v2152, 2
  %v2357 = vsel %vm2312, %v2354, %v2356
  %v2358 = vrot.slane %v2153, 2
  %v2359 = vrot.slane %v2154, 2
  %v2360 = vsel %vm2312, %v2358, %v2359
  %v2361 = vrot.slane %v2155, 2
  %v2362 = vsel %vm2312, %v2359, %v2361
  %v2363 = vrot.slane %v2156, 2
  %v2364 = vrot.slane %v2157, 2
  %v2365 = vsel %vm2312, %v2363, %v2364
  %v2366 = vrot.slane %v2158, 2
  %v2367 = vsel %vm2312, %v2364, %v2366
  %v2368 = vrot.slane %v2159, 2
  %v2369 = vrot.slane %v2160, 2
  %v2370 = vsel %vm2312, %v2368, %v2369
  %v2371 = vrot.slane %v2161, 2
  %v2372 = vsel %vm2312, %v2369, %v2371
  %v2373 = vrot.slane %v2162, 2
  %v2374 = vrot.slane %v2163, 2
  %v2375 = vsel %vm2312, %v2373, %v2374
  %v2376 = vrot.slane %v2164, 2
  %v2377 = vsel %vm2312, %v2374, %v2376
  %v2378 = vrot.slane %v2165, 2
  %v2379 = vrot.slane %v2166, 2
  %v2380 = vsel %vm2312, %v2378, %v2379
  %v2381 = vrot.slane %v2167, 2
  %v2382 = vsel %vm2312, %v2379, %v2381
  %v2383 = vrot.slane %v2168, 2
  %v2384 = vrot.slane %v2169, 2
  %v2385 = vsel %vm2312, %v2383, %v2384
  %v2386 = vrot.slane %v2170, 2
  %v2387 = vsel %vm2312, %v2384, %v2386
  %v2388 = vrot.slane %v2171, 2
  %v2389 = vrot.slane %v2172, 2
  %v2390 = vsel %vm2312, %v2388, %v2389
  %v2391 = vrot.slane %v2173, 2
  %v2392 = vsel %vm2312, %v2389, %v2391
  %v2393 = vrot.slane %v2174, 2
  %v2394 = vrot.slane %v2175, 2
  %v2395 = vsel %vm2312, %v2393, %v2394
  %v2396 = vrot.slane %v2176, 2
  %v2397 = vsel %vm2312, %v2394, %v2396
  %v2398 = vrot.slane %v2177, 2
  %v2399 = vrot.slane %v2178, 2
  %v2400 = vsel %vm2312, %v2398, %v2399
  %v2401 = vrot.slane %v2179, 2
  %v2402 = vsel %vm2312, %v2399, %v2401
  %v2403 = vrot.slane %v2180, 2
  %v2404 = vrot.slane %v2181, 2
  %v2405 = vsel %vm2312, %v2403, %v2404
  %v2406 = vrot.slane %v2182, 2
  %v2407 = vsel %vm2312, %v2404, %v2406
  %v2408 = vrot.slane %v2183, 2
  %v2409 = vrot.slane %v2184, 2
  %v2410 = vsel %vm2312, %v2408, %v2409
  %v2411 = vrot.slane %v2185, 2
  %v2412 = vsel %vm2312, %v2409, %v2411
  %v2413 = vrot.slane %v2186, 2
  %v2414 = vrot.slane %v2187, 2
  %v2415 = vsel %vm2312, %v2413, %v2414
  %v2416 = vrot.slane %v2188, 2
  %v2417 = vsel %vm2312, %v2414, %v2416
  %v2418 = vrot.slane %v2189, 2
  %v2419 = vrot.slane %v2190, 2
  %v2420 = vsel %vm2312, %v2418, %v2419
  %v2421 = vrot.slane %v2191, 2
  %v2422 = vsel %vm2312, %v2419, %v2421
  %v2423 = vrot.slane %v2192, 2
  %v2424 = vrot.slane %v2193, 2
  %v2425 = vsel %vm2312, %v2423, %v2424
  %v2426 = vrot.slane %v2194, 2
  %v2427 = vsel %vm2312, %v2424, %v2426
  %v2428 = vrot.slane %v2195, 2
  %v2429 = vrot.slane %v2196, 2
  %v2430 = vsel %vm2312, %v2428, %v2429
  %v2431 = vrot.slane %v2197, 2
  %v2432 = vsel %vm2312, %v2429, %v2431
  %v2433 = vrot.slane %v2198, 2
  %v2434 = vrot.slane %v2199, 2
  %v2435 = vsel %vm2312, %v2433, %v2434
  %v2436 = vrot.slane %v2200, 2
  %v2437 = vsel %vm2312, %v2434, %v2436
  %v2438 = vrot.slane %v2201, 2
  %v2439 = vrot.slane %v2202, 2
  %v2440 = vsel %vm2312, %v2438, %v2439
  %v2441 = vrot.slane %v2203, 2
  %v2442 = vsel %vm2312, %v2439, %v2441
  %v2443 = vrot.slane %v2204, 2
  %v2444 = vrot.slane %v2205, 2
  %v2445 = vsel %vm2312, %v2443, %v2444
  %v2446 = vrot.slane %v2206, 2
  %v2447 = vsel %vm2312, %v2444, %v2446
  %v2448 = vrot.slane %v2207, 2
  %v2449 = vrot.slane %v2208, 2
  %v2450 = vsel %vm2312, %v2448, %v2449
  %v2451 = vrot.slane %v2209, 2
  %v2452 = vsel %vm2312, %v2449, %v2451
  %v2453 = vrot.slane %v2210, 2
  %v2454 = vrot.slane %v2211, 2
  %v2455 = vsel %vm2312, %v2453, %v2454
  %v2456 = vrot.slane %v2212, 2
  %v2457 = vsel %vm2312, %v2454, %v2456
  %v2458 = vrot.slane %v2213, 2
  %v2459 = vrot.slane %v2214, 2
  %v2460 = vsel %vm2312, %v2458, %v2459
  %v2461 = vrot.slane %v2215, 2
  %v2462 = vsel %vm2312, %v2459, %v2461
  %v2463 = vrot.slane %v2216, 2
  %v2464 = vrot.slane %v2217, 2
  %v2465 = vsel %vm2312, %v2463, %v2464
  %v2466 = vrot.slane %v2218, 2
  %v2467 = vsel %vm2312, %v2464, %v2466
  %v2530 = vadd.f32 %v2059, %v2315
  %v2531 = vadd.f32 %v2060, %v2317
  %v2532 = vadd.f32 %v2061, %v2320
  %v2533 = vadd.f32 %v2062, %v2322
  %v2534 = vadd.f32 %v2063, %v2325
  %v2535 = vadd.f32 %v2064, %v2327
  %v2536 = vadd.f32 %v2065, %v2330
  %v2537 = vadd.f32 %v2066, %v2332
  %v2538 = vadd.f32 %v2067, %v2335
  %v2539 = vadd.f32 %v2068, %v2337
  %v2540 = vadd.f32 %v2069, %v2340
  %v2541 = vadd.f32 %v2070, %v2342
  %v2542 = vadd.f32 %v2071, %v2345
  %v2543 = vadd.f32 %v2072, %v2347
  %v2544 = vadd.f32 %v2073, %v2350
  %v2545 = vadd.f32 %v2074, %v2352
  %v2546 = vadd.f32 %v2075, %v2355
  %v2547 = vadd.f32 %v2076, %v2357
  %v2548 = vadd.f32 %v2077, %v2360
  %v2549 = vadd.f32 %v2078, %v2362
  %v2550 = vadd.f32 %v2079, %v2365
  %v2551 = vadd.f32 %v2080, %v2367
  %v2552 = vadd.f32 %v2081, %v2370
  %v2553 = vadd.f32 %v2082, %v2372
  %v2554 = vadd.f32 %v2083, %v2375
  %v2555 = vadd.f32 %v2084, %v2377
  %v2556 = vadd.f32 %v2085, %v2380
  %v2557 = vadd.f32 %v2086, %v2382
  %v2558 = vadd.f32 %v2087, %v2385
  %v2559 = vadd.f32 %v2088, %v2387
  %v2560 = vadd.f32 %v2089, %v2390
  %v2561 = vadd.f32 %v2090, %v2392
  %v2562 = vadd.f32 %v2091, %v2395
  %v2563 = vadd.f32 %v2092, %v2397
  %v2564 = vadd.f32 %v2093, %v2400
  %v2565 = vadd.f32 %v2094, %v2402
  %v2566 = vadd.f32 %v2095, %v2405
  %v2567 = vadd.f32 %v2096, %v2407
  %v2568 = vadd.f32 %v2097, %v2410
  %v2569 = vadd.f32 %v2098, %v2412
  %v2570 = vadd.f32 %v2099, %v2415
  %v2571 = vadd.f32 %v2100, %v2417
  %v2572 = vadd.f32 %v2101, %v2420
  %v2573 = vadd.f32 %v2102, %v2422
  %v2574 = vadd.f32 %v2103, %v2425
  %v2575 = vadd.f32 %v2104, %v2427
  %v2576 = vadd.f32 %v2105, %v2430
  %v2577 = vadd.f32 %v2106, %v2432
  %v2578 = vadd.f32 %v2107, %v2435
  %v2579 = vadd.f32 %v2108, %v2437
  %v2580 = vadd.f32 %v2109, %v2440
  %v2581 = vadd.f32 %v2110, %v2442
  %v2582 = vadd.f32 %v2111, %v2445
  %v2583 = vadd.f32 %v2112, %v2447
  %v2584 = vadd.f32 %v2113, %v2450
  %v2585 = vadd.f32 %v2114, %v2452
  %v2586 = vadd.f32 %v2115, %v2455
  %v2587 = vadd.f32 %v2116, %v2457
  %v2588 = vadd.f32 %v2117, %v2460
  %v2589 = vadd.f32 %v2118, %v2462
  %v2590 = vadd.f32 %v2119, %v2465
  %v2591 = vadd.f32 %v2120, %v2467
  %s2592 = scalar_lea.vmem %s2, 4
  %v2593 = vld [vmem:[%s2592] sm:$0x1]
  %v2594 = vlaneseq
  %v2595 = vshrl.u32 %v2594, 7
  %v2596 = vsub.s32 0, %v2595
  %v2597 = vrot.slane %v2593, %v2596
  %v2598 = vmul.f32 %v1456, %v2597
  %v2599 = vmul.f32 %v1263, %v2597
  %v2600 = vmul.f32 %v1457, %v2597
  %v2601 = vmul.f32 %v1266, %v2597
  %v2602 = vmul.f32 %v1458, %v2597
  %v2603 = vmul.f32 %v1269, %v2597
  %v2604 = vmul.f32 %v1459, %v2597
  %v2605 = vmul.f32 %v1272, %v2597
  %v2606 = vmul.f32 %v1460, %v2597
  %v2607 = vmul.f32 %v1275, %v2597
  %v2608 = vmul.f32 %v1461, %v2597
  %v2609 = vmul.f32 %v1278, %v2597
  %v2610 = vmul.f32 %v1462, %v2597
  %v2611 = vmul.f32 %v1281, %v2597
  %v2612 = vmul.f32 %v1463, %v2597
  %v2613 = vmul.f32 %v1284, %v2597
  %v2614 = vmul.f32 %v1464, %v2597
  %v2615 = vmul.f32 %v1287, %v2597
  %v2616 = vmul.f32 %v1465, %v2597
  %v2617 = vmul.f32 %v1290, %v2597
  %v2618 = vmul.f32 %v1466, %v2597
  %v2619 = vmul.f32 %v1293, %v2597
  %v2620 = vmul.f32 %v1467, %v2597
  %v2621 = vmul.f32 %v1296, %v2597
  %v2622 = vmul.f32 %v1468, %v2597
  %v2623 = vmul.f32 %v1299, %v2597
  %v2624 = vmul.f32 %v1469, %v2597
  %v2625 = vmul.f32 %v1302, %v2597
  %v2626 = vmul.f32 %v1470, %v2597
  %v2627 = vmul.f32 %v1305, %v2597
  %v2628 = vmul.f32 %v1471, %v2597
  %v2629 = vmul.f32 %v1308, %v2597
  %v2630 = vmul.f32 %v1472, %v2597
  %v2631 = vmul.f32 %v1311, %v2597
  %v2632 = vmul.f32 %v1473, %v2597
  %v2633 = vmul.f32 %v1314, %v2597
  %v2634 = vmul.f32 %v1474, %v2597
  %v2635 = vmul.f32 %v1317, %v2597
  %v2636 = vmul.f32 %v1475, %v2597
  %v2637 = vmul.f32 %v1320, %v2597
  %v2638 = vmul.f32 %v1476, %v2597
  %v2639 = vmul.f32 %v1323, %v2597
  %v2640 = vmul.f32 %v1477, %v2597
  %v2641 = vmul.f32 %v1326, %v2597
  %v2642 = vmul.f32 %v1478, %v2597
  %v2643 = vmul.f32 %v1329, %v2597
  %v2644 = vmul.f32 %v1479, %v2597
  %v2645 = vmul.f32 %v1332, %v2597
  %v2646 = vmul.f32 %v1480, %v2597
  %v2647 = vmul.f32 %v1335, %v2597
  %v2648 = vmul.f32 %v1481, %v2597
  %v2649 = vmul.f32 %v1338, %v2597
  %v2650 = vmul.f32 %v1482, %v2597
  %v2651 = vmul.f32 %v1341, %v2597
  %v2652 = vmul.f32 %v1483, %v2597
  %v2653 = vmul.f32 %v1344, %v2597
  %v2654 = vmul.f32 %v1484, %v2597
  %v2655 = vmul.f32 %v1347, %v2597
  %v2656 = vmul.f32 %v1485, %v2597
  %v2657 = vmul.f32 %v1350, %v2597
  %v2658 = vmul.f32 %v1486, %v2597
  %v2659 = vmul.f32 %v1353, %v2597
  %v2660 = vmul.f32 %v1487, %v2597
  %v2661 = vmul.f32 %v1356, %v2597
  %v2662 = vadd.f32 %v2530, %v2598
  %v2663 = vadd.f32 %v2531, %v2599
  %v2664 = vadd.f32 %v2532, %v2600
  %v2665 = vadd.f32 %v2533, %v2601
  %v2666 = vadd.f32 %v2534, %v2602
  %v2667 = vadd.f32 %v2535, %v2603
  %v2668 = vadd.f32 %v2536, %v2604
  %v2669 = vadd.f32 %v2537, %v2605
  %v2670 = vadd.f32 %v2538, %v2606
  %v2671 = vadd.f32 %v2539, %v2607
  %v2672 = vadd.f32 %v2540, %v2608
  %v2673 = vadd.f32 %v2541, %v2609
  %v2674 = vadd.f32 %v2542, %v2610
  %v2675 = vadd.f32 %v2543, %v2611
  %v2676 = vadd.f32 %v2544, %v2612
  %v2677 = vadd.f32 %v2545, %v2613
  %v2678 = vadd.f32 %v2546, %v2614
  %v2679 = vadd.f32 %v2547, %v2615
  %v2680 = vadd.f32 %v2548, %v2616
  %v2681 = vadd.f32 %v2549, %v2617
  %v2682 = vadd.f32 %v2550, %v2618
  %v2683 = vadd.f32 %v2551, %v2619
  %v2684 = vadd.f32 %v2552, %v2620
  %v2685 = vadd.f32 %v2553, %v2621
  %v2686 = vadd.f32 %v2554, %v2622
  %v2687 = vadd.f32 %v2555, %v2623
  %v2688 = vadd.f32 %v2556, %v2624
  %v2689 = vadd.f32 %v2557, %v2625
  %v2690 = vadd.f32 %v2558, %v2626
  %v2691 = vadd.f32 %v2559, %v2627
  %v2692 = vadd.f32 %v2560, %v2628
  %v2693 = vadd.f32 %v2561, %v2629
  %v2694 = vadd.f32 %v2530, %v2630
  %v2695 = vadd.f32 %v2531, %v2631
  %v2696 = vadd.f32 %v2562, %v2632
  %v2697 = vadd.f32 %v2563, %v2633
  %v2698 = vadd.f32 %v2564, %v2634
  %v2699 = vadd.f32 %v2565, %v2635
  %v2700 = vadd.f32 %v2566, %v2636
  %v2701 = vadd.f32 %v2567, %v2637
  %v2702 = vadd.f32 %v2568, %v2638
  %v2703 = vadd.f32 %v2569, %v2639
  %v2704 = vadd.f32 %v2570, %v2640
  %v2705 = vadd.f32 %v2571, %v2641
  %v2706 = vadd.f32 %v2572, %v2642
  %v2707 = vadd.f32 %v2573, %v2643
  %v2708 = vadd.f32 %v2574, %v2644
  %v2709 = vadd.f32 %v2575, %v2645
  %v2710 = vadd.f32 %v2576, %v2646
  %v2711 = vadd.f32 %v2577, %v2647
  %v2712 = vadd.f32 %v2578, %v2648
  %v2713 = vadd.f32 %v2579, %v2649
  %v2714 = vadd.f32 %v2580, %v2650
  %v2715 = vadd.f32 %v2581, %v2651
  %v2716 = vadd.f32 %v2582, %v2652
  %v2717 = vadd.f32 %v2583, %v2653
  %v2718 = vadd.f32 %v2584, %v2654
  %v2719 = vadd.f32 %v2585, %v2655
  %v2720 = vadd.f32 %v2586, %v2656
  %v2721 = vadd.f32 %v2587, %v2657
  %v2722 = vadd.f32 %v2588, %v2658
  %v2723 = vadd.f32 %v2589, %v2659
  %v2724 = vadd.f32 %v2590, %v2660
  %v2725 = vadd.f32 %v2591, %v2661
  %v2726 = vld [vmem:[%s2592 + $0x1] sm:$0x1]
  %v2727 = vlaneseq
  %v2728 = vshrl.u32 %v2727, 7
  %v2729 = vsub.s32 0, %v2728
  %v2730 = vrot.slane %v2726, %v2729
  %v2731 = vmul.f32 %v1456, %v2730
  %v2732 = vmul.f32 %v1263, %v2730
  %v2733 = vmul.f32 %v1489, %v2730
  %v2734 = vmul.f32 %v1457, %v2730
  %v2735 = vmul.f32 %v1266, %v2730
  %v2736 = vmul.f32 %v1490, %v2730
  %v2737 = vmul.f32 %v1458, %v2730
  %v2738 = vmul.f32 %v1269, %v2730
  %v2739 = vmul.f32 %v1491, %v2730
  %v2740 = vmul.f32 %v1459, %v2730
  %v2741 = vmul.f32 %v1272, %v2730
  %v2742 = vmul.f32 %v1492, %v2730
  %v2743 = vmul.f32 %v1460, %v2730
  %v2744 = vmul.f32 %v1275, %v2730
  %v2745 = vmul.f32 %v1493, %v2730
  %v2746 = vmul.f32 %v1461, %v2730
  %v2747 = vmul.f32 %v1278, %v2730
  %v2748 = vmul.f32 %v1494, %v2730
  %v2749 = vmul.f32 %v1462, %v2730
  %v2750 = vmul.f32 %v1281, %v2730
  %v2751 = vmul.f32 %v1495, %v2730
  %v2752 = vmul.f32 %v1463, %v2730
  %v2753 = vmul.f32 %v1284, %v2730
  %v2754 = vmul.f32 %v1496, %v2730
  %v2755 = vmul.f32 %v1464, %v2730
  %v2756 = vmul.f32 %v1287, %v2730
  %v2757 = vmul.f32 %v1497, %v2730
  %v2758 = vmul.f32 %v1465, %v2730
  %v2759 = vmul.f32 %v1290, %v2730
  %v2760 = vmul.f32 %v1498, %v2730
  %v2761 = vmul.f32 %v1466, %v2730
  %v2762 = vmul.f32 %v1293, %v2730
  %v2763 = vmul.f32 %v1499, %v2730
  %v2764 = vmul.f32 %v1467, %v2730
  %v2765 = vmul.f32 %v1296, %v2730
  %v2766 = vmul.f32 %v1500, %v2730
  %v2767 = vmul.f32 %v1468, %v2730
  %v2768 = vmul.f32 %v1299, %v2730
  %v2769 = vmul.f32 %v1501, %v2730
  %v2770 = vmul.f32 %v1469, %v2730
  %v2771 = vmul.f32 %v1302, %v2730
  %v2772 = vmul.f32 %v1502, %v2730
  %v2773 = vmul.f32 %v1470, %v2730
  %v2774 = vmul.f32 %v1305, %v2730
  %v2775 = vmul.f32 %v1503, %v2730
  %v2776 = vmul.f32 %v1471, %v2730
  %v2777 = vmul.f32 %v1308, %v2730
  %v2778 = vmul.f32 %v1504, %v2730
  %v2779 = vmul.f32 %v1472, %v2730
  %v2780 = vmul.f32 %v1311, %v2730
  %v2781 = vmul.f32 %v1505, %v2730
  %v2782 = vmul.f32 %v1473, %v2730
  %v2783 = vmul.f32 %v1314, %v2730
  %v2784 = vmul.f32 %v1506, %v2730
  %v2785 = vmul.f32 %v1474, %v2730
  %v2786 = vmul.f32 %v1317, %v2730
  %v2787 = vmul.f32 %v1507, %v2730
  %v2788 = vmul.f32 %v1475, %v2730
  %v2789 = vmul.f32 %v1320, %v2730
  %v2790 = vmul.f32 %v1508, %v2730
  %v2791 = vmul.f32 %v1476, %v2730
  %v2792 = vmul.f32 %v1323, %v2730
  %v2793 = vmul.f32 %v1509, %v2730
  %v2794 = vmul.f32 %v1477, %v2730
  %v2795 = vmul.f32 %v1326, %v2730
  %v2796 = vmul.f32 %v1510, %v2730
  %v2797 = vmul.f32 %v1478, %v2730
  %v2798 = vmul.f32 %v1329, %v2730
  %v2799 = vmul.f32 %v1511, %v2730
  %v2800 = vmul.f32 %v1479, %v2730
  %v2801 = vmul.f32 %v1332, %v2730
  %v2802 = vmul.f32 %v1512, %v2730
  %v2803 = vmul.f32 %v1480, %v2730
  %v2804 = vmul.f32 %v1335, %v2730
  %v2805 = vmul.f32 %v1513, %v2730
  %v2806 = vmul.f32 %v1481, %v2730
  %v2807 = vmul.f32 %v1338, %v2730
  %v2808 = vmul.f32 %v1514, %v2730
  %v2809 = vmul.f32 %v1482, %v2730
  %v2810 = vmul.f32 %v1341, %v2730
  %v2811 = vmul.f32 %v1515, %v2730
  %v2812 = vmul.f32 %v1483, %v2730
  %v2813 = vmul.f32 %v1344, %v2730
  %v2814 = vmul.f32 %v1516, %v2730
  %v2815 = vmul.f32 %v1484, %v2730
  %v2816 = vmul.f32 %v1347, %v2730
  %v2817 = vmul.f32 %v1517, %v2730
  %v2818 = vmul.f32 %v1485, %v2730
  %v2819 = vmul.f32 %v1350, %v2730
  %v2820 = vmul.f32 %v1518, %v2730
  %v2821 = vmul.f32 %v1486, %v2730
  %v2822 = vmul.f32 %v1353, %v2730
  %v2823 = vmul.f32 %v1519, %v2730
  %v2824 = vmul.f32 %v1487, %v2730
  %v2825 = vmul.f32 %v1356, %v2730
  %v2826 = vmul.f32 %v1520, %v2730
  %v2923 = vrot.slane %v2731, 1
  %v2924 = vrot.slane %v2732, 1
  %v2925 = vsel %vm1841, %v2923, %v2924
  %v2926 = vrot.slane %v2733, 1
  %v2927 = vsel %vm1841, %v2924, %v2926
  %v2928 = vrot.slane %v2734, 1
  %v2929 = vrot.slane %v2735, 1
  %v2930 = vsel %vm1841, %v2928, %v2929
  %v2931 = vrot.slane %v2736, 1
  %v2932 = vsel %vm1841, %v2929, %v2931
  %v2933 = vrot.slane %v2737, 1
  %v2934 = vrot.slane %v2738, 1
  %v2935 = vsel %vm1841, %v2933, %v2934
  %v2936 = vrot.slane %v2739, 1
  %v2937 = vsel %vm1841, %v2934, %v2936
  %v2938 = vrot.slane %v2740, 1
  %v2939 = vrot.slane %v2741, 1
  %v2940 = vsel %vm1841, %v2938, %v2939
  %v2941 = vrot.slane %v2742, 1
  %v2942 = vsel %vm1841, %v2939, %v2941
  %v2943 = vrot.slane %v2743, 1
  %v2944 = vrot.slane %v2744, 1
  %v2945 = vsel %vm1841, %v2943, %v2944
  %v2946 = vrot.slane %v2745, 1
  %v2947 = vsel %vm1841, %v2944, %v2946
  %v2948 = vrot.slane %v2746, 1
  %v2949 = vrot.slane %v2747, 1
  %v2950 = vsel %vm1841, %v2948, %v2949
  %v2951 = vrot.slane %v2748, 1
  %v2952 = vsel %vm1841, %v2949, %v2951
  %v2953 = vrot.slane %v2749, 1
  %v2954 = vrot.slane %v2750, 1
  %v2955 = vsel %vm1841, %v2953, %v2954
  %v2956 = vrot.slane %v2751, 1
  %v2957 = vsel %vm1841, %v2954, %v2956
  %v2958 = vrot.slane %v2752, 1
  %v2959 = vrot.slane %v2753, 1
  %v2960 = vsel %vm1841, %v2958, %v2959
  %v2961 = vrot.slane %v2754, 1
  %v2962 = vsel %vm1841, %v2959, %v2961
  %v2963 = vrot.slane %v2755, 1
  %v2964 = vrot.slane %v2756, 1
  %v2965 = vsel %vm1841, %v2963, %v2964
  %v2966 = vrot.slane %v2757, 1
  %v2967 = vsel %vm1841, %v2964, %v2966
  %v2968 = vrot.slane %v2758, 1
  %v2969 = vrot.slane %v2759, 1
  %v2970 = vsel %vm1841, %v2968, %v2969
  %v2971 = vrot.slane %v2760, 1
  %v2972 = vsel %vm1841, %v2969, %v2971
  %v2973 = vrot.slane %v2761, 1
  %v2974 = vrot.slane %v2762, 1
  %v2975 = vsel %vm1841, %v2973, %v2974
  %v2976 = vrot.slane %v2763, 1
  %v2977 = vsel %vm1841, %v2974, %v2976
  %v2978 = vrot.slane %v2764, 1
  %v2979 = vrot.slane %v2765, 1
  %v2980 = vsel %vm1841, %v2978, %v2979
  %v2981 = vrot.slane %v2766, 1
  %v2982 = vsel %vm1841, %v2979, %v2981
  %v2983 = vrot.slane %v2767, 1
  %v2984 = vrot.slane %v2768, 1
  %v2985 = vsel %vm1841, %v2983, %v2984
  %v2986 = vrot.slane %v2769, 1
  %v2987 = vsel %vm1841, %v2984, %v2986
  %v2988 = vrot.slane %v2770, 1
  %v2989 = vrot.slane %v2771, 1
  %v2990 = vsel %vm1841, %v2988, %v2989
  %v2991 = vrot.slane %v2772, 1
  %v2992 = vsel %vm1841, %v2989, %v2991
  %v2993 = vrot.slane %v2773, 1
  %v2994 = vrot.slane %v2774, 1
  %v2995 = vsel %vm1841, %v2993, %v2994
  %v2996 = vrot.slane %v2775, 1
  %v2997 = vsel %vm1841, %v2994, %v2996
  %v2998 = vrot.slane %v2776, 1
  %v2999 = vrot.slane %v2777, 1
  %v3000 = vsel %vm1841, %v2998, %v2999
  %v3001 = vrot.slane %v2778, 1
  %v3002 = vsel %vm1841, %v2999, %v3001
  %v3003 = vrot.slane %v2779, 1
  %v3004 = vrot.slane %v2780, 1
  %v3005 = vsel %vm1841, %v3003, %v3004
  %v3006 = vrot.slane %v2781, 1
  %v3007 = vsel %vm1841, %v3004, %v3006
  %v3008 = vrot.slane %v2782, 1
  %v3009 = vrot.slane %v2783, 1
  %v3010 = vsel %vm1841, %v3008, %v3009
  %v3011 = vrot.slane %v2784, 1
  %v3012 = vsel %vm1841, %v3009, %v3011
  %v3013 = vrot.slane %v2785, 1
  %v3014 = vrot.slane %v2786, 1
  %v3015 = vsel %vm1841, %v3013, %v3014
  %v3016 = vrot.slane %v2787, 1
  %v3017 = vsel %vm1841, %v3014, %v3016
  %v3018 = vrot.slane %v2788, 1
  %v3019 = vrot.slane %v2789, 1
  %v3020 = vsel %vm1841, %v3018, %v3019
  %v3021 = vrot.slane %v2790, 1
  %v3022 = vsel %vm1841, %v3019, %v3021
  %v3023 = vrot.slane %v2791, 1
  %v3024 = vrot.slane %v2792, 1
  %v3025 = vsel %vm1841, %v3023, %v3024
  %v3026 = vrot.slane %v2793, 1
  %v3027 = vsel %vm1841, %v3024, %v3026
  %v3028 = vrot.slane %v2794, 1
  %v3029 = vrot.slane %v2795, 1
  %v3030 = vsel %vm1841, %v3028, %v3029
  %v3031 = vrot.slane %v2796, 1
  %v3032 = vsel %vm1841, %v3029, %v3031
  %v3033 = vrot.slane %v2797, 1
  %v3034 = vrot.slane %v2798, 1
  %v3035 = vsel %vm1841, %v3033, %v3034
  %v3036 = vrot.slane %v2799, 1
  %v3037 = vsel %vm1841, %v3034, %v3036
  %v3038 = vrot.slane %v2800, 1
  %v3039 = vrot.slane %v2801, 1
  %v3040 = vsel %vm1841, %v3038, %v3039
  %v3041 = vrot.slane %v2802, 1
  %v3042 = vsel %vm1841, %v3039, %v3041
  %v3043 = vrot.slane %v2803, 1
  %v3044 = vrot.slane %v2804, 1
  %v3045 = vsel %vm1841, %v3043, %v3044
  %v3046 = vrot.slane %v2805, 1
  %v3047 = vsel %vm1841, %v3044, %v3046
  %v3048 = vrot.slane %v2806, 1
  %v3049 = vrot.slane %v2807, 1
  %v3050 = vsel %vm1841, %v3048, %v3049
  %v3051 = vrot.slane %v2808, 1
  %v3052 = vsel %vm1841, %v3049, %v3051
  %v3053 = vrot.slane %v2809, 1
  %v3054 = vrot.slane %v2810, 1
  %v3055 = vsel %vm1841, %v3053, %v3054
  %v3056 = vrot.slane %v2811, 1
  %v3057 = vsel %vm1841, %v3054, %v3056
  %v3058 = vrot.slane %v2812, 1
  %v3059 = vrot.slane %v2813, 1
  %v3060 = vsel %vm1841, %v3058, %v3059
  %v3061 = vrot.slane %v2814, 1
  %v3062 = vsel %vm1841, %v3059, %v3061
  %v3063 = vrot.slane %v2815, 1
  %v3064 = vrot.slane %v2816, 1
  %v3065 = vsel %vm1841, %v3063, %v3064
  %v3066 = vrot.slane %v2817, 1
  %v3067 = vsel %vm1841, %v3064, %v3066
  %v3068 = vrot.slane %v2818, 1
  %v3069 = vrot.slane %v2819, 1
  %v3070 = vsel %vm1841, %v3068, %v3069
  %v3071 = vrot.slane %v2820, 1
  %v3072 = vsel %vm1841, %v3069, %v3071
  %v3073 = vrot.slane %v2821, 1
  %v3074 = vrot.slane %v2822, 1
  %v3075 = vsel %vm1841, %v3073, %v3074
  %v3076 = vrot.slane %v2823, 1
  %v3077 = vsel %vm1841, %v3074, %v3076
  %v3078 = vrot.slane %v2824, 1
  %v3079 = vrot.slane %v2825, 1
  %v3080 = vsel %vm1841, %v3078, %v3079
  %v3081 = vrot.slane %v2826, 1
  %v3082 = vsel %vm1841, %v3079, %v3081
  %v3147 = vadd.f32 %v2662, %v2925
  %v3148 = vadd.f32 %v2663, %v2927
  %v3149 = vadd.f32 %v2664, %v2930
  %v3150 = vadd.f32 %v2665, %v2932
  %v3151 = vadd.f32 %v2666, %v2935
  %v3152 = vadd.f32 %v2667, %v2937
  %v3153 = vadd.f32 %v2668, %v2940
  %v3154 = vadd.f32 %v2669, %v2942
  %v3155 = vadd.f32 %v2670, %v2945
  %v3156 = vadd.f32 %v2671, %v2947
  %v3157 = vadd.f32 %v2672, %v2950
  %v3158 = vadd.f32 %v2673, %v2952
  %v3159 = vadd.f32 %v2674, %v2955
  %v3160 = vadd.f32 %v2675, %v2957
  %v3161 = vadd.f32 %v2676, %v2960
  %v3162 = vadd.f32 %v2677, %v2962
  %v3163 = vadd.f32 %v2678, %v2965
  %v3164 = vadd.f32 %v2679, %v2967
  %v3165 = vadd.f32 %v2680, %v2970
  %v3166 = vadd.f32 %v2681, %v2972
  %v3167 = vadd.f32 %v2682, %v2975
  %v3168 = vadd.f32 %v2683, %v2977
  %v3169 = vadd.f32 %v2684, %v2980
  %v3170 = vadd.f32 %v2685, %v2982
  %v3171 = vadd.f32 %v2686, %v2985
  %v3172 = vadd.f32 %v2687, %v2987
  %v3173 = vadd.f32 %v2688, %v2990
  %v3174 = vadd.f32 %v2689, %v2992
  %v3175 = vadd.f32 %v2690, %v2995
  %v3176 = vadd.f32 %v2691, %v2997
  %v3177 = vadd.f32 %v2692, %v3000
  %v3178 = vadd.f32 %v2693, %v3002
  %v3179 = vadd.f32 %v2694, %v3005
  %v3180 = vadd.f32 %v2695, %v3007
  %v3181 = vadd.f32 %v2696, %v3010
  %v3182 = vadd.f32 %v2697, %v3012
  %v3183 = vadd.f32 %v2698, %v3015
  %v3184 = vadd.f32 %v2699, %v3017
  %v3185 = vadd.f32 %v2700, %v3020
  %v3186 = vadd.f32 %v2701, %v3022
  %v3187 = vadd.f32 %v2702, %v3025
  %v3188 = vadd.f32 %v2703, %v3027
  %v3189 = vadd.f32 %v2704, %v3030
  %v3190 = vadd.f32 %v2705, %v3032
  %v3191 = vadd.f32 %v2706, %v3035
  %v3192 = vadd.f32 %v2707, %v3037
  %v3193 = vadd.f32 %v2708, %v3040
  %v3194 = vadd.f32 %v2709, %v3042
  %v3195 = vadd.f32 %v2710, %v3045
  %v3196 = vadd.f32 %v2711, %v3047
  %v3197 = vadd.f32 %v2712, %v3050
  %v3198 = vadd.f32 %v2713, %v3052
  %v3199 = vadd.f32 %v2714, %v3055
  %v3200 = vadd.f32 %v2715, %v3057
  %v3201 = vadd.f32 %v2716, %v3060
  %v3202 = vadd.f32 %v2717, %v3062
  %v3203 = vadd.f32 %v2718, %v3065
  %v3204 = vadd.f32 %v2719, %v3067
  %v3205 = vadd.f32 %v2720, %v3070
  %v3206 = vadd.f32 %v2721, %v3072
  %v3207 = vadd.f32 %v2722, %v3075
  %v3208 = vadd.f32 %v2723, %v3077
  %v3209 = vadd.f32 %v2724, %v3080
  %v3210 = vadd.f32 %v2725, %v3082
  %v3211 = vld [vmem:[%s2592 + $0x2] sm:$0x1]
  %v3212 = vlaneseq
  %v3213 = vshrl.u32 %v3212, 7
  %v3214 = vsub.s32 0, %v3213
  %v3215 = vrot.slane %v3211, %v3214
  %v3216 = vmul.f32 %v1456, %v3215
  %v3217 = vmul.f32 %v1263, %v3215
  %v3218 = vmul.f32 %v1489, %v3215
  %v3219 = vmul.f32 %v1457, %v3215
  %v3220 = vmul.f32 %v1266, %v3215
  %v3221 = vmul.f32 %v1490, %v3215
  %v3222 = vmul.f32 %v1458, %v3215
  %v3223 = vmul.f32 %v1269, %v3215
  %v3224 = vmul.f32 %v1491, %v3215
  %v3225 = vmul.f32 %v1459, %v3215
  %v3226 = vmul.f32 %v1272, %v3215
  %v3227 = vmul.f32 %v1492, %v3215
  %v3228 = vmul.f32 %v1460, %v3215
  %v3229 = vmul.f32 %v1275, %v3215
  %v3230 = vmul.f32 %v1493, %v3215
  %v3231 = vmul.f32 %v1461, %v3215
  %v3232 = vmul.f32 %v1278, %v3215
  %v3233 = vmul.f32 %v1494, %v3215
  %v3234 = vmul.f32 %v1462, %v3215
  %v3235 = vmul.f32 %v1281, %v3215
  %v3236 = vmul.f32 %v1495, %v3215
  %v3237 = vmul.f32 %v1463, %v3215
  %v3238 = vmul.f32 %v1284, %v3215
  %v3239 = vmul.f32 %v1496, %v3215
  %v3240 = vmul.f32 %v1464, %v3215
  %v3241 = vmul.f32 %v1287, %v3215
  %v3242 = vmul.f32 %v1497, %v3215
  %v3243 = vmul.f32 %v1465, %v3215
  %v3244 = vmul.f32 %v1290, %v3215
  %v3245 = vmul.f32 %v1498, %v3215
  %v3246 = vmul.f32 %v1466, %v3215
  %v3247 = vmul.f32 %v1293, %v3215
  %v3248 = vmul.f32 %v1499, %v3215
  %v3249 = vmul.f32 %v1467, %v3215
  %v3250 = vmul.f32 %v1296, %v3215
  %v3251 = vmul.f32 %v1500, %v3215
  %v3252 = vmul.f32 %v1468, %v3215
  %v3253 = vmul.f32 %v1299, %v3215
  %v3254 = vmul.f32 %v1501, %v3215
  %v3255 = vmul.f32 %v1469, %v3215
  %v3256 = vmul.f32 %v1302, %v3215
  %v3257 = vmul.f32 %v1502, %v3215
  %v3258 = vmul.f32 %v1470, %v3215
  %v3259 = vmul.f32 %v1305, %v3215
  %v3260 = vmul.f32 %v1503, %v3215
  %v3261 = vmul.f32 %v1471, %v3215
  %v3262 = vmul.f32 %v1308, %v3215
  %v3263 = vmul.f32 %v1504, %v3215
  %v3264 = vmul.f32 %v1472, %v3215
  %v3265 = vmul.f32 %v1311, %v3215
  %v3266 = vmul.f32 %v1505, %v3215
  %v3267 = vmul.f32 %v1473, %v3215
  %v3268 = vmul.f32 %v1314, %v3215
  %v3269 = vmul.f32 %v1506, %v3215
  %v3270 = vmul.f32 %v1474, %v3215
  %v3271 = vmul.f32 %v1317, %v3215
  %v3272 = vmul.f32 %v1507, %v3215
  %v3273 = vmul.f32 %v1475, %v3215
  %v3274 = vmul.f32 %v1320, %v3215
  %v3275 = vmul.f32 %v1508, %v3215
  %v3276 = vmul.f32 %v1476, %v3215
  %v3277 = vmul.f32 %v1323, %v3215
  %v3278 = vmul.f32 %v1509, %v3215
  %v3279 = vmul.f32 %v1477, %v3215
  %v3280 = vmul.f32 %v1326, %v3215
  %v3281 = vmul.f32 %v1510, %v3215
  %v3282 = vmul.f32 %v1478, %v3215
  %v3283 = vmul.f32 %v1329, %v3215
  %v3284 = vmul.f32 %v1511, %v3215
  %v3285 = vmul.f32 %v1479, %v3215
  %v3286 = vmul.f32 %v1332, %v3215
  %v3287 = vmul.f32 %v1512, %v3215
  %v3288 = vmul.f32 %v1480, %v3215
  %v3289 = vmul.f32 %v1335, %v3215
  %v3290 = vmul.f32 %v1513, %v3215
  %v3291 = vmul.f32 %v1481, %v3215
  %v3292 = vmul.f32 %v1338, %v3215
  %v3293 = vmul.f32 %v1514, %v3215
  %v3294 = vmul.f32 %v1482, %v3215
  %v3295 = vmul.f32 %v1341, %v3215
  %v3296 = vmul.f32 %v1515, %v3215
  %v3297 = vmul.f32 %v1483, %v3215
  %v3298 = vmul.f32 %v1344, %v3215
  %v3299 = vmul.f32 %v1516, %v3215
  %v3300 = vmul.f32 %v1484, %v3215
  %v3301 = vmul.f32 %v1347, %v3215
  %v3302 = vmul.f32 %v1517, %v3215
  %v3303 = vmul.f32 %v1485, %v3215
  %v3304 = vmul.f32 %v1350, %v3215
  %v3305 = vmul.f32 %v1518, %v3215
  %v3306 = vmul.f32 %v1486, %v3215
  %v3307 = vmul.f32 %v1353, %v3215
  %v3308 = vmul.f32 %v1519, %v3215
  %v3309 = vmul.f32 %v1487, %v3215
  %v3310 = vmul.f32 %v1356, %v3215
  %v3311 = vmul.f32 %v1520, %v3215
  %v3408 = vrot.slane %v3216, 2
  %v3409 = vrot.slane %v3217, 2
  %v3410 = vsel %vm2312, %v3408, %v3409
  %v3411 = vrot.slane %v3218, 2
  %v3412 = vsel %vm2312, %v3409, %v3411
  %v3413 = vrot.slane %v3219, 2
  %v3414 = vrot.slane %v3220, 2
  %v3415 = vsel %vm2312, %v3413, %v3414
  %v3416 = vrot.slane %v3221, 2
  %v3417 = vsel %vm2312, %v3414, %v3416
  %v3418 = vrot.slane %v3222, 2
  %v3419 = vrot.slane %v3223, 2
  %v3420 = vsel %vm2312, %v3418, %v3419
  %v3421 = vrot.slane %v3224, 2
  %v3422 = vsel %vm2312, %v3419, %v3421
  %v3423 = vrot.slane %v3225, 2
  %v3424 = vrot.slane %v3226, 2
  %v3425 = vsel %vm2312, %v3423, %v3424
  %v3426 = vrot.slane %v3227, 2
  %v3427 = vsel %vm2312, %v3424, %v3426
  %v3428 = vrot.slane %v3228, 2
  %v3429 = vrot.slane %v3229, 2
  %v3430 = vsel %vm2312, %v3428, %v3429
  %v3431 = vrot.slane %v3230, 2
  %v3432 = vsel %vm2312, %v3429, %v3431
  %v3433 = vrot.slane %v3231, 2
  %v3434 = vrot.slane %v3232, 2
  %v3435 = vsel %vm2312, %v3433, %v3434
  %v3436 = vrot.slane %v3233, 2
  %v3437 = vsel %vm2312, %v3434, %v3436
  %v3438 = vrot.slane %v3234, 2
  %v3439 = vrot.slane %v3235, 2
  %v3440 = vsel %vm2312, %v3438, %v3439
  %v3441 = vrot.slane %v3236, 2
  %v3442 = vsel %vm2312, %v3439, %v3441
  %v3443 = vrot.slane %v3237, 2
  %v3444 = vrot.slane %v3238, 2
  %v3445 = vsel %vm2312, %v3443, %v3444
  %v3446 = vrot.slane %v3239, 2
  %v3447 = vsel %vm2312, %v3444, %v3446
  %v3448 = vrot.slane %v3240, 2
  %v3449 = vrot.slane %v3241, 2
  %v3450 = vsel %vm2312, %v3448, %v3449
  %v3451 = vrot.slane %v3242, 2
  %v3452 = vsel %vm2312, %v3449, %v3451
  %v3453 = vrot.slane %v3243, 2
  %v3454 = vrot.slane %v3244, 2
  %v3455 = vsel %vm2312, %v3453, %v3454
  %v3456 = vrot.slane %v3245, 2
  %v3457 = vsel %vm2312, %v3454, %v3456
  %v3458 = vrot.slane %v3246, 2
  %v3459 = vrot.slane %v3247, 2
  %v3460 = vsel %vm2312, %v3458, %v3459
  %v3461 = vrot.slane %v3248, 2
  %v3462 = vsel %vm2312, %v3459, %v3461
  %v3463 = vrot.slane %v3249, 2
  %v3464 = vrot.slane %v3250, 2
  %v3465 = vsel %vm2312, %v3463, %v3464
  %v3466 = vrot.slane %v3251, 2
  %v3467 = vsel %vm2312, %v3464, %v3466
  %v3468 = vrot.slane %v3252, 2
  %v3469 = vrot.slane %v3253, 2
  %v3470 = vsel %vm2312, %v3468, %v3469
  %v3471 = vrot.slane %v3254, 2
  %v3472 = vsel %vm2312, %v3469, %v3471
  %v3473 = vrot.slane %v3255, 2
  %v3474 = vrot.slane %v3256, 2
  %v3475 = vsel %vm2312, %v3473, %v3474
  %v3476 = vrot.slane %v3257, 2
  %v3477 = vsel %vm2312, %v3474, %v3476
  %v3478 = vrot.slane %v3258, 2
  %v3479 = vrot.slane %v3259, 2
  %v3480 = vsel %vm2312, %v3478, %v3479
  %v3481 = vrot.slane %v3260, 2
  %v3482 = vsel %vm2312, %v3479, %v3481
  %v3483 = vrot.slane %v3261, 2
  %v3484 = vrot.slane %v3262, 2
  %v3485 = vsel %vm2312, %v3483, %v3484
  %v3486 = vrot.slane %v3263, 2
  %v3487 = vsel %vm2312, %v3484, %v3486
  %v3488 = vrot.slane %v3264, 2
  %v3489 = vrot.slane %v3265, 2
  %v3490 = vsel %vm2312, %v3488, %v3489
  %v3491 = vrot.slane %v3266, 2
  %v3492 = vsel %vm2312, %v3489, %v3491
  %v3493 = vrot.slane %v3267, 2
  %v3494 = vrot.slane %v3268, 2
  %v3495 = vsel %vm2312, %v3493, %v3494
  %v3496 = vrot.slane %v3269, 2
  %v3497 = vsel %vm2312, %v3494, %v3496
  %v3498 = vrot.slane %v3270, 2
  %v3499 = vrot.slane %v3271, 2
  %v3500 = vsel %vm2312, %v3498, %v3499
  %v3501 = vrot.slane %v3272, 2
  %v3502 = vsel %vm2312, %v3499, %v3501
  %v3503 = vrot.slane %v3273, 2
  %v3504 = vrot.slane %v3274, 2
  %v3505 = vsel %vm2312, %v3503, %v3504
  %v3506 = vrot.slane %v3275, 2
  %v3507 = vsel %vm2312, %v3504, %v3506
  %v3508 = vrot.slane %v3276, 2
  %v3509 = vrot.slane %v3277, 2
  %v3510 = vsel %vm2312, %v3508, %v3509
  %v3511 = vrot.slane %v3278, 2
  %v3512 = vsel %vm2312, %v3509, %v3511
  %v3513 = vrot.slane %v3279, 2
  %v3514 = vrot.slane %v3280, 2
  %v3515 = vsel %vm2312, %v3513, %v3514
  %v3516 = vrot.slane %v3281, 2
  %v3517 = vsel %vm2312, %v3514, %v3516
  %v3518 = vrot.slane %v3282, 2
  %v3519 = vrot.slane %v3283, 2
  %v3520 = vsel %vm2312, %v3518, %v3519
  %v3521 = vrot.slane %v3284, 2
  %v3522 = vsel %vm2312, %v3519, %v3521
  %v3523 = vrot.slane %v3285, 2
  %v3524 = vrot.slane %v3286, 2
  %v3525 = vsel %vm2312, %v3523, %v3524
  %v3526 = vrot.slane %v3287, 2
  %v3527 = vsel %vm2312, %v3524, %v3526
  %v3528 = vrot.slane %v3288, 2
  %v3529 = vrot.slane %v3289, 2
  %v3530 = vsel %vm2312, %v3528, %v3529
  %v3531 = vrot.slane %v3290, 2
  %v3532 = vsel %vm2312, %v3529, %v3531
  %v3533 = vrot.slane %v3291, 2
  %v3534 = vrot.slane %v3292, 2
  %v3535 = vsel %vm2312, %v3533, %v3534
  %v3536 = vrot.slane %v3293, 2
  %v3537 = vsel %vm2312, %v3534, %v3536
  %v3538 = vrot.slane %v3294, 2
  %v3539 = vrot.slane %v3295, 2
  %v3540 = vsel %vm2312, %v3538, %v3539
  %v3541 = vrot.slane %v3296, 2
  %v3542 = vsel %vm2312, %v3539, %v3541
  %v3543 = vrot.slane %v3297, 2
  %v3544 = vrot.slane %v3298, 2
  %v3545 = vsel %vm2312, %v3543, %v3544
  %v3546 = vrot.slane %v3299, 2
  %v3547 = vsel %vm2312, %v3544, %v3546
  %v3548 = vrot.slane %v3300, 2
  %v3549 = vrot.slane %v3301, 2
  %v3550 = vsel %vm2312, %v3548, %v3549
  %v3551 = vrot.slane %v3302, 2
  %v3552 = vsel %vm2312, %v3549, %v3551
  %v3553 = vrot.slane %v3303, 2
  %v3554 = vrot.slane %v3304, 2
  %v3555 = vsel %vm2312, %v3553, %v3554
  %v3556 = vrot.slane %v3305, 2
  %v3557 = vsel %vm2312, %v3554, %v3556
  %v3558 = vrot.slane %v3306, 2
  %v3559 = vrot.slane %v3307, 2
  %v3560 = vsel %vm2312, %v3558, %v3559
  %v3561 = vrot.slane %v3308, 2
  %v3562 = vsel %vm2312, %v3559, %v3561
  %v3563 = vrot.slane %v3309, 2
  %v3564 = vrot.slane %v3310, 2
  %v3565 = vsel %vm2312, %v3563, %v3564
  %v3566 = vrot.slane %v3311, 2
  %v3567 = vsel %vm2312, %v3564, %v3566
  %v3632 = vadd.f32 %v3147, %v3410
  %v3633 = vadd.f32 %v3148, %v3412
  %v3634 = vadd.f32 %v3149, %v3415
  %v3635 = vadd.f32 %v3150, %v3417
  %v3636 = vadd.f32 %v3151, %v3420
  %v3637 = vadd.f32 %v3152, %v3422
  %v3638 = vadd.f32 %v3153, %v3425
  %v3639 = vadd.f32 %v3154, %v3427
  %v3640 = vadd.f32 %v3155, %v3430
  %v3641 = vadd.f32 %v3156, %v3432
  %v3642 = vadd.f32 %v3157, %v3435
  %v3643 = vadd.f32 %v3158, %v3437
  %v3644 = vadd.f32 %v3159, %v3440
  %v3645 = vadd.f32 %v3160, %v3442
  %v3646 = vadd.f32 %v3161, %v3445
  %v3647 = vadd.f32 %v3162, %v3447
  %v3648 = vadd.f32 %v3163, %v3450
  %v3649 = vadd.f32 %v3164, %v3452
  %v3650 = vadd.f32 %v3165, %v3455
  %v3651 = vadd.f32 %v3166, %v3457
  %v3652 = vadd.f32 %v3167, %v3460
  %v3653 = vadd.f32 %v3168, %v3462
  %v3654 = vadd.f32 %v3169, %v3465
  %v3655 = vadd.f32 %v3170, %v3467
  %v3656 = vadd.f32 %v3171, %v3470
  %v3657 = vadd.f32 %v3172, %v3472
  %v3658 = vadd.f32 %v3173, %v3475
  %v3659 = vadd.f32 %v3174, %v3477
  %v3660 = vadd.f32 %v3175, %v3480
  %v3661 = vadd.f32 %v3176, %v3482
  %v3662 = vadd.f32 %v3177, %v3485
  %v3663 = vadd.f32 %v3178, %v3487
  %v3664 = vadd.f32 %v3179, %v3490
  %v3665 = vadd.f32 %v3180, %v3492
  %v3666 = vadd.f32 %v3181, %v3495
  %v3667 = vadd.f32 %v3182, %v3497
  %v3668 = vadd.f32 %v3183, %v3500
  %v3669 = vadd.f32 %v3184, %v3502
  %v3670 = vadd.f32 %v3185, %v3505
  %v3671 = vadd.f32 %v3186, %v3507
  %v3672 = vadd.f32 %v3187, %v3510
  %v3673 = vadd.f32 %v3188, %v3512
  %v3674 = vadd.f32 %v3189, %v3515
  %v3675 = vadd.f32 %v3190, %v3517
  %v3676 = vadd.f32 %v3191, %v3520
  %v3677 = vadd.f32 %v3192, %v3522
  %v3678 = vadd.f32 %v3193, %v3525
  %v3679 = vadd.f32 %v3194, %v3527
  %v3680 = vadd.f32 %v3195, %v3530
  %v3681 = vadd.f32 %v3196, %v3532
  %v3682 = vadd.f32 %v3197, %v3535
  %v3683 = vadd.f32 %v3198, %v3537
  %v3684 = vadd.f32 %v3199, %v3540
  %v3685 = vadd.f32 %v3200, %v3542
  %v3686 = vadd.f32 %v3201, %v3545
  %v3687 = vadd.f32 %v3202, %v3547
  %v3688 = vadd.f32 %v3203, %v3550
  %v3689 = vadd.f32 %v3204, %v3552
  %v3690 = vadd.f32 %v3205, %v3555
  %v3691 = vadd.f32 %v3206, %v3557
  %v3692 = vadd.f32 %v3207, %v3560
  %v3693 = vadd.f32 %v3208, %v3562
  %v3694 = vadd.f32 %v3209, %v3565
  %v3695 = vadd.f32 %v3210, %v3567
  %s3696 = scalar_lea.vmem %s2, 8
  %v3697 = vld [vmem:[%s3696] sm:$0x1]
  %v3698 = vlaneseq
  %v3699 = vshrl.u32 %v3698, 7
  %v3700 = vsub.s32 0, %v3699
  %v3701 = vrot.slane %v3697, %v3700
  %v3702 = vmul.f32 %v1457, %v3701
  %v3703 = vmul.f32 %v1266, %v3701
  %v3704 = vmul.f32 %v1458, %v3701
  %v3705 = vmul.f32 %v1269, %v3701
  %v3706 = vmul.f32 %v1459, %v3701
  %v3707 = vmul.f32 %v1272, %v3701
  %v3708 = vmul.f32 %v1460, %v3701
  %v3709 = vmul.f32 %v1275, %v3701
  %v3710 = vmul.f32 %v1461, %v3701
  %v3711 = vmul.f32 %v1278, %v3701
  %v3712 = vmul.f32 %v1462, %v3701
  %v3713 = vmul.f32 %v1281, %v3701
  %v3714 = vmul.f32 %v1463, %v3701
  %v3715 = vmul.f32 %v1284, %v3701
  %v3716 = vmul.f32 %v1464, %v3701
  %v3717 = vmul.f32 %v1287, %v3701
  %v3718 = vmul.f32 %v1465, %v3701
  %v3719 = vmul.f32 %v1290, %v3701
  %v3720 = vmul.f32 %v1466, %v3701
  %v3721 = vmul.f32 %v1293, %v3701
  %v3722 = vmul.f32 %v1467, %v3701
  %v3723 = vmul.f32 %v1296, %v3701
  %v3724 = vmul.f32 %v1468, %v3701
  %v3725 = vmul.f32 %v1299, %v3701
  %v3726 = vmul.f32 %v1469, %v3701
  %v3727 = vmul.f32 %v1302, %v3701
  %v3728 = vmul.f32 %v1470, %v3701
  %v3729 = vmul.f32 %v1305, %v3701
  %v3730 = vmul.f32 %v1471, %v3701
  %v3731 = vmul.f32 %v1308, %v3701
  %v3732 = vmul.f32 %v1455, %v3701
  %v3733 = vmul.f32 %v1260, %v3701
  %v3734 = vmul.f32 %v1473, %v3701
  %v3735 = vmul.f32 %v1314, %v3701
  %v3736 = vmul.f32 %v1474, %v3701
  %v3737 = vmul.f32 %v1317, %v3701
  %v3738 = vmul.f32 %v1475, %v3701
  %v3739 = vmul.f32 %v1320, %v3701
  %v3740 = vmul.f32 %v1476, %v3701
  %v3741 = vmul.f32 %v1323, %v3701
  %v3742 = vmul.f32 %v1477, %v3701
  %v3743 = vmul.f32 %v1326, %v3701
  %v3744 = vmul.f32 %v1478, %v3701
  %v3745 = vmul.f32 %v1329, %v3701
  %v3746 = vmul.f32 %v1479, %v3701
  %v3747 = vmul.f32 %v1332, %v3701
  %v3748 = vmul.f32 %v1480, %v3701
  %v3749 = vmul.f32 %v1335, %v3701
  %v3750 = vmul.f32 %v1481, %v3701
  %v3751 = vmul.f32 %v1338, %v3701
  %v3752 = vmul.f32 %v1482, %v3701
  %v3753 = vmul.f32 %v1341, %v3701
  %v3754 = vmul.f32 %v1483, %v3701
  %v3755 = vmul.f32 %v1344, %v3701
  %v3756 = vmul.f32 %v1484, %v3701
  %v3757 = vmul.f32 %v1347, %v3701
  %v3758 = vmul.f32 %v1485, %v3701
  %v3759 = vmul.f32 %v1350, %v3701
  %v3760 = vmul.f32 %v1486, %v3701
  %v3761 = vmul.f32 %v1353, %v3701
  %v3762 = vmul.f32 %v1487, %v3701
  %v3763 = vmul.f32 %v1356, %v3701
  %v3764 = vadd.f32 %v3632, %v3702
  %v3765 = vadd.f32 %v3633, %v3703
  %v3766 = vadd.f32 %v3634, %v3704
  %v3767 = vadd.f32 %v3635, %v3705
  %v3768 = vadd.f32 %v3636, %v3706
  %v3769 = vadd.f32 %v3637, %v3707
  %v3770 = vadd.f32 %v3638, %v3708
  %v3771 = vadd.f32 %v3639, %v3709
  %v3772 = vadd.f32 %v3640, %v3710
  %v3773 = vadd.f32 %v3641, %v3711
  %v3774 = vadd.f32 %v3642, %v3712
  %v3775 = vadd.f32 %v3643, %v3713
  %v3776 = vadd.f32 %v3644, %v3714
  %v3777 = vadd.f32 %v3645, %v3715
  %v3778 = vadd.f32 %v3646, %v3716
  %v3779 = vadd.f32 %v3647, %v3717
  %v3780 = vadd.f32 %v3648, %v3718
  %v3781 = vadd.f32 %v3649, %v3719
  %v3782 = vadd.f32 %v3650, %v3720
  %v3783 = vadd.f32 %v3651, %v3721
  %v3784 = vadd.f32 %v3652, %v3722
  %v3785 = vadd.f32 %v3653, %v3723
  %v3786 = vadd.f32 %v3654, %v3724
  %v3787 = vadd.f32 %v3655, %v3725
  %v3788 = vadd.f32 %v3656, %v3726
  %v3789 = vadd.f32 %v3657, %v3727
  %v3790 = vadd.f32 %v3658, %v3728
  %v3791 = vadd.f32 %v3659, %v3729
  %v3792 = vadd.f32 %v3660, %v3730
  %v3793 = vadd.f32 %v3661, %v3731
  %v3794 = vadd.f32 %v3662, %v3732
  %v3795 = vadd.f32 %v3663, %v3733
  %v3796 = vadd.f32 %v3664, %v3734
  %v3797 = vadd.f32 %v3665, %v3735
  %v3798 = vadd.f32 %v3666, %v3736
  %v3799 = vadd.f32 %v3667, %v3737
  %v3800 = vadd.f32 %v3668, %v3738
  %v3801 = vadd.f32 %v3669, %v3739
  %v3802 = vadd.f32 %v3670, %v3740
  %v3803 = vadd.f32 %v3671, %v3741
  %v3804 = vadd.f32 %v3672, %v3742
  %v3805 = vadd.f32 %v3673, %v3743
  %v3806 = vadd.f32 %v3674, %v3744
  %v3807 = vadd.f32 %v3675, %v3745
  %v3808 = vadd.f32 %v3676, %v3746
  %v3809 = vadd.f32 %v3677, %v3747
  %v3810 = vadd.f32 %v3678, %v3748
  %v3811 = vadd.f32 %v3679, %v3749
  %v3812 = vadd.f32 %v3680, %v3750
  %v3813 = vadd.f32 %v3681, %v3751
  %v3814 = vadd.f32 %v3682, %v3752
  %v3815 = vadd.f32 %v3683, %v3753
  %v3816 = vadd.f32 %v3684, %v3754
  %v3817 = vadd.f32 %v3685, %v3755
  %v3818 = vadd.f32 %v3686, %v3756
  %v3819 = vadd.f32 %v3687, %v3757
  %v3820 = vadd.f32 %v3688, %v3758
  %v3821 = vadd.f32 %v3689, %v3759
  %v3822 = vadd.f32 %v3690, %v3760
  %v3823 = vadd.f32 %v3691, %v3761
  %v3824 = vadd.f32 %v3692, %v3762
  %v3825 = vadd.f32 %v3693, %v3763
  %v3826 = vadd.f32 %v3694, %v3732
  %v3827 = vadd.f32 %v3695, %v3733
  %v3828 = vld [vmem:[%s3696 + $0x1] sm:$0x1]
  %v3829 = vlaneseq
  %v3830 = vshrl.u32 %v3829, 7
  %v3831 = vsub.s32 0, %v3830
  %v3832 = vrot.slane %v3828, %v3831
  %v3833 = vmul.f32 %v1457, %v3832
  %v3834 = vmul.f32 %v1266, %v3832
  %v3835 = vmul.f32 %v1490, %v3832
  %v3836 = vmul.f32 %v1458, %v3832
  %v3837 = vmul.f32 %v1269, %v3832
  %v3838 = vmul.f32 %v1491, %v3832
  %v3839 = vmul.f32 %v1459, %v3832
  %v3840 = vmul.f32 %v1272, %v3832
  %v3841 = vmul.f32 %v1492, %v3832
  %v3842 = vmul.f32 %v1460, %v3832
  %v3843 = vmul.f32 %v1275, %v3832
  %v3844 = vmul.f32 %v1493, %v3832
  %v3845 = vmul.f32 %v1461, %v3832
  %v3846 = vmul.f32 %v1278, %v3832
  %v3847 = vmul.f32 %v1494, %v3832
  %v3848 = vmul.f32 %v1462, %v3832
  %v3849 = vmul.f32 %v1281, %v3832
  %v3850 = vmul.f32 %v1495, %v3832
  %v3851 = vmul.f32 %v1463, %v3832
  %v3852 = vmul.f32 %v1284, %v3832
  %v3853 = vmul.f32 %v1496, %v3832
  %v3854 = vmul.f32 %v1464, %v3832
  %v3855 = vmul.f32 %v1287, %v3832
  %v3856 = vmul.f32 %v1497, %v3832
  %v3857 = vmul.f32 %v1465, %v3832
  %v3858 = vmul.f32 %v1290, %v3832
  %v3859 = vmul.f32 %v1498, %v3832
  %v3860 = vmul.f32 %v1466, %v3832
  %v3861 = vmul.f32 %v1293, %v3832
  %v3862 = vmul.f32 %v1499, %v3832
  %v3863 = vmul.f32 %v1467, %v3832
  %v3864 = vmul.f32 %v1296, %v3832
  %v3865 = vmul.f32 %v1500, %v3832
  %v3866 = vmul.f32 %v1468, %v3832
  %v3867 = vmul.f32 %v1299, %v3832
  %v3868 = vmul.f32 %v1501, %v3832
  %v3869 = vmul.f32 %v1469, %v3832
  %v3870 = vmul.f32 %v1302, %v3832
  %v3871 = vmul.f32 %v1502, %v3832
  %v3872 = vmul.f32 %v1470, %v3832
  %v3873 = vmul.f32 %v1305, %v3832
  %v3874 = vmul.f32 %v1503, %v3832
  %v3875 = vmul.f32 %v1471, %v3832
  %v3876 = vmul.f32 %v1308, %v3832
  %v3877 = vmul.f32 %v1504, %v3832
  %v3878 = vmul.f32 %v1455, %v3832
  %v3879 = vmul.f32 %v1260, %v3832
  %v3880 = vmul.f32 %v1488, %v3832
  %v3881 = vmul.f32 %v1473, %v3832
  %v3882 = vmul.f32 %v1314, %v3832
  %v3883 = vmul.f32 %v1506, %v3832
  %v3884 = vmul.f32 %v1474, %v3832
  %v3885 = vmul.f32 %v1317, %v3832
  %v3886 = vmul.f32 %v1507, %v3832
  %v3887 = vmul.f32 %v1475, %v3832
  %v3888 = vmul.f32 %v1320, %v3832
  %v3889 = vmul.f32 %v1508, %v3832
  %v3890 = vmul.f32 %v1476, %v3832
  %v3891 = vmul.f32 %v1323, %v3832
  %v3892 = vmul.f32 %v1509, %v3832
  %v3893 = vmul.f32 %v1477, %v3832
  %v3894 = vmul.f32 %v1326, %v3832
  %v3895 = vmul.f32 %v1510, %v3832
  %v3896 = vmul.f32 %v1478, %v3832
  %v3897 = vmul.f32 %v1329, %v3832
  %v3898 = vmul.f32 %v1511, %v3832
  %v3899 = vmul.f32 %v1479, %v3832
  %v3900 = vmul.f32 %v1332, %v3832
  %v3901 = vmul.f32 %v1512, %v3832
  %v3902 = vmul.f32 %v1480, %v3832
  %v3903 = vmul.f32 %v1335, %v3832
  %v3904 = vmul.f32 %v1513, %v3832
  %v3905 = vmul.f32 %v1481, %v3832
  %v3906 = vmul.f32 %v1338, %v3832
  %v3907 = vmul.f32 %v1514, %v3832
  %v3908 = vmul.f32 %v1482, %v3832
  %v3909 = vmul.f32 %v1341, %v3832
  %v3910 = vmul.f32 %v1515, %v3832
  %v3911 = vmul.f32 %v1483, %v3832
  %v3912 = vmul.f32 %v1344, %v3832
  %v3913 = vmul.f32 %v1516, %v3832
  %v3914 = vmul.f32 %v1484, %v3832
  %v3915 = vmul.f32 %v1347, %v3832
  %v3916 = vmul.f32 %v1517, %v3832
  %v3917 = vmul.f32 %v1485, %v3832
  %v3918 = vmul.f32 %v1350, %v3832
  %v3919 = vmul.f32 %v1518, %v3832
  %v3920 = vmul.f32 %v1486, %v3832
  %v3921 = vmul.f32 %v1353, %v3832
  %v3922 = vmul.f32 %v1519, %v3832
  %v3923 = vmul.f32 %v1487, %v3832
  %v3924 = vmul.f32 %v1356, %v3832
  %v3925 = vmul.f32 %v1520, %v3832
  %v4019 = vrot.slane %v3833, 1
  %v4020 = vrot.slane %v3834, 1
  %v4021 = vsel %vm1841, %v4019, %v4020
  %v4022 = vrot.slane %v3835, 1
  %v4023 = vsel %vm1841, %v4020, %v4022
  %v4024 = vrot.slane %v3836, 1
  %v4025 = vrot.slane %v3837, 1
  %v4026 = vsel %vm1841, %v4024, %v4025
  %v4027 = vrot.slane %v3838, 1
  %v4028 = vsel %vm1841, %v4025, %v4027
  %v4029 = vrot.slane %v3839, 1
  %v4030 = vrot.slane %v3840, 1
  %v4031 = vsel %vm1841, %v4029, %v4030
  %v4032 = vrot.slane %v3841, 1
  %v4033 = vsel %vm1841, %v4030, %v4032
  %v4034 = vrot.slane %v3842, 1
  %v4035 = vrot.slane %v3843, 1
  %v4036 = vsel %vm1841, %v4034, %v4035
  %v4037 = vrot.slane %v3844, 1
  %v4038 = vsel %vm1841, %v4035, %v4037
  %v4039 = vrot.slane %v3845, 1
  %v4040 = vrot.slane %v3846, 1
  %v4041 = vsel %vm1841, %v4039, %v4040
  %v4042 = vrot.slane %v3847, 1
  %v4043 = vsel %vm1841, %v4040, %v4042
  %v4044 = vrot.slane %v3848, 1
  %v4045 = vrot.slane %v3849, 1
  %v4046 = vsel %vm1841, %v4044, %v4045
  %v4047 = vrot.slane %v3850, 1
  %v4048 = vsel %vm1841, %v4045, %v4047
  %v4049 = vrot.slane %v3851, 1
  %v4050 = vrot.slane %v3852, 1
  %v4051 = vsel %vm1841, %v4049, %v4050
  %v4052 = vrot.slane %v3853, 1
  %v4053 = vsel %vm1841, %v4050, %v4052
  %v4054 = vrot.slane %v3854, 1
  %v4055 = vrot.slane %v3855, 1
  %v4056 = vsel %vm1841, %v4054, %v4055
  %v4057 = vrot.slane %v3856, 1
  %v4058 = vsel %vm1841, %v4055, %v4057
  %v4059 = vrot.slane %v3857, 1
  %v4060 = vrot.slane %v3858, 1
  %v4061 = vsel %vm1841, %v4059, %v4060
  %v4062 = vrot.slane %v3859, 1
  %v4063 = vsel %vm1841, %v4060, %v4062
  %v4064 = vrot.slane %v3860, 1
  %v4065 = vrot.slane %v3861, 1
  %v4066 = vsel %vm1841, %v4064, %v4065
  %v4067 = vrot.slane %v3862, 1
  %v4068 = vsel %vm1841, %v4065, %v4067
  %v4069 = vrot.slane %v3863, 1
  %v4070 = vrot.slane %v3864, 1
  %v4071 = vsel %vm1841, %v4069, %v4070
  %v4072 = vrot.slane %v3865, 1
  %v4073 = vsel %vm1841, %v4070, %v4072
  %v4074 = vrot.slane %v3866, 1
  %v4075 = vrot.slane %v3867, 1
  %v4076 = vsel %vm1841, %v4074, %v4075
  %v4077 = vrot.slane %v3868, 1
  %v4078 = vsel %vm1841, %v4075, %v4077
  %v4079 = vrot.slane %v3869, 1
  %v4080 = vrot.slane %v3870, 1
  %v4081 = vsel %vm1841, %v4079, %v4080
  %v4082 = vrot.slane %v3871, 1
  %v4083 = vsel %vm1841, %v4080, %v4082
  %v4084 = vrot.slane %v3872, 1
  %v4085 = vrot.slane %v3873, 1
  %v4086 = vsel %vm1841, %v4084, %v4085
  %v4087 = vrot.slane %v3874, 1
  %v4088 = vsel %vm1841, %v4085, %v4087
  %v4089 = vrot.slane %v3875, 1
  %v4090 = vrot.slane %v3876, 1
  %v4091 = vsel %vm1841, %v4089, %v4090
  %v4092 = vrot.slane %v3877, 1
  %v4093 = vsel %vm1841, %v4090, %v4092
  %v4094 = vrot.slane %v3878, 1
  %v4095 = vrot.slane %v3879, 1
  %v4096 = vsel %vm1841, %v4094, %v4095
  %v4097 = vrot.slane %v3880, 1
  %v4098 = vsel %vm1841, %v4095, %v4097
  %v4099 = vrot.slane %v3881, 1
  %v4100 = vrot.slane %v3882, 1
  %v4101 = vsel %vm1841, %v4099, %v4100
  %v4102 = vrot.slane %v3883, 1
  %v4103 = vsel %vm1841, %v4100, %v4102
  %v4104 = vrot.slane %v3884, 1
  %v4105 = vrot.slane %v3885, 1
  %v4106 = vsel %vm1841, %v4104, %v4105
  %v4107 = vrot.slane %v3886, 1
  %v4108 = vsel %vm1841, %v4105, %v4107
  %v4109 = vrot.slane %v3887, 1
  %v4110 = vrot.slane %v3888, 1
  %v4111 = vsel %vm1841, %v4109, %v4110
  %v4112 = vrot.slane %v3889, 1
  %v4113 = vsel %vm1841, %v4110, %v4112
  %v4114 = vrot.slane %v3890, 1
  %v4115 = vrot.slane %v3891, 1
  %v4116 = vsel %vm1841, %v4114, %v4115
  %v4117 = vrot.slane %v3892, 1
  %v4118 = vsel %vm1841, %v4115, %v4117
  %v4119 = vrot.slane %v3893, 1
  %v4120 = vrot.slane %v3894, 1
  %v4121 = vsel %vm1841, %v4119, %v4120
  %v4122 = vrot.slane %v3895, 1
  %v4123 = vsel %vm1841, %v4120, %v4122
  %v4124 = vrot.slane %v3896, 1
  %v4125 = vrot.slane %v3897, 1
  %v4126 = vsel %vm1841, %v4124, %v4125
  %v4127 = vrot.slane %v3898, 1
  %v4128 = vsel %vm1841, %v4125, %v4127
  %v4129 = vrot.slane %v3899, 1
  %v4130 = vrot.slane %v3900, 1
  %v4131 = vsel %vm1841, %v4129, %v4130
  %v4132 = vrot.slane %v3901, 1
  %v4133 = vsel %vm1841, %v4130, %v4132
  %v4134 = vrot.slane %v3902, 1
  %v4135 = vrot.slane %v3903, 1
  %v4136 = vsel %vm1841, %v4134, %v4135
  %v4137 = vrot.slane %v3904, 1
  %v4138 = vsel %vm1841, %v4135, %v4137
  %v4139 = vrot.slane %v3905, 1
  %v4140 = vrot.slane %v3906, 1
  %v4141 = vsel %vm1841, %v4139, %v4140
  %v4142 = vrot.slane %v3907, 1
  %v4143 = vsel %vm1841, %v4140, %v4142
  %v4144 = vrot.slane %v3908, 1
  %v4145 = vrot.slane %v3909, 1
  %v4146 = vsel %vm1841, %v4144, %v4145
  %v4147 = vrot.slane %v3910, 1
  %v4148 = vsel %vm1841, %v4145, %v4147
  %v4149 = vrot.slane %v3911, 1
  %v4150 = vrot.slane %v3912, 1
  %v4151 = vsel %vm1841, %v4149, %v4150
  %v4152 = vrot.slane %v3913, 1
  %v4153 = vsel %vm1841, %v4150, %v4152
  %v4154 = vrot.slane %v3914, 1
  %v4155 = vrot.slane %v3915, 1
  %v4156 = vsel %vm1841, %v4154, %v4155
  %v4157 = vrot.slane %v3916, 1
  %v4158 = vsel %vm1841, %v4155, %v4157
  %v4159 = vrot.slane %v3917, 1
  %v4160 = vrot.slane %v3918, 1
  %v4161 = vsel %vm1841, %v4159, %v4160
  %v4162 = vrot.slane %v3919, 1
  %v4163 = vsel %vm1841, %v4160, %v4162
  %v4164 = vrot.slane %v3920, 1
  %v4165 = vrot.slane %v3921, 1
  %v4166 = vsel %vm1841, %v4164, %v4165
  %v4167 = vrot.slane %v3922, 1
  %v4168 = vsel %vm1841, %v4165, %v4167
  %v4169 = vrot.slane %v3923, 1
  %v4170 = vrot.slane %v3924, 1
  %v4171 = vsel %vm1841, %v4169, %v4170
  %v4172 = vrot.slane %v3925, 1
  %v4173 = vsel %vm1841, %v4170, %v4172
  %v4236 = vadd.f32 %v3764, %v4021
  %v4237 = vadd.f32 %v3765, %v4023
  %v4238 = vadd.f32 %v3766, %v4026
  %v4239 = vadd.f32 %v3767, %v4028
  %v4240 = vadd.f32 %v3768, %v4031
  %v4241 = vadd.f32 %v3769, %v4033
  %v4242 = vadd.f32 %v3770, %v4036
  %v4243 = vadd.f32 %v3771, %v4038
  %v4244 = vadd.f32 %v3772, %v4041
  %v4245 = vadd.f32 %v3773, %v4043
  %v4246 = vadd.f32 %v3774, %v4046
  %v4247 = vadd.f32 %v3775, %v4048
  %v4248 = vadd.f32 %v3776, %v4051
  %v4249 = vadd.f32 %v3777, %v4053
  %v4250 = vadd.f32 %v3778, %v4056
  %v4251 = vadd.f32 %v3779, %v4058
  %v4252 = vadd.f32 %v3780, %v4061
  %v4253 = vadd.f32 %v3781, %v4063
  %v4254 = vadd.f32 %v3782, %v4066
  %v4255 = vadd.f32 %v3783, %v4068
  %v4256 = vadd.f32 %v3784, %v4071
  %v4257 = vadd.f32 %v3785, %v4073
  %v4258 = vadd.f32 %v3786, %v4076
  %v4259 = vadd.f32 %v3787, %v4078
  %v4260 = vadd.f32 %v3788, %v4081
  %v4261 = vadd.f32 %v3789, %v4083
  %v4262 = vadd.f32 %v3790, %v4086
  %v4263 = vadd.f32 %v3791, %v4088
  %v4264 = vadd.f32 %v3792, %v4091
  %v4265 = vadd.f32 %v3793, %v4093
  %v4266 = vadd.f32 %v3794, %v4096
  %v4267 = vadd.f32 %v3795, %v4098
  %v4268 = vadd.f32 %v3796, %v4101
  %v4269 = vadd.f32 %v3797, %v4103
  %v4270 = vadd.f32 %v3798, %v4106
  %v4271 = vadd.f32 %v3799, %v4108
  %v4272 = vadd.f32 %v3800, %v4111
  %v4273 = vadd.f32 %v3801, %v4113
  %v4274 = vadd.f32 %v3802, %v4116
  %v4275 = vadd.f32 %v3803, %v4118
  %v4276 = vadd.f32 %v3804, %v4121
  %v4277 = vadd.f32 %v3805, %v4123
  %v4278 = vadd.f32 %v3806, %v4126
  %v4279 = vadd.f32 %v3807, %v4128
  %v4280 = vadd.f32 %v3808, %v4131
  %v4281 = vadd.f32 %v3809, %v4133
  %v4282 = vadd.f32 %v3810, %v4136
  %v4283 = vadd.f32 %v3811, %v4138
  %v4284 = vadd.f32 %v3812, %v4141
  %v4285 = vadd.f32 %v3813, %v4143
  %v4286 = vadd.f32 %v3814, %v4146
  %v4287 = vadd.f32 %v3815, %v4148
  %v4288 = vadd.f32 %v3816, %v4151
  %v4289 = vadd.f32 %v3817, %v4153
  %v4290 = vadd.f32 %v3818, %v4156
  %v4291 = vadd.f32 %v3819, %v4158
  %v4292 = vadd.f32 %v3820, %v4161
  %v4293 = vadd.f32 %v3821, %v4163
  %v4294 = vadd.f32 %v3822, %v4166
  %v4295 = vadd.f32 %v3823, %v4168
  %v4296 = vadd.f32 %v3824, %v4171
  %v4297 = vadd.f32 %v3825, %v4173
  %v4298 = vadd.f32 %v3826, %v4096
  %v4299 = vadd.f32 %v3827, %v4098
  %v4300 = vld [vmem:[%s3696 + $0x2] sm:$0x1]
  %v4301 = vlaneseq
  %v4302 = vshrl.u32 %v4301, 7
  %v4303 = vsub.s32 0, %v4302
  %v4304 = vrot.slane %v4300, %v4303
  %v4305 = vmul.f32 %v1457, %v4304
  %v4306 = vmul.f32 %v1266, %v4304
  %v4307 = vmul.f32 %v1490, %v4304
  %v4308 = vmul.f32 %v1458, %v4304
  %v4309 = vmul.f32 %v1269, %v4304
  %v4310 = vmul.f32 %v1491, %v4304
  %v4311 = vmul.f32 %v1459, %v4304
  %v4312 = vmul.f32 %v1272, %v4304
  %v4313 = vmul.f32 %v1492, %v4304
  %v4314 = vmul.f32 %v1460, %v4304
  %v4315 = vmul.f32 %v1275, %v4304
  %v4316 = vmul.f32 %v1493, %v4304
  %v4317 = vmul.f32 %v1461, %v4304
  %v4318 = vmul.f32 %v1278, %v4304
  %v4319 = vmul.f32 %v1494, %v4304
  %v4320 = vmul.f32 %v1462, %v4304
  %v4321 = vmul.f32 %v1281, %v4304
  %v4322 = vmul.f32 %v1495, %v4304
  %v4323 = vmul.f32 %v1463, %v4304
  %v4324 = vmul.f32 %v1284, %v4304
  %v4325 = vmul.f32 %v1496, %v4304
  %v4326 = vmul.f32 %v1464, %v4304
  %v4327 = vmul.f32 %v1287, %v4304
  %v4328 = vmul.f32 %v1497, %v4304
  %v4329 = vmul.f32 %v1465, %v4304
  %v4330 = vmul.f32 %v1290, %v4304
  %v4331 = vmul.f32 %v1498, %v4304
  %v4332 = vmul.f32 %v1466, %v4304
  %v4333 = vmul.f32 %v1293, %v4304
  %v4334 = vmul.f32 %v1499, %v4304
  %v4335 = vmul.f32 %v1467, %v4304
  %v4336 = vmul.f32 %v1296, %v4304
  %v4337 = vmul.f32 %v1500, %v4304
  %v4338 = vmul.f32 %v1468, %v4304
  %v4339 = vmul.f32 %v1299, %v4304
  %v4340 = vmul.f32 %v1501, %v4304
  %v4341 = vmul.f32 %v1469, %v4304
  %v4342 = vmul.f32 %v1302, %v4304
  %v4343 = vmul.f32 %v1502, %v4304
  %v4344 = vmul.f32 %v1470, %v4304
  %v4345 = vmul.f32 %v1305, %v4304
  %v4346 = vmul.f32 %v1503, %v4304
  %v4347 = vmul.f32 %v1471, %v4304
  %v4348 = vmul.f32 %v1308, %v4304
  %v4349 = vmul.f32 %v1504, %v4304
  %v4350 = vmul.f32 %v1455, %v4304
  %v4351 = vmul.f32 %v1260, %v4304
  %v4352 = vmul.f32 %v1488, %v4304
  %v4353 = vmul.f32 %v1473, %v4304
  %v4354 = vmul.f32 %v1314, %v4304
  %v4355 = vmul.f32 %v1506, %v4304
  %v4356 = vmul.f32 %v1474, %v4304
  %v4357 = vmul.f32 %v1317, %v4304
  %v4358 = vmul.f32 %v1507, %v4304
  %v4359 = vmul.f32 %v1475, %v4304
  %v4360 = vmul.f32 %v1320, %v4304
  %v4361 = vmul.f32 %v1508, %v4304
  %v4362 = vmul.f32 %v1476, %v4304
  %v4363 = vmul.f32 %v1323, %v4304
  %v4364 = vmul.f32 %v1509, %v4304
  %v4365 = vmul.f32 %v1477, %v4304
  %v4366 = vmul.f32 %v1326, %v4304
  %v4367 = vmul.f32 %v1510, %v4304
  %v4368 = vmul.f32 %v1478, %v4304
  %v4369 = vmul.f32 %v1329, %v4304
  %v4370 = vmul.f32 %v1511, %v4304
  %v4371 = vmul.f32 %v1479, %v4304
  %v4372 = vmul.f32 %v1332, %v4304
  %v4373 = vmul.f32 %v1512, %v4304
  %v4374 = vmul.f32 %v1480, %v4304
  %v4375 = vmul.f32 %v1335, %v4304
  %v4376 = vmul.f32 %v1513, %v4304
  %v4377 = vmul.f32 %v1481, %v4304
  %v4378 = vmul.f32 %v1338, %v4304
  %v4379 = vmul.f32 %v1514, %v4304
  %v4380 = vmul.f32 %v1482, %v4304
  %v4381 = vmul.f32 %v1341, %v4304
  %v4382 = vmul.f32 %v1515, %v4304
  %v4383 = vmul.f32 %v1483, %v4304
  %v4384 = vmul.f32 %v1344, %v4304
  %v4385 = vmul.f32 %v1516, %v4304
  %v4386 = vmul.f32 %v1484, %v4304
  %v4387 = vmul.f32 %v1347, %v4304
  %v4388 = vmul.f32 %v1517, %v4304
  %v4389 = vmul.f32 %v1485, %v4304
  %v4390 = vmul.f32 %v1350, %v4304
  %v4391 = vmul.f32 %v1518, %v4304
  %v4392 = vmul.f32 %v1486, %v4304
  %v4393 = vmul.f32 %v1353, %v4304
  %v4394 = vmul.f32 %v1519, %v4304
  %v4395 = vmul.f32 %v1487, %v4304
  %v4396 = vmul.f32 %v1356, %v4304
  %v4397 = vmul.f32 %v1520, %v4304
  %v4491 = vrot.slane %v4305, 2
  %v4492 = vrot.slane %v4306, 2
  %v4493 = vsel %vm2312, %v4491, %v4492
  %v4494 = vrot.slane %v4307, 2
  %v4495 = vsel %vm2312, %v4492, %v4494
  %v4496 = vrot.slane %v4308, 2
  %v4497 = vrot.slane %v4309, 2
  %v4498 = vsel %vm2312, %v4496, %v4497
  %v4499 = vrot.slane %v4310, 2
  %v4500 = vsel %vm2312, %v4497, %v4499
  %v4501 = vrot.slane %v4311, 2
  %v4502 = vrot.slane %v4312, 2
  %v4503 = vsel %vm2312, %v4501, %v4502
  %v4504 = vrot.slane %v4313, 2
  %v4505 = vsel %vm2312, %v4502, %v4504
  %v4506 = vrot.slane %v4314, 2
  %v4507 = vrot.slane %v4315, 2
  %v4508 = vsel %vm2312, %v4506, %v4507
  %v4509 = vrot.slane %v4316, 2
  %v4510 = vsel %vm2312, %v4507, %v4509
  %v4511 = vrot.slane %v4317, 2
  %v4512 = vrot.slane %v4318, 2
  %v4513 = vsel %vm2312, %v4511, %v4512
  %v4514 = vrot.slane %v4319, 2
  %v4515 = vsel %vm2312, %v4512, %v4514
  %v4516 = vrot.slane %v4320, 2
  %v4517 = vrot.slane %v4321, 2
  %v4518 = vsel %vm2312, %v4516, %v4517
  %v4519 = vrot.slane %v4322, 2
  %v4520 = vsel %vm2312, %v4517, %v4519
  %v4521 = vrot.slane %v4323, 2
  %v4522 = vrot.slane %v4324, 2
  %v4523 = vsel %vm2312, %v4521, %v4522
  %v4524 = vrot.slane %v4325, 2
  %v4525 = vsel %vm2312, %v4522, %v4524
  %v4526 = vrot.slane %v4326, 2
  %v4527 = vrot.slane %v4327, 2
  %v4528 = vsel %vm2312, %v4526, %v4527
  %v4529 = vrot.slane %v4328, 2
  %v4530 = vsel %vm2312, %v4527, %v4529
  %v4531 = vrot.slane %v4329, 2
  %v4532 = vrot.slane %v4330, 2
  %v4533 = vsel %vm2312, %v4531, %v4532
  %v4534 = vrot.slane %v4331, 2
  %v4535 = vsel %vm2312, %v4532, %v4534
  %v4536 = vrot.slane %v4332, 2
  %v4537 = vrot.slane %v4333, 2
  %v4538 = vsel %vm2312, %v4536, %v4537
  %v4539 = vrot.slane %v4334, 2
  %v4540 = vsel %vm2312, %v4537, %v4539
  %v4541 = vrot.slane %v4335, 2
  %v4542 = vrot.slane %v4336, 2
  %v4543 = vsel %vm2312, %v4541, %v4542
  %v4544 = vrot.slane %v4337, 2
  %v4545 = vsel %vm2312, %v4542, %v4544
  %v4546 = vrot.slane %v4338, 2
  %v4547 = vrot.slane %v4339, 2
  %v4548 = vsel %vm2312, %v4546, %v4547
  %v4549 = vrot.slane %v4340, 2
  %v4550 = vsel %vm2312, %v4547, %v4549
  %v4551 = vrot.slane %v4341, 2
  %v4552 = vrot.slane %v4342, 2
  %v4553 = vsel %vm2312, %v4551, %v4552
  %v4554 = vrot.slane %v4343, 2
  %v4555 = vsel %vm2312, %v4552, %v4554
  %v4556 = vrot.slane %v4344, 2
  %v4557 = vrot.slane %v4345, 2
  %v4558 = vsel %vm2312, %v4556, %v4557
  %v4559 = vrot.slane %v4346, 2
  %v4560 = vsel %vm2312, %v4557, %v4559
  %v4561 = vrot.slane %v4347, 2
  %v4562 = vrot.slane %v4348, 2
  %v4563 = vsel %vm2312, %v4561, %v4562
  %v4564 = vrot.slane %v4349, 2
  %v4565 = vsel %vm2312, %v4562, %v4564
  %v4566 = vrot.slane %v4350, 2
  %v4567 = vrot.slane %v4351, 2
  %v4568 = vsel %vm2312, %v4566, %v4567
  %v4569 = vrot.slane %v4352, 2
  %v4570 = vsel %vm2312, %v4567, %v4569
  %v4571 = vrot.slane %v4353, 2
  %v4572 = vrot.slane %v4354, 2
  %v4573 = vsel %vm2312, %v4571, %v4572
  %v4574 = vrot.slane %v4355, 2
  %v4575 = vsel %vm2312, %v4572, %v4574
  %v4576 = vrot.slane %v4356, 2
  %v4577 = vrot.slane %v4357, 2
  %v4578 = vsel %vm2312, %v4576, %v4577
  %v4579 = vrot.slane %v4358, 2
  %v4580 = vsel %vm2312, %v4577, %v4579
  %v4581 = vrot.slane %v4359, 2
  %v4582 = vrot.slane %v4360, 2
  %v4583 = vsel %vm2312, %v4581, %v4582
  %v4584 = vrot.slane %v4361, 2
  %v4585 = vsel %vm2312, %v4582, %v4584
  %v4586 = vrot.slane %v4362, 2
  %v4587 = vrot.slane %v4363, 2
  %v4588 = vsel %vm2312, %v4586, %v4587
  %v4589 = vrot.slane %v4364, 2
  %v4590 = vsel %vm2312, %v4587, %v4589
  %v4591 = vrot.slane %v4365, 2
  %v4592 = vrot.slane %v4366, 2
  %v4593 = vsel %vm2312, %v4591, %v4592
  %v4594 = vrot.slane %v4367, 2
  %v4595 = vsel %vm2312, %v4592, %v4594
  %v4596 = vrot.slane %v4368, 2
  %v4597 = vrot.slane %v4369, 2
  %v4598 = vsel %vm2312, %v4596, %v4597
  %v4599 = vrot.slane %v4370, 2
  %v4600 = vsel %vm2312, %v4597, %v4599
  %v4601 = vrot.slane %v4371, 2
  %v4602 = vrot.slane %v4372, 2
  %v4603 = vsel %vm2312, %v4601, %v4602
  %v4604 = vrot.slane %v4373, 2
  %v4605 = vsel %vm2312, %v4602, %v4604
  %v4606 = vrot.slane %v4374, 2
  %v4607 = vrot.slane %v4375, 2
  %v4608 = vsel %vm2312, %v4606, %v4607
  %v4609 = vrot.slane %v4376, 2
  %v4610 = vsel %vm2312, %v4607, %v4609
  %v4611 = vrot.slane %v4377, 2
  %v4612 = vrot.slane %v4378, 2
  %v4613 = vsel %vm2312, %v4611, %v4612
  %v4614 = vrot.slane %v4379, 2
  %v4615 = vsel %vm2312, %v4612, %v4614
  %v4616 = vrot.slane %v4380, 2
  %v4617 = vrot.slane %v4381, 2
  %v4618 = vsel %vm2312, %v4616, %v4617
  %v4619 = vrot.slane %v4382, 2
  %v4620 = vsel %vm2312, %v4617, %v4619
  %v4621 = vrot.slane %v4383, 2
  %v4622 = vrot.slane %v4384, 2
  %v4623 = vsel %vm2312, %v4621, %v4622
  %v4624 = vrot.slane %v4385, 2
  %v4625 = vsel %vm2312, %v4622, %v4624
  %v4626 = vrot.slane %v4386, 2
  %v4627 = vrot.slane %v4387, 2
  %v4628 = vsel %vm2312, %v4626, %v4627
  %v4629 = vrot.slane %v4388, 2
  %v4630 = vsel %vm2312, %v4627, %v4629
  %v4631 = vrot.slane %v4389, 2
  %v4632 = vrot.slane %v4390, 2
  %v4633 = vsel %vm2312, %v4631, %v4632
  %v4634 = vrot.slane %v4391, 2
  %v4635 = vsel %vm2312, %v4632, %v4634
  %v4636 = vrot.slane %v4392, 2
  %v4637 = vrot.slane %v4393, 2
  %v4638 = vsel %vm2312, %v4636, %v4637
  %v4639 = vrot.slane %v4394, 2
  %v4640 = vsel %vm2312, %v4637, %v4639
  %v4641 = vrot.slane %v4395, 2
  %v4642 = vrot.slane %v4396, 2
  %v4643 = vsel %vm2312, %v4641, %v4642
  %v4644 = vrot.slane %v4397, 2
  %v4645 = vsel %vm2312, %v4642, %v4644
  %v4708 = vadd.f32 %v4236, %v4493
  %v4709 = vadd.f32 %v4237, %v4495
  %v4710 = vadd.f32 %v4238, %v4498
  %v4711 = vadd.f32 %v4239, %v4500
  %v4712 = vadd.f32 %v4240, %v4503
  %v4713 = vadd.f32 %v4241, %v4505
  %v4714 = vadd.f32 %v4242, %v4508
  %v4715 = vadd.f32 %v4243, %v4510
  %v4716 = vadd.f32 %v4244, %v4513
  %v4717 = vadd.f32 %v4245, %v4515
  %v4718 = vadd.f32 %v4246, %v4518
  %v4719 = vadd.f32 %v4247, %v4520
  %v4720 = vadd.f32 %v4248, %v4523
  %v4721 = vadd.f32 %v4249, %v4525
  %v4722 = vadd.f32 %v4250, %v4528
  %v4723 = vadd.f32 %v4251, %v4530
  %v4724 = vadd.f32 %v4252, %v4533
  %v4725 = vadd.f32 %v4253, %v4535
  %v4726 = vadd.f32 %v4254, %v4538
  %v4727 = vadd.f32 %v4255, %v4540
  %v4728 = vadd.f32 %v4256, %v4543
  %v4729 = vadd.f32 %v4257, %v4545
  %v4730 = vadd.f32 %v4258, %v4548
  %v4731 = vadd.f32 %v4259, %v4550
  %v4732 = vadd.f32 %v4260, %v4553
  %v4733 = vadd.f32 %v4261, %v4555
  %v4734 = vadd.f32 %v4262, %v4558
  %v4735 = vadd.f32 %v4263, %v4560
  %v4736 = vadd.f32 %v4264, %v4563
  %v4737 = vadd.f32 %v4265, %v4565
  %v4738 = vadd.f32 %v4266, %v4568
  %v4739 = vadd.f32 %v4267, %v4570
  %v4740 = vadd.f32 %v4268, %v4573
  %v4741 = vadd.f32 %v4269, %v4575
  %v4742 = vadd.f32 %v4270, %v4578
  %v4743 = vadd.f32 %v4271, %v4580
  %v4744 = vadd.f32 %v4272, %v4583
  %v4745 = vadd.f32 %v4273, %v4585
  %v4746 = vadd.f32 %v4274, %v4588
  %v4747 = vadd.f32 %v4275, %v4590
  %v4748 = vadd.f32 %v4276, %v4593
  %v4749 = vadd.f32 %v4277, %v4595
  %v4750 = vadd.f32 %v4278, %v4598
  %v4751 = vadd.f32 %v4279, %v4600
  %v4752 = vadd.f32 %v4280, %v4603
  %v4753 = vadd.f32 %v4281, %v4605
  %v4754 = vadd.f32 %v4282, %v4608
  %v4755 = vadd.f32 %v4283, %v4610
  %v4756 = vadd.f32 %v4284, %v4613
  %v4757 = vadd.f32 %v4285, %v4615
  %v4758 = vadd.f32 %v4286, %v4618
  %v4759 = vadd.f32 %v4287, %v4620
  %v4760 = vadd.f32 %v4288, %v4623
  %v4761 = vadd.f32 %v4289, %v4625
  %v4762 = vadd.f32 %v4290, %v4628
  %v4763 = vadd.f32 %v4291, %v4630
  %v4764 = vadd.f32 %v4292, %v4633
  %v4765 = vadd.f32 %v4293, %v4635
  %v4766 = vadd.f32 %v4294, %v4638
  %v4767 = vadd.f32 %v4295, %v4640
  %v4768 = vadd.f32 %v4296, %v4643
  %v4769 = vadd.f32 %v4297, %v4645
  %v4770 = vadd.f32 %v4298, %v4568
  %v4771 = vadd.f32 %v4299, %v4570
  %v4772 = vld [vmem:[%s6] sm:$0x1]
  %v4773 = vld [vmem:[%s7] sm:$0x1]
  %v4774 = vsel %vm525, %v4708, 0.0
  %v4775 = vsel %vm525, %v4709, 0.0
  %v4776 = vadd.f32 %v4774, %v4775
  %v4777 = vsel %vm525, %v4710, 0.0
  %v4778 = vadd.f32 %v4776, %v4777
  %v4779 = vsel %vm525, %v4711, 0.0
  %v4780 = vadd.f32 %v4778, %v4779
  %v4781 = vsel %vm525, %v4712, 0.0
  %v4782 = vadd.f32 %v4780, %v4781
  %v4783 = vsel %vm525, %v4713, 0.0
  %v4784 = vadd.f32 %v4782, %v4783
  %v4785 = vsel %vm525, %v4714, 0.0
  %v4786 = vadd.f32 %v4784, %v4785
  %v4787 = vsel %vm525, %v4715, 0.0
  %v4788 = vadd.f32 %v4786, %v4787
  %v4789 = vsel %vm525, %v4716, 0.0
  %v4790 = vadd.f32 %v4788, %v4789
  %v4791 = vsel %vm525, %v4717, 0.0
  %v4792 = vadd.f32 %v4790, %v4791
  %v4793 = vsel %vm525, %v4718, 0.0
  %v4794 = vadd.f32 %v4792, %v4793
  %v4795 = vsel %vm525, %v4719, 0.0
  %v4796 = vadd.f32 %v4794, %v4795
  %v4797 = vsel %vm525, %v4720, 0.0
  %v4798 = vadd.f32 %v4796, %v4797
  %v4799 = vsel %vm525, %v4721, 0.0
  %v4800 = vadd.f32 %v4798, %v4799
  %v4801 = vsel %vm525, %v4722, 0.0
  %v4802 = vadd.f32 %v4800, %v4801
  %v4803 = vsel %vm525, %v4723, 0.0
  %v4804 = vadd.f32 %v4802, %v4803
  %v4805 = vsel %vm525, %v4724, 0.0
  %v4806 = vadd.f32 %v4804, %v4805
  %v4807 = vsel %vm525, %v4725, 0.0
  %v4808 = vadd.f32 %v4806, %v4807
  %v4809 = vsel %vm525, %v4726, 0.0
  %v4810 = vadd.f32 %v4808, %v4809
  %v4811 = vsel %vm525, %v4727, 0.0
  %v4812 = vadd.f32 %v4810, %v4811
  %v4813 = vsel %vm525, %v4728, 0.0
  %v4814 = vadd.f32 %v4812, %v4813
  %v4815 = vsel %vm525, %v4729, 0.0
  %v4816 = vadd.f32 %v4814, %v4815
  %v4817 = vsel %vm525, %v4730, 0.0
  %v4818 = vadd.f32 %v4816, %v4817
  %v4819 = vsel %vm525, %v4731, 0.0
  %v4820 = vadd.f32 %v4818, %v4819
  %v4821 = vsel %vm525, %v4732, 0.0
  %v4822 = vadd.f32 %v4820, %v4821
  %v4823 = vsel %vm525, %v4733, 0.0
  %v4824 = vadd.f32 %v4822, %v4823
  %v4825 = vsel %vm525, %v4734, 0.0
  %v4826 = vadd.f32 %v4824, %v4825
  %v4827 = vsel %vm525, %v4735, 0.0
  %v4828 = vadd.f32 %v4826, %v4827
  %v4829 = vsel %vm525, %v4736, 0.0
  %v4830 = vadd.f32 %v4828, %v4829
  %v4831 = vsel %vm525, %v4737, 0.0
  %v4832 = vadd.f32 %v4830, %v4831
  %v4833 = vsel %vm525, %v4738, 0.0
  %v4834 = vadd.f32 %v4832, %v4833
  %v4835 = vsel %vm525, %v4739, 0.0
  %v4836 = vadd.f32 %v4834, %v4835
  %v4837 = vsel %vm525, %v4740, 0.0
  %v4838 = vadd.f32 %v4836, %v4837
  %v4839 = vsel %vm525, %v4741, 0.0
  %v4840 = vadd.f32 %v4838, %v4839
  %v4841 = vsel %vm525, %v4742, 0.0
  %v4842 = vadd.f32 %v4840, %v4841
  %v4843 = vsel %vm525, %v4743, 0.0
  %v4844 = vadd.f32 %v4842, %v4843
  %v4845 = vsel %vm525, %v4744, 0.0
  %v4846 = vadd.f32 %v4844, %v4845
  %v4847 = vsel %vm525, %v4745, 0.0
  %v4848 = vadd.f32 %v4846, %v4847
  %v4849 = vsel %vm525, %v4746, 0.0
  %v4850 = vadd.f32 %v4848, %v4849
  %v4851 = vsel %vm525, %v4747, 0.0
  %v4852 = vadd.f32 %v4850, %v4851
  %v4853 = vsel %vm525, %v4748, 0.0
  %v4854 = vadd.f32 %v4852, %v4853
  %v4855 = vsel %vm525, %v4749, 0.0
  %v4856 = vadd.f32 %v4854, %v4855
  %v4857 = vsel %vm525, %v4750, 0.0
  %v4858 = vadd.f32 %v4856, %v4857
  %v4859 = vsel %vm525, %v4751, 0.0
  %v4860 = vadd.f32 %v4858, %v4859
  %v4861 = vsel %vm525, %v4752, 0.0
  %v4862 = vadd.f32 %v4860, %v4861
  %v4863 = vsel %vm525, %v4753, 0.0
  %v4864 = vadd.f32 %v4862, %v4863
  %v4865 = vsel %vm525, %v4754, 0.0
  %v4866 = vadd.f32 %v4864, %v4865
  %v4867 = vsel %vm525, %v4755, 0.0
  %v4868 = vadd.f32 %v4866, %v4867
  %v4869 = vsel %vm525, %v4756, 0.0
  %v4870 = vadd.f32 %v4868, %v4869
  %v4871 = vsel %vm525, %v4757, 0.0
  %v4872 = vadd.f32 %v4870, %v4871
  %v4873 = vsel %vm525, %v4758, 0.0
  %v4874 = vadd.f32 %v4872, %v4873
  %v4875 = vsel %vm525, %v4759, 0.0
  %v4876 = vadd.f32 %v4874, %v4875
  %v4877 = vsel %vm525, %v4760, 0.0
  %v4878 = vadd.f32 %v4876, %v4877
  %v4879 = vsel %vm525, %v4761, 0.0
  %v4880 = vadd.f32 %v4878, %v4879
  %v4881 = vsel %vm525, %v4762, 0.0
  %v4882 = vadd.f32 %v4880, %v4881
  %v4883 = vsel %vm525, %v4763, 0.0
  %v4884 = vadd.f32 %v4882, %v4883
  %v4885 = vsel %vm525, %v4764, 0.0
  %v4886 = vadd.f32 %v4884, %v4885
  %v4887 = vsel %vm525, %v4765, 0.0
  %v4888 = vadd.f32 %v4886, %v4887
  %v4889 = vsel %vm525, %v4766, 0.0
  %v4890 = vadd.f32 %v4888, %v4889
  %v4891 = vsel %vm525, %v4767, 0.0
  %v4892 = vadd.f32 %v4890, %v4891
  %v4893 = vsel %vm525, %v4768, 0.0
  %v4894 = vadd.f32 %v4892, %v4893
  %v4895 = vsel %vm525, %v4769, 0.0
  %v4896 = vadd.f32 %v4894, %v4895
  %v4897 = vsel %vm525, %v4770, 0.0
  %v4898 = vadd.f32 %v4896, %v4897
  %v4899 = vsel %vm525, %v4771, 0.0
  %v4900 = vadd.f32 %v4898, %v4899
  %v4901 = vrot.slane %v4900, 4
  %v4902 = vadd.f32 %v4900, %v4901
  %v4903 = vrot.slane %v4902, 2
  %v4904 = vadd.f32 %v4902, %v4903
  %v4905 = vrot.slane %v4904, 1
  %v4906 = vadd.f32 %v4904, %v4905
  %v4907 = vmul.f32 %v4906, %v659
  %v4908 = vsub.f32 %v4708, %v4907
  %v4909 = vsub.f32 %v4709, %v4907
  %v4910 = vsub.f32 %v4710, %v4907
  %v4911 = vsub.f32 %v4711, %v4907
  %v4912 = vsub.f32 %v4712, %v4907
  %v4913 = vsub.f32 %v4713, %v4907
  %v4914 = vsub.f32 %v4714, %v4907
  %v4915 = vsub.f32 %v4715, %v4907
  %v4916 = vsub.f32 %v4716, %v4907
  %v4917 = vsub.f32 %v4717, %v4907
  %v4918 = vsub.f32 %v4718, %v4907
  %v4919 = vsub.f32 %v4719, %v4907
  %v4920 = vsub.f32 %v4720, %v4907
  %v4921 = vsub.f32 %v4721, %v4907
  %v4922 = vsub.f32 %v4722, %v4907
  %v4923 = vsub.f32 %v4723, %v4907
  %v4924 = vsub.f32 %v4724, %v4907
  %v4925 = vsub.f32 %v4725, %v4907
  %v4926 = vsub.f32 %v4726, %v4907
  %v4927 = vsub.f32 %v4727, %v4907
  %v4928 = vsub.f32 %v4728, %v4907
  %v4929 = vsub.f32 %v4729, %v4907
  %v4930 = vsub.f32 %v4730, %v4907
  %v4931 = vsub.f32 %v4731, %v4907
  %v4932 = vsub.f32 %v4732, %v4907
  %v4933 = vsub.f32 %v4733, %v4907
  %v4934 = vsub.f32 %v4734, %v4907
  %v4935 = vsub.f32 %v4735, %v4907
  %v4936 = vsub.f32 %v4736, %v4907
  %v4937 = vsub.f32 %v4737, %v4907
  %v4938 = vsub.f32 %v4738, %v4907
  %v4939 = vsub.f32 %v4739, %v4907
  %v4940 = vsub.f32 %v4740, %v4907
  %v4941 = vsub.f32 %v4741, %v4907
  %v4942 = vsub.f32 %v4742, %v4907
  %v4943 = vsub.f32 %v4743, %v4907
  %v4944 = vsub.f32 %v4744, %v4907
  %v4945 = vsub.f32 %v4745, %v4907
  %v4946 = vsub.f32 %v4746, %v4907
  %v4947 = vsub.f32 %v4747, %v4907
  %v4948 = vsub.f32 %v4748, %v4907
  %v4949 = vsub.f32 %v4749, %v4907
  %v4950 = vsub.f32 %v4750, %v4907
  %v4951 = vsub.f32 %v4751, %v4907
  %v4952 = vsub.f32 %v4752, %v4907
  %v4953 = vsub.f32 %v4753, %v4907
  %v4954 = vsub.f32 %v4754, %v4907
  %v4955 = vsub.f32 %v4755, %v4907
  %v4956 = vsub.f32 %v4756, %v4907
  %v4957 = vsub.f32 %v4757, %v4907
  %v4958 = vsub.f32 %v4758, %v4907
  %v4959 = vsub.f32 %v4759, %v4907
  %v4960 = vsub.f32 %v4760, %v4907
  %v4961 = vsub.f32 %v4761, %v4907
  %v4962 = vsub.f32 %v4762, %v4907
  %v4963 = vsub.f32 %v4763, %v4907
  %v4964 = vsub.f32 %v4764, %v4907
  %v4965 = vsub.f32 %v4765, %v4907
  %v4966 = vsub.f32 %v4766, %v4907
  %v4967 = vsub.f32 %v4767, %v4907
  %v4968 = vsub.f32 %v4768, %v4907
  %v4969 = vsub.f32 %v4769, %v4907
  %v4970 = vsub.f32 %v4770, %v4907
  %v4971 = vsub.f32 %v4771, %v4907
  %v4972 = vmul.f32 %v4908, %v4908
  %v4973 = vmul.f32 %v4909, %v4909
  %v4974 = vmul.f32 %v4910, %v4910
  %v4975 = vmul.f32 %v4911, %v4911
  %v4976 = vmul.f32 %v4912, %v4912
  %v4977 = vmul.f32 %v4913, %v4913
  %v4978 = vmul.f32 %v4914, %v4914
  %v4979 = vmul.f32 %v4915, %v4915
  %v4980 = vmul.f32 %v4916, %v4916
  %v4981 = vmul.f32 %v4917, %v4917
  %v4982 = vmul.f32 %v4918, %v4918
  %v4983 = vmul.f32 %v4919, %v4919
  %v4984 = vmul.f32 %v4920, %v4920
  %v4985 = vmul.f32 %v4921, %v4921
  %v4986 = vmul.f32 %v4922, %v4922
  %v4987 = vmul.f32 %v4923, %v4923
  %v4988 = vmul.f32 %v4924, %v4924
  %v4989 = vmul.f32 %v4925, %v4925
  %v4990 = vmul.f32 %v4926, %v4926
  %v4991 = vmul.f32 %v4927, %v4927
  %v4992 = vmul.f32 %v4928, %v4928
  %v4993 = vmul.f32 %v4929, %v4929
  %v4994 = vmul.f32 %v4930, %v4930
  %v4995 = vmul.f32 %v4931, %v4931
  %v4996 = vmul.f32 %v4932, %v4932
  %v4997 = vmul.f32 %v4933, %v4933
  %v4998 = vmul.f32 %v4934, %v4934
  %v4999 = vmul.f32 %v4935, %v4935
  %v5000 = vmul.f32 %v4936, %v4936
  %v5001 = vmul.f32 %v4937, %v4937
  %v5002 = vmul.f32 %v4938, %v4938
  %v5003 = vmul.f32 %v4939, %v4939
  %v5004 = vmul.f32 %v4940, %v4940
  %v5005 = vmul.f32 %v4941, %v4941
  %v5006 = vmul.f32 %v4942, %v4942
  %v5007 = vmul.f32 %v4943, %v4943
  %v5008 = vmul.f32 %v4944, %v4944
  %v5009 = vmul.f32 %v4945, %v4945
  %v5010 = vmul.f32 %v4946, %v4946
  %v5011 = vmul.f32 %v4947, %v4947
  %v5012 = vmul.f32 %v4948, %v4948
  %v5013 = vmul.f32 %v4949, %v4949
  %v5014 = vmul.f32 %v4950, %v4950
  %v5015 = vmul.f32 %v4951, %v4951
  %v5016 = vmul.f32 %v4952, %v4952
  %v5017 = vmul.f32 %v4953, %v4953
  %v5018 = vmul.f32 %v4954, %v4954
  %v5019 = vmul.f32 %v4955, %v4955
  %v5020 = vmul.f32 %v4956, %v4956
  %v5021 = vmul.f32 %v4957, %v4957
  %v5022 = vmul.f32 %v4958, %v4958
  %v5023 = vmul.f32 %v4959, %v4959
  %v5024 = vmul.f32 %v4960, %v4960
  %v5025 = vmul.f32 %v4961, %v4961
  %v5026 = vmul.f32 %v4962, %v4962
  %v5027 = vmul.f32 %v4963, %v4963
  %v5028 = vmul.f32 %v4964, %v4964
  %v5029 = vmul.f32 %v4965, %v4965
  %v5030 = vmul.f32 %v4966, %v4966
  %v5031 = vmul.f32 %v4967, %v4967
  %v5032 = vmul.f32 %v4968, %v4968
  %v5033 = vmul.f32 %v4969, %v4969
  %v5034 = vmul.f32 %v4970, %v4970
  %v5035 = vmul.f32 %v4971, %v4971
  %v5036 = vsel %vm525, %v4972, 0.0
  %v5037 = vsel %vm525, %v4973, 0.0
  %v5038 = vadd.f32 %v5036, %v5037
  %v5039 = vsel %vm525, %v4974, 0.0
  %v5040 = vadd.f32 %v5038, %v5039
  %v5041 = vsel %vm525, %v4975, 0.0
  %v5042 = vadd.f32 %v5040, %v5041
  %v5043 = vsel %vm525, %v4976, 0.0
  %v5044 = vadd.f32 %v5042, %v5043
  %v5045 = vsel %vm525, %v4977, 0.0
  %v5046 = vadd.f32 %v5044, %v5045
  %v5047 = vsel %vm525, %v4978, 0.0
  %v5048 = vadd.f32 %v5046, %v5047
  %v5049 = vsel %vm525, %v4979, 0.0
  %v5050 = vadd.f32 %v5048, %v5049
  %v5051 = vsel %vm525, %v4980, 0.0
  %v5052 = vadd.f32 %v5050, %v5051
  %v5053 = vsel %vm525, %v4981, 0.0
  %v5054 = vadd.f32 %v5052, %v5053
  %v5055 = vsel %vm525, %v4982, 0.0
  %v5056 = vadd.f32 %v5054, %v5055
  %v5057 = vsel %vm525, %v4983, 0.0
  %v5058 = vadd.f32 %v5056, %v5057
  %v5059 = vsel %vm525, %v4984, 0.0
  %v5060 = vadd.f32 %v5058, %v5059
  %v5061 = vsel %vm525, %v4985, 0.0
  %v5062 = vadd.f32 %v5060, %v5061
  %v5063 = vsel %vm525, %v4986, 0.0
  %v5064 = vadd.f32 %v5062, %v5063
  %v5065 = vsel %vm525, %v4987, 0.0
  %v5066 = vadd.f32 %v5064, %v5065
  %v5067 = vsel %vm525, %v4988, 0.0
  %v5068 = vadd.f32 %v5066, %v5067
  %v5069 = vsel %vm525, %v4989, 0.0
  %v5070 = vadd.f32 %v5068, %v5069
  %v5071 = vsel %vm525, %v4990, 0.0
  %v5072 = vadd.f32 %v5070, %v5071
  %v5073 = vsel %vm525, %v4991, 0.0
  %v5074 = vadd.f32 %v5072, %v5073
  %v5075 = vsel %vm525, %v4992, 0.0
  %v5076 = vadd.f32 %v5074, %v5075
  %v5077 = vsel %vm525, %v4993, 0.0
  %v5078 = vadd.f32 %v5076, %v5077
  %v5079 = vsel %vm525, %v4994, 0.0
  %v5080 = vadd.f32 %v5078, %v5079
  %v5081 = vsel %vm525, %v4995, 0.0
  %v5082 = vadd.f32 %v5080, %v5081
  %v5083 = vsel %vm525, %v4996, 0.0
  %v5084 = vadd.f32 %v5082, %v5083
  %v5085 = vsel %vm525, %v4997, 0.0
  %v5086 = vadd.f32 %v5084, %v5085
  %v5087 = vsel %vm525, %v4998, 0.0
  %v5088 = vadd.f32 %v5086, %v5087
  %v5089 = vsel %vm525, %v4999, 0.0
  %v5090 = vadd.f32 %v5088, %v5089
  %v5091 = vsel %vm525, %v5000, 0.0
  %v5092 = vadd.f32 %v5090, %v5091
  %v5093 = vsel %vm525, %v5001, 0.0
  %v5094 = vadd.f32 %v5092, %v5093
  %v5095 = vsel %vm525, %v5002, 0.0
  %v5096 = vadd.f32 %v5094, %v5095
  %v5097 = vsel %vm525, %v5003, 0.0
  %v5098 = vadd.f32 %v5096, %v5097
  %v5099 = vsel %vm525, %v5004, 0.0
  %v5100 = vadd.f32 %v5098, %v5099
  %v5101 = vsel %vm525, %v5005, 0.0
  %v5102 = vadd.f32 %v5100, %v5101
  %v5103 = vsel %vm525, %v5006, 0.0
  %v5104 = vadd.f32 %v5102, %v5103
  %v5105 = vsel %vm525, %v5007, 0.0
  %v5106 = vadd.f32 %v5104, %v5105
  %v5107 = vsel %vm525, %v5008, 0.0
  %v5108 = vadd.f32 %v5106, %v5107
  %v5109 = vsel %vm525, %v5009, 0.0
  %v5110 = vadd.f32 %v5108, %v5109
  %v5111 = vsel %vm525, %v5010, 0.0
  %v5112 = vadd.f32 %v5110, %v5111
  %v5113 = vsel %vm525, %v5011, 0.0
  %v5114 = vadd.f32 %v5112, %v5113
  %v5115 = vsel %vm525, %v5012, 0.0
  %v5116 = vadd.f32 %v5114, %v5115
  %v5117 = vsel %vm525, %v5013, 0.0
  %v5118 = vadd.f32 %v5116, %v5117
  %v5119 = vsel %vm525, %v5014, 0.0
  %v5120 = vadd.f32 %v5118, %v5119
  %v5121 = vsel %vm525, %v5015, 0.0
  %v5122 = vadd.f32 %v5120, %v5121
  %v5123 = vsel %vm525, %v5016, 0.0
  %v5124 = vadd.f32 %v5122, %v5123
  %v5125 = vsel %vm525, %v5017, 0.0
  %v5126 = vadd.f32 %v5124, %v5125
  %v5127 = vsel %vm525, %v5018, 0.0
  %v5128 = vadd.f32 %v5126, %v5127
  %v5129 = vsel %vm525, %v5019, 0.0
  %v5130 = vadd.f32 %v5128, %v5129
  %v5131 = vsel %vm525, %v5020, 0.0
  %v5132 = vadd.f32 %v5130, %v5131
  %v5133 = vsel %vm525, %v5021, 0.0
  %v5134 = vadd.f32 %v5132, %v5133
  %v5135 = vsel %vm525, %v5022, 0.0
  %v5136 = vadd.f32 %v5134, %v5135
  %v5137 = vsel %vm525, %v5023, 0.0
  %v5138 = vadd.f32 %v5136, %v5137
  %v5139 = vsel %vm525, %v5024, 0.0
  %v5140 = vadd.f32 %v5138, %v5139
  %v5141 = vsel %vm525, %v5025, 0.0
  %v5142 = vadd.f32 %v5140, %v5141
  %v5143 = vsel %vm525, %v5026, 0.0
  %v5144 = vadd.f32 %v5142, %v5143
  %v5145 = vsel %vm525, %v5027, 0.0
  %v5146 = vadd.f32 %v5144, %v5145
  %v5147 = vsel %vm525, %v5028, 0.0
  %v5148 = vadd.f32 %v5146, %v5147
  %v5149 = vsel %vm525, %v5029, 0.0
  %v5150 = vadd.f32 %v5148, %v5149
  %v5151 = vsel %vm525, %v5030, 0.0
  %v5152 = vadd.f32 %v5150, %v5151
  %v5153 = vsel %vm525, %v5031, 0.0
  %v5154 = vadd.f32 %v5152, %v5153
  %v5155 = vsel %vm525, %v5032, 0.0
  %v5156 = vadd.f32 %v5154, %v5155
  %v5157 = vsel %vm525, %v5033, 0.0
  %v5158 = vadd.f32 %v5156, %v5157
  %v5159 = vsel %vm525, %v5034, 0.0
  %v5160 = vadd.f32 %v5158, %v5159
  %v5161 = vsel %vm525, %v5035, 0.0
  %v5162 = vadd.f32 %v5160, %v5161
  %v5163 = vrot.slane %v5162, 4
  %v5164 = vadd.f32 %v5162, %v5163
  %v5165 = vrot.slane %v5164, 2
  %v5166 = vadd.f32 %v5164, %v5165
  %v5167 = vrot.slane %v5166, 1
  %v5168 = vadd.f32 %v5166, %v5167
  %v5169 = vmul.f32 %v5168, %v659
  %v5170 = vadd.f32 %v5169, 1e-05
  %v5171 = vrsqrt.pop %v5170
  %v5172 = vmul.f32 %v4908, %v5171
  %v5173 = vmul.f32 %v4909, %v5171
  %v5174 = vmul.f32 %v4910, %v5171
  %v5175 = vmul.f32 %v4911, %v5171
  %v5176 = vmul.f32 %v4912, %v5171
  %v5177 = vmul.f32 %v4913, %v5171
  %v5178 = vmul.f32 %v4914, %v5171
  %v5179 = vmul.f32 %v4915, %v5171
  %v5180 = vmul.f32 %v4916, %v5171
  %v5181 = vmul.f32 %v4917, %v5171
  %v5182 = vmul.f32 %v4918, %v5171
  %v5183 = vmul.f32 %v4919, %v5171
  %v5184 = vmul.f32 %v4920, %v5171
  %v5185 = vmul.f32 %v4921, %v5171
  %v5186 = vmul.f32 %v4922, %v5171
  %v5187 = vmul.f32 %v4923, %v5171
  %v5188 = vmul.f32 %v4924, %v5171
  %v5189 = vmul.f32 %v4925, %v5171
  %v5190 = vmul.f32 %v4926, %v5171
  %v5191 = vmul.f32 %v4927, %v5171
  %v5192 = vmul.f32 %v4928, %v5171
  %v5193 = vmul.f32 %v4929, %v5171
  %v5194 = vmul.f32 %v4930, %v5171
  %v5195 = vmul.f32 %v4931, %v5171
  %v5196 = vmul.f32 %v4932, %v5171
  %v5197 = vmul.f32 %v4933, %v5171
  %v5198 = vmul.f32 %v4934, %v5171
  %v5199 = vmul.f32 %v4935, %v5171
  %v5200 = vmul.f32 %v4936, %v5171
  %v5201 = vmul.f32 %v4937, %v5171
  %v5202 = vmul.f32 %v4938, %v5171
  %v5203 = vmul.f32 %v4939, %v5171
  %v5204 = vmul.f32 %v4940, %v5171
  %v5205 = vmul.f32 %v4941, %v5171
  %v5206 = vmul.f32 %v4942, %v5171
  %v5207 = vmul.f32 %v4943, %v5171
  %v5208 = vmul.f32 %v4944, %v5171
  %v5209 = vmul.f32 %v4945, %v5171
  %v5210 = vmul.f32 %v4946, %v5171
  %v5211 = vmul.f32 %v4947, %v5171
  %v5212 = vmul.f32 %v4948, %v5171
  %v5213 = vmul.f32 %v4949, %v5171
  %v5214 = vmul.f32 %v4950, %v5171
  %v5215 = vmul.f32 %v4951, %v5171
  %v5216 = vmul.f32 %v4952, %v5171
  %v5217 = vmul.f32 %v4953, %v5171
  %v5218 = vmul.f32 %v4954, %v5171
  %v5219 = vmul.f32 %v4955, %v5171
  %v5220 = vmul.f32 %v4956, %v5171
  %v5221 = vmul.f32 %v4957, %v5171
  %v5222 = vmul.f32 %v4958, %v5171
  %v5223 = vmul.f32 %v4959, %v5171
  %v5224 = vmul.f32 %v4960, %v5171
  %v5225 = vmul.f32 %v4961, %v5171
  %v5226 = vmul.f32 %v4962, %v5171
  %v5227 = vmul.f32 %v4963, %v5171
  %v5228 = vmul.f32 %v4964, %v5171
  %v5229 = vmul.f32 %v4965, %v5171
  %v5230 = vmul.f32 %v4966, %v5171
  %v5231 = vmul.f32 %v4967, %v5171
  %v5232 = vmul.f32 %v4968, %v5171
  %v5233 = vmul.f32 %v4969, %v5171
  %v5234 = vmul.f32 %v4970, %v5171
  %v5235 = vmul.f32 %v4971, %v5171
  %v5237 = vlaneseq
  %v5238 = vshrl.u32 %v5237, 7
  %v5239 = vsub.s32 0, %v5238
  %v5240 = vrot.slane %v4772, %v5239
  %v5242 = vmul.f32 %v5172, %v5240
  %v5243 = vmul.f32 %v5173, %v5240
  %v5244 = vmul.f32 %v5174, %v5240
  %v5245 = vmul.f32 %v5175, %v5240
  %v5246 = vmul.f32 %v5176, %v5240
  %v5247 = vmul.f32 %v5177, %v5240
  %v5248 = vmul.f32 %v5178, %v5240
  %v5249 = vmul.f32 %v5179, %v5240
  %v5250 = vmul.f32 %v5180, %v5240
  %v5251 = vmul.f32 %v5181, %v5240
  %v5252 = vmul.f32 %v5182, %v5240
  %v5253 = vmul.f32 %v5183, %v5240
  %v5254 = vmul.f32 %v5184, %v5240
  %v5255 = vmul.f32 %v5185, %v5240
  %v5256 = vmul.f32 %v5186, %v5240
  %v5257 = vmul.f32 %v5187, %v5240
  %v5258 = vmul.f32 %v5188, %v5240
  %v5259 = vmul.f32 %v5189, %v5240
  %v5260 = vmul.f32 %v5190, %v5240
  %v5261 = vmul.f32 %v5191, %v5240
  %v5262 = vmul.f32 %v5192, %v5240
  %v5263 = vmul.f32 %v5193, %v5240
  %v5264 = vmul.f32 %v5194, %v5240
  %v5265 = vmul.f32 %v5195, %v5240
  %v5266 = vmul.f32 %v5196, %v5240
  %v5267 = vmul.f32 %v5197, %v5240
  %v5268 = vmul.f32 %v5198, %v5240
  %v5269 = vmul.f32 %v5199, %v5240
  %v5270 = vmul.f32 %v5200, %v5240
  %v5271 = vmul.f32 %v5201, %v5240
  %v5272 = vmul.f32 %v5202, %v5240
  %v5273 = vmul.f32 %v5203, %v5240
  %v5274 = vmul.f32 %v5204, %v5240
  %v5275 = vmul.f32 %v5205, %v5240
  %v5276 = vmul.f32 %v5206, %v5240
  %v5277 = vmul.f32 %v5207, %v5240
  %v5278 = vmul.f32 %v5208, %v5240
  %v5279 = vmul.f32 %v5209, %v5240
  %v5280 = vmul.f32 %v5210, %v5240
  %v5281 = vmul.f32 %v5211, %v5240
  %v5282 = vmul.f32 %v5212, %v5240
  %v5283 = vmul.f32 %v5213, %v5240
  %v5284 = vmul.f32 %v5214, %v5240
  %v5285 = vmul.f32 %v5215, %v5240
  %v5286 = vmul.f32 %v5216, %v5240
  %v5287 = vmul.f32 %v5217, %v5240
  %v5288 = vmul.f32 %v5218, %v5240
  %v5289 = vmul.f32 %v5219, %v5240
  %v5290 = vmul.f32 %v5220, %v5240
  %v5291 = vmul.f32 %v5221, %v5240
  %v5292 = vmul.f32 %v5222, %v5240
  %v5293 = vmul.f32 %v5223, %v5240
  %v5294 = vmul.f32 %v5224, %v5240
  %v5295 = vmul.f32 %v5225, %v5240
  %v5296 = vmul.f32 %v5226, %v5240
  %v5297 = vmul.f32 %v5227, %v5240
  %v5298 = vmul.f32 %v5228, %v5240
  %v5299 = vmul.f32 %v5229, %v5240
  %v5300 = vmul.f32 %v5230, %v5240
  %v5301 = vmul.f32 %v5231, %v5240
  %v5302 = vmul.f32 %v5232, %v5240
  %v5303 = vmul.f32 %v5233, %v5240
  %v5304 = vmul.f32 %v5234, %v5240
  %v5305 = vmul.f32 %v5235, %v5240
  %v5307 = vlaneseq
  %v5308 = vshrl.u32 %v5307, 7
  %v5309 = vsub.s32 0, %v5308
  %v5310 = vrot.slane %v4773, %v5309
  %v5312 = vadd.f32 %v5242, %v5310
  %v5313 = vadd.f32 %v5243, %v5310
  %v5314 = vadd.f32 %v5244, %v5310
  %v5315 = vadd.f32 %v5245, %v5310
  %v5316 = vadd.f32 %v5246, %v5310
  %v5317 = vadd.f32 %v5247, %v5310
  %v5318 = vadd.f32 %v5248, %v5310
  %v5319 = vadd.f32 %v5249, %v5310
  %v5320 = vadd.f32 %v5250, %v5310
  %v5321 = vadd.f32 %v5251, %v5310
  %v5322 = vadd.f32 %v5252, %v5310
  %v5323 = vadd.f32 %v5253, %v5310
  %v5324 = vadd.f32 %v5254, %v5310
  %v5325 = vadd.f32 %v5255, %v5310
  %v5326 = vadd.f32 %v5256, %v5310
  %v5327 = vadd.f32 %v5257, %v5310
  %v5328 = vadd.f32 %v5258, %v5310
  %v5329 = vadd.f32 %v5259, %v5310
  %v5330 = vadd.f32 %v5260, %v5310
  %v5331 = vadd.f32 %v5261, %v5310
  %v5332 = vadd.f32 %v5262, %v5310
  %v5333 = vadd.f32 %v5263, %v5310
  %v5334 = vadd.f32 %v5264, %v5310
  %v5335 = vadd.f32 %v5265, %v5310
  %v5336 = vadd.f32 %v5266, %v5310
  %v5337 = vadd.f32 %v5267, %v5310
  %v5338 = vadd.f32 %v5268, %v5310
  %v5339 = vadd.f32 %v5269, %v5310
  %v5340 = vadd.f32 %v5270, %v5310
  %v5341 = vadd.f32 %v5271, %v5310
  %v5342 = vadd.f32 %v5272, %v5310
  %v5343 = vadd.f32 %v5273, %v5310
  %v5344 = vadd.f32 %v5274, %v5310
  %v5345 = vadd.f32 %v5275, %v5310
  %v5346 = vadd.f32 %v5276, %v5310
  %v5347 = vadd.f32 %v5277, %v5310
  %v5348 = vadd.f32 %v5278, %v5310
  %v5349 = vadd.f32 %v5279, %v5310
  %v5350 = vadd.f32 %v5280, %v5310
  %v5351 = vadd.f32 %v5281, %v5310
  %v5352 = vadd.f32 %v5282, %v5310
  %v5353 = vadd.f32 %v5283, %v5310
  %v5354 = vadd.f32 %v5284, %v5310
  %v5355 = vadd.f32 %v5285, %v5310
  %v5356 = vadd.f32 %v5286, %v5310
  %v5357 = vadd.f32 %v5287, %v5310
  %v5358 = vadd.f32 %v5288, %v5310
  %v5359 = vadd.f32 %v5289, %v5310
  %v5360 = vadd.f32 %v5290, %v5310
  %v5361 = vadd.f32 %v5291, %v5310
  %v5362 = vadd.f32 %v5292, %v5310
  %v5363 = vadd.f32 %v5293, %v5310
  %v5364 = vadd.f32 %v5294, %v5310
  %v5365 = vadd.f32 %v5295, %v5310
  %v5366 = vadd.f32 %v5296, %v5310
  %v5367 = vadd.f32 %v5297, %v5310
  %v5368 = vadd.f32 %v5298, %v5310
  %v5369 = vadd.f32 %v5299, %v5310
  %v5370 = vadd.f32 %v5300, %v5310
  %v5371 = vadd.f32 %v5301, %v5310
  %v5372 = vadd.f32 %v5302, %v5310
  %v5373 = vadd.f32 %v5303, %v5310
  %v5374 = vadd.f32 %v5304, %v5310
  %v5375 = vadd.f32 %v5305, %v5310
  %v5376 = vmax.f32 %v5312, 0.0
  %v5377 = vmax.f32 %v5313, 0.0
  %v5378 = vmax.f32 %v5314, 0.0
  %v5379 = vmax.f32 %v5315, 0.0
  %v5380 = vmax.f32 %v5316, 0.0
  %v5381 = vmax.f32 %v5317, 0.0
  %v5382 = vmax.f32 %v5318, 0.0
  %v5383 = vmax.f32 %v5319, 0.0
  %v5384 = vmax.f32 %v5320, 0.0
  %v5385 = vmax.f32 %v5321, 0.0
  %v5386 = vmax.f32 %v5322, 0.0
  %v5387 = vmax.f32 %v5323, 0.0
  %v5388 = vmax.f32 %v5324, 0.0
  %v5389 = vmax.f32 %v5325, 0.0
  %v5390 = vmax.f32 %v5326, 0.0
  %v5391 = vmax.f32 %v5327, 0.0
  %v5392 = vmax.f32 %v5328, 0.0
  %v5393 = vmax.f32 %v5329, 0.0
  %v5394 = vmax.f32 %v5330, 0.0
  %v5395 = vmax.f32 %v5331, 0.0
  %v5396 = vmax.f32 %v5332, 0.0
  %v5397 = vmax.f32 %v5333, 0.0
  %v5398 = vmax.f32 %v5334, 0.0
  %v5399 = vmax.f32 %v5335, 0.0
  %v5400 = vmax.f32 %v5336, 0.0
  %v5401 = vmax.f32 %v5337, 0.0
  %v5402 = vmax.f32 %v5338, 0.0
  %v5403 = vmax.f32 %v5339, 0.0
  %v5404 = vmax.f32 %v5340, 0.0
  %v5405 = vmax.f32 %v5341, 0.0
  %v5406 = vmax.f32 %v5342, 0.0
  %v5407 = vmax.f32 %v5343, 0.0
  %v5408 = vmax.f32 %v5344, 0.0
  %v5409 = vmax.f32 %v5345, 0.0
  %v5410 = vmax.f32 %v5346, 0.0
  %v5411 = vmax.f32 %v5347, 0.0
  %v5412 = vmax.f32 %v5348, 0.0
  %v5413 = vmax.f32 %v5349, 0.0
  %v5414 = vmax.f32 %v5350, 0.0
  %v5415 = vmax.f32 %v5351, 0.0
  %v5416 = vmax.f32 %v5352, 0.0
  %v5417 = vmax.f32 %v5353, 0.0
  %v5418 = vmax.f32 %v5354, 0.0
  %v5419 = vmax.f32 %v5355, 0.0
  %v5420 = vmax.f32 %v5356, 0.0
  %v5421 = vmax.f32 %v5357, 0.0
  %v5422 = vmax.f32 %v5358, 0.0
  %v5423 = vmax.f32 %v5359, 0.0
  %v5424 = vmax.f32 %v5360, 0.0
  %v5425 = vmax.f32 %v5361, 0.0
  %v5426 = vmax.f32 %v5362, 0.0
  %v5427 = vmax.f32 %v5363, 0.0
  %v5428 = vmax.f32 %v5364, 0.0
  %v5429 = vmax.f32 %v5365, 0.0
  %v5430 = vmax.f32 %v5366, 0.0
  %v5431 = vmax.f32 %v5367, 0.0
  %v5432 = vmax.f32 %v5368, 0.0
  %v5433 = vmax.f32 %v5369, 0.0
  %v5434 = vmax.f32 %v5370, 0.0
  %v5435 = vmax.f32 %v5371, 0.0
  %v5436 = vmax.f32 %v5372, 0.0
  %v5437 = vmax.f32 %v5373, 0.0
  %v5438 = vmax.f32 %v5374, 0.0
  %v5439 = vmax.f32 %v5375, 0.0
  %v5440 = vpack.c.bf16 %v5377, %v5376
  %v5441 = vpack.c.bf16 %v5379, %v5378
  %v5442 = vpack.c.bf16 %v5381, %v5380
  %v5443 = vpack.c.bf16 %v5383, %v5382
  %v5444 = vpack.c.bf16 %v5385, %v5384
  %v5445 = vpack.c.bf16 %v5387, %v5386
  %v5446 = vpack.c.bf16 %v5389, %v5388
  %v5447 = vpack.c.bf16 %v5391, %v5390
  %v5448 = vpack.c.bf16 %v5393, %v5392
  %v5449 = vpack.c.bf16 %v5395, %v5394
  %v5450 = vpack.c.bf16 %v5397, %v5396
  %v5451 = vpack.c.bf16 %v5399, %v5398
  %v5452 = vpack.c.bf16 %v5401, %v5400
  %v5453 = vpack.c.bf16 %v5403, %v5402
  %v5454 = vpack.c.bf16 %v5405, %v5404
  %v5455 = vpack.c.bf16 %v5407, %v5406
  %v5456 = vpack.c.bf16 %v5409, %v5408
  %v5457 = vpack.c.bf16 %v5411, %v5410
  %v5458 = vpack.c.bf16 %v5413, %v5412
  %v5459 = vpack.c.bf16 %v5415, %v5414
  %v5460 = vpack.c.bf16 %v5417, %v5416
  %v5461 = vpack.c.bf16 %v5419, %v5418
  %v5462 = vpack.c.bf16 %v5421, %v5420
  %v5463 = vpack.c.bf16 %v5423, %v5422
  %v5464 = vpack.c.bf16 %v5425, %v5424
  %v5465 = vpack.c.bf16 %v5427, %v5426
  %v5466 = vpack.c.bf16 %v5429, %v5428
  %v5467 = vpack.c.bf16 %v5431, %v5430
  %v5468 = vpack.c.bf16 %v5433, %v5432
  %v5469 = vpack.c.bf16 %v5435, %v5434
  %v5470 = vpack.c.bf16 %v5437, %v5436
  %v5471 = vpack.c.bf16 %v5439, %v5438
  %v5472 = vld [vmem:[%s3] sm:$0xf]
  %v5473 = vld [vmem:[%s3 + $0x4] sm:$0xf]
  %v5474 = vld [vmem:[%s3 + $0x8] sm:$0xf]
  %v5475 = vld [vmem:[%s3 + $0xc] sm:$0xf]
  %v5480 = vunpack.c.l.b16 %v5472
  %v5481 = vunpack.c.l.b16 %v5473
  %v5482 = vunpack.c.l.b16 %v5474
  %v5483 = vunpack.c.l.b16 %v5475
  %v5484 = vpack.c.b16 %v5481, %v5480
  %v5485 = vpack.c.b16 %v5483, %v5482
  %v5489 = vsel %vm525, %v5440, 0
  %v5492 = vsel %vm525, %v5441, 0
  %v5495 = vsel %vm525, %v5442, 0
  %v5498 = vsel %vm525, %v5443, 0
  %v5501 = vsel %vm525, %v5444, 0
  %v5504 = vsel %vm525, %v5445, 0
  %v5507 = vsel %vm525, %v5446, 0
  %v5510 = vsel %vm525, %v5447, 0
  %v5513 = vsel %vm525, %v5448, 0
  %v5516 = vsel %vm525, %v5449, 0
  %v5519 = vsel %vm525, %v5450, 0
  %v5522 = vsel %vm525, %v5451, 0
  %v5525 = vsel %vm525, %v5452, 0
  %v5528 = vsel %vm525, %v5453, 0
  %v5531 = vsel %vm525, %v5454, 0
  %v5534 = vsel %vm525, %v5455, 0
  %v5537 = vsel %vm525, %v5456, 0
  %v5540 = vsel %vm525, %v5457, 0
  %v5543 = vsel %vm525, %v5458, 0
  %v5546 = vsel %vm525, %v5459, 0
  %v5549 = vsel %vm525, %v5460, 0
  %v5552 = vsel %vm525, %v5461, 0
  %v5555 = vsel %vm525, %v5462, 0
  %v5558 = vsel %vm525, %v5463, 0
  %v5561 = vsel %vm525, %v5464, 0
  %v5564 = vsel %vm525, %v5465, 0
  %v5567 = vsel %vm525, %v5466, 0
  %v5570 = vsel %vm525, %v5467, 0
  %v5573 = vsel %vm525, %v5468, 0
  %v5576 = vsel %vm525, %v5469, 0
  %v5579 = vsel %vm525, %v5470, 0
  %v5582 = vsel %vm525, %v5471, 0
  %5584 = vmatprep.subr.bf16.mxu0 0
  %5585 = vmatpush1.bf16.msra.mxu0 0
  %5586 = vmatprep.subr.bf16.mxu0 0
  %5587 = vmatpush1.bf16.msra.mxu0 0
  %5588 = vmatprep.subr.bf16.mxu0 0
  %5589 = vmatpush1.bf16.msra.mxu0 0
  %5590 = vmatprep.subr.bf16.mxu0 0
  %5591 = vmatpush1.bf16.msra.mxu0 0
  %5592 = vmatprep.subr.bf16.mxu0 0
  %5593 = vmatpush1.bf16.msra.mxu0 0
  %5594 = vmatprep.subr.bf16.mxu0 0
  %5595 = vmatpush1.bf16.msra.mxu0 0
  %5596 = vmatprep.subr.bf16.mxu0 0
  %5597 = vmatpush1.bf16.msra.mxu0 %v5485
  %5598 = vmatprep.subr.bf16.mxu0 0
  %5599 = vmatpush1.bf16.msra.mxu0 %v5484
  %5600 = vmatprep.subr.bf16.mxu0 0
  %5601 = vmatpush2.bf16.msra.mxu0 0
  %5602 = vmatprep.subr.bf16.mxu0 0
  %5603 = vmatpush2.bf16.msra.mxu0 0
  %5604 = vmatprep.subr.bf16.mxu0 0
  %5605 = vmatpush2.bf16.msra.mxu0 0
  %5606 = vmatprep.subr.bf16.mxu0 0
  %5607 = vmatpush2.bf16.msra.mxu0 0
  %5608 = vmatprep.subr.bf16.mxu0 0
  %5609 = vmatpush2.bf16.msra.mxu0 0
  %5610 = vmatprep.subr.bf16.mxu0 0
  %5611 = vmatpush2.bf16.msra.mxu0 0
  %5612 = vmatprep.subr.bf16.mxu0 0
  %5613 = vmatpush2.bf16.msra.mxu0 0
  %5614 = vmatprep.subr.bf16.mxu0 0
  %5615 = vmatpush2.bf16.msra.mxu0 0
  %5616 = vmatprep.mubr.bf16.mxu0 0
  %5617 = vmatmul.mubr.bf16.gmra.mxu0 %v5489
  %v5618 = vpop.f32.mrf.mxu0
  %v5619 = vadd.f32 0.0, %v5618
  %v5620 = vpop.f32.mrf.mxu0
  %v5621 = vpop.f32.mrf.mxu0
  %v5622 = vadd.f32 0.0, %v5621
  %v5623 = vpop.f32.mrf.mxu0
  %5624 = vmatprep.mubr.bf16.mxu0 0
  %5625 = vmatmul.mubr.bf16.gmra.mxu0 %v5492
  %v5626 = vpop.f32.mrf.mxu0
  %v5627 = vadd.f32 0.0, %v5626
  %v5628 = vpop.f32.mrf.mxu0
  %v5629 = vpop.f32.mrf.mxu0
  %v5630 = vadd.f32 0.0, %v5629
  %v5631 = vpop.f32.mrf.mxu0
  %5632 = vmatprep.mubr.bf16.mxu0 0
  %5633 = vmatmul.mubr.bf16.gmra.mxu0 %v5495
  %v5634 = vpop.f32.mrf.mxu0
  %v5635 = vadd.f32 0.0, %v5634
  %v5636 = vpop.f32.mrf.mxu0
  %v5637 = vpop.f32.mrf.mxu0
  %v5638 = vadd.f32 0.0, %v5637
  %v5639 = vpop.f32.mrf.mxu0
  %5640 = vmatprep.mubr.bf16.mxu0 0
  %5641 = vmatmul.mubr.bf16.gmra.mxu0 %v5498
  %v5642 = vpop.f32.mrf.mxu0
  %v5643 = vadd.f32 0.0, %v5642
  %v5644 = vpop.f32.mrf.mxu0
  %v5645 = vpop.f32.mrf.mxu0
  %v5646 = vadd.f32 0.0, %v5645
  %v5647 = vpop.f32.mrf.mxu0
  %5648 = vmatprep.mubr.bf16.mxu0 0
  %5649 = vmatmul.mubr.bf16.gmra.mxu0 %v5501
  %v5650 = vpop.f32.mrf.mxu0
  %v5651 = vadd.f32 0.0, %v5650
  %v5652 = vpop.f32.mrf.mxu0
  %v5653 = vpop.f32.mrf.mxu0
  %v5654 = vadd.f32 0.0, %v5653
  %v5655 = vpop.f32.mrf.mxu0
  %5656 = vmatprep.mubr.bf16.mxu0 0
  %5657 = vmatmul.mubr.bf16.gmra.mxu0 %v5504
  %v5658 = vpop.f32.mrf.mxu0
  %v5659 = vadd.f32 0.0, %v5658
  %v5660 = vpop.f32.mrf.mxu0
  %v5661 = vpop.f32.mrf.mxu0
  %v5662 = vadd.f32 0.0, %v5661
  %v5663 = vpop.f32.mrf.mxu0
  %5664 = vmatprep.mubr.bf16.mxu0 0
  %5665 = vmatmul.mubr.bf16.gmra.mxu0 %v5507
  %v5666 = vpop.f32.mrf.mxu0
  %v5667 = vadd.f32 0.0, %v5666
  %v5668 = vpop.f32.mrf.mxu0
  %v5669 = vpop.f32.mrf.mxu0
  %v5670 = vadd.f32 0.0, %v5669
  %v5671 = vpop.f32.mrf.mxu0
  %5672 = vmatprep.mubr.bf16.mxu0 0
  %5673 = vmatmul.mubr.bf16.gmra.mxu0 %v5510
  %v5674 = vpop.f32.mrf.mxu0
  %v5675 = vadd.f32 0.0, %v5674
  %v5676 = vpop.f32.mrf.mxu0
  %v5677 = vpop.f32.mrf.mxu0
  %v5678 = vadd.f32 0.0, %v5677
  %v5679 = vpop.f32.mrf.mxu0
  %5680 = vmatprep.mubr.bf16.mxu0 0
  %5681 = vmatmul.mubr.bf16.gmra.mxu0 %v5513
  %v5682 = vpop.f32.mrf.mxu0
  %v5683 = vadd.f32 0.0, %v5682
  %v5684 = vpop.f32.mrf.mxu0
  %v5685 = vpop.f32.mrf.mxu0
  %v5686 = vadd.f32 0.0, %v5685
  %v5687 = vpop.f32.mrf.mxu0
  %5688 = vmatprep.mubr.bf16.mxu0 0
  %5689 = vmatmul.mubr.bf16.gmra.mxu0 %v5516
  %v5690 = vpop.f32.mrf.mxu0
  %v5691 = vadd.f32 0.0, %v5690
  %v5692 = vpop.f32.mrf.mxu0
  %v5693 = vpop.f32.mrf.mxu0
  %v5694 = vadd.f32 0.0, %v5693
  %v5695 = vpop.f32.mrf.mxu0
  %5696 = vmatprep.mubr.bf16.mxu0 0
  %5697 = vmatmul.mubr.bf16.gmra.mxu0 %v5519
  %v5698 = vpop.f32.mrf.mxu0
  %v5699 = vadd.f32 0.0, %v5698
  %v5700 = vpop.f32.mrf.mxu0
  %v5701 = vpop.f32.mrf.mxu0
  %v5702 = vadd.f32 0.0, %v5701
  %v5703 = vpop.f32.mrf.mxu0
  %5704 = vmatprep.mubr.bf16.mxu0 0
  %5705 = vmatmul.mubr.bf16.gmra.mxu0 %v5522
  %v5706 = vpop.f32.mrf.mxu0
  %v5707 = vadd.f32 0.0, %v5706
  %v5708 = vpop.f32.mrf.mxu0
  %v5709 = vpop.f32.mrf.mxu0
  %v5710 = vadd.f32 0.0, %v5709
  %v5711 = vpop.f32.mrf.mxu0
  %5712 = vmatprep.mubr.bf16.mxu0 0
  %5713 = vmatmul.mubr.bf16.gmra.mxu0 %v5525
  %v5714 = vpop.f32.mrf.mxu0
  %v5715 = vadd.f32 0.0, %v5714
  %v5716 = vpop.f32.mrf.mxu0
  %v5717 = vpop.f32.mrf.mxu0
  %v5718 = vadd.f32 0.0, %v5717
  %v5719 = vpop.f32.mrf.mxu0
  %5720 = vmatprep.mubr.bf16.mxu0 0
  %5721 = vmatmul.mubr.bf16.gmra.mxu0 %v5528
  %v5722 = vpop.f32.mrf.mxu0
  %v5723 = vadd.f32 0.0, %v5722
  %v5724 = vpop.f32.mrf.mxu0
  %v5725 = vpop.f32.mrf.mxu0
  %v5726 = vadd.f32 0.0, %v5725
  %v5727 = vpop.f32.mrf.mxu0
  %5728 = vmatprep.mubr.bf16.mxu0 0
  %5729 = vmatmul.mubr.bf16.gmra.mxu0 %v5531
  %v5730 = vpop.f32.mrf.mxu0
  %v5731 = vadd.f32 0.0, %v5730
  %v5732 = vpop.f32.mrf.mxu0
  %v5733 = vpop.f32.mrf.mxu0
  %v5734 = vadd.f32 0.0, %v5733
  %v5735 = vpop.f32.mrf.mxu0
  %5736 = vmatprep.mubr.bf16.mxu0 0
  %5737 = vmatmul.mubr.bf16.gmra.mxu0 %v5534
  %v5738 = vpop.f32.mrf.mxu0
  %v5739 = vadd.f32 0.0, %v5738
  %v5740 = vpop.f32.mrf.mxu0
  %v5741 = vpop.f32.mrf.mxu0
  %v5742 = vadd.f32 0.0, %v5741
  %v5743 = vpop.f32.mrf.mxu0
  %5744 = vmatprep.mubr.bf16.mxu0 0
  %5745 = vmatmul.mubr.bf16.gmra.mxu0 %v5537
  %v5746 = vpop.f32.mrf.mxu0
  %v5747 = vadd.f32 0.0, %v5746
  %v5748 = vpop.f32.mrf.mxu0
  %v5749 = vpop.f32.mrf.mxu0
  %v5750 = vadd.f32 0.0, %v5749
  %v5751 = vpop.f32.mrf.mxu0
  %5752 = vmatprep.mubr.bf16.mxu0 0
  %5753 = vmatmul.mubr.bf16.gmra.mxu0 %v5540
  %v5754 = vpop.f32.mrf.mxu0
  %v5755 = vadd.f32 0.0, %v5754
  %v5756 = vpop.f32.mrf.mxu0
  %v5757 = vpop.f32.mrf.mxu0
  %v5758 = vadd.f32 0.0, %v5757
  %v5759 = vpop.f32.mrf.mxu0
  %5760 = vmatprep.mubr.bf16.mxu0 0
  %5761 = vmatmul.mubr.bf16.gmra.mxu0 %v5543
  %v5762 = vpop.f32.mrf.mxu0
  %v5763 = vadd.f32 0.0, %v5762
  %v5764 = vpop.f32.mrf.mxu0
  %v5765 = vpop.f32.mrf.mxu0
  %v5766 = vadd.f32 0.0, %v5765
  %v5767 = vpop.f32.mrf.mxu0
  %5768 = vmatprep.mubr.bf16.mxu0 0
  %5769 = vmatmul.mubr.bf16.gmra.mxu0 %v5546
  %v5770 = vpop.f32.mrf.mxu0
  %v5771 = vadd.f32 0.0, %v5770
  %v5772 = vpop.f32.mrf.mxu0
  %v5773 = vpop.f32.mrf.mxu0
  %v5774 = vadd.f32 0.0, %v5773
  %v5775 = vpop.f32.mrf.mxu0
  %5776 = vmatprep.mubr.bf16.mxu0 0
  %5777 = vmatmul.mubr.bf16.gmra.mxu0 %v5549
  %v5778 = vpop.f32.mrf.mxu0
  %v5779 = vadd.f32 0.0, %v5778
  %v5780 = vpop.f32.mrf.mxu0
  %v5781 = vpop.f32.mrf.mxu0
  %v5782 = vadd.f32 0.0, %v5781
  %v5783 = vpop.f32.mrf.mxu0
  %5784 = vmatprep.mubr.bf16.mxu0 0
  %5785 = vmatmul.mubr.bf16.gmra.mxu0 %v5552
  %v5786 = vpop.f32.mrf.mxu0
  %v5787 = vadd.f32 0.0, %v5786
  %v5788 = vpop.f32.mrf.mxu0
  %v5789 = vpop.f32.mrf.mxu0
  %v5790 = vadd.f32 0.0, %v5789
  %v5791 = vpop.f32.mrf.mxu0
  %5792 = vmatprep.mubr.bf16.mxu0 0
  %5793 = vmatmul.mubr.bf16.gmra.mxu0 %v5555
  %v5794 = vpop.f32.mrf.mxu0
  %v5795 = vadd.f32 0.0, %v5794
  %v5796 = vpop.f32.mrf.mxu0
  %v5797 = vpop.f32.mrf.mxu0
  %v5798 = vadd.f32 0.0, %v5797
  %v5799 = vpop.f32.mrf.mxu0
  %5800 = vmatprep.mubr.bf16.mxu0 0
  %5801 = vmatmul.mubr.bf16.gmra.mxu0 %v5558
  %v5802 = vpop.f32.mrf.mxu0
  %v5803 = vadd.f32 0.0, %v5802
  %v5804 = vpop.f32.mrf.mxu0
  %v5805 = vpop.f32.mrf.mxu0
  %v5806 = vadd.f32 0.0, %v5805
  %v5807 = vpop.f32.mrf.mxu0
  %5808 = vmatprep.mubr.bf16.mxu0 0
  %5809 = vmatmul.mubr.bf16.gmra.mxu0 %v5561
  %v5810 = vpop.f32.mrf.mxu0
  %v5811 = vadd.f32 0.0, %v5810
  %v5812 = vpop.f32.mrf.mxu0
  %v5813 = vpop.f32.mrf.mxu0
  %v5814 = vadd.f32 0.0, %v5813
  %v5815 = vpop.f32.mrf.mxu0
  %5816 = vmatprep.mubr.bf16.mxu0 0
  %5817 = vmatmul.mubr.bf16.gmra.mxu0 %v5564
  %v5818 = vpop.f32.mrf.mxu0
  %v5819 = vadd.f32 0.0, %v5818
  %v5820 = vpop.f32.mrf.mxu0
  %v5821 = vpop.f32.mrf.mxu0
  %v5822 = vadd.f32 0.0, %v5821
  %v5823 = vpop.f32.mrf.mxu0
  %5824 = vmatprep.mubr.bf16.mxu0 0
  %5825 = vmatmul.mubr.bf16.gmra.mxu0 %v5567
  %v5826 = vpop.f32.mrf.mxu0
  %v5827 = vadd.f32 0.0, %v5826
  %v5828 = vpop.f32.mrf.mxu0
  %v5829 = vpop.f32.mrf.mxu0
  %v5830 = vadd.f32 0.0, %v5829
  %v5831 = vpop.f32.mrf.mxu0
  %5832 = vmatprep.mubr.bf16.mxu0 0
  %5833 = vmatmul.mubr.bf16.gmra.mxu0 %v5570
  %v5834 = vpop.f32.mrf.mxu0
  %v5835 = vadd.f32 0.0, %v5834
  %v5836 = vpop.f32.mrf.mxu0
  %v5837 = vpop.f32.mrf.mxu0
  %v5838 = vadd.f32 0.0, %v5837
  %v5839 = vpop.f32.mrf.mxu0
  %5840 = vmatprep.mubr.bf16.mxu0 0
  %5841 = vmatmul.mubr.bf16.gmra.mxu0 %v5573
  %v5842 = vpop.f32.mrf.mxu0
  %v5843 = vadd.f32 0.0, %v5842
  %v5844 = vpop.f32.mrf.mxu0
  %v5845 = vpop.f32.mrf.mxu0
  %v5846 = vadd.f32 0.0, %v5845
  %v5847 = vpop.f32.mrf.mxu0
  %5848 = vmatprep.mubr.bf16.mxu0 0
  %5849 = vmatmul.mubr.bf16.gmra.mxu0 %v5576
  %v5850 = vpop.f32.mrf.mxu0
  %v5851 = vadd.f32 0.0, %v5850
  %v5852 = vpop.f32.mrf.mxu0
  %v5853 = vpop.f32.mrf.mxu0
  %v5854 = vadd.f32 0.0, %v5853
  %v5855 = vpop.f32.mrf.mxu0
  %5856 = vmatprep.mubr.bf16.mxu0 0
  %5857 = vmatmul.mubr.bf16.gmra.mxu0 %v5579
  %v5858 = vpop.f32.mrf.mxu0
  %v5859 = vadd.f32 0.0, %v5858
  %v5860 = vpop.f32.mrf.mxu0
  %v5861 = vpop.f32.mrf.mxu0
  %v5862 = vadd.f32 0.0, %v5861
  %v5863 = vpop.f32.mrf.mxu0
  %5864 = vmatprep.mubr.bf16.mxu0 0
  %5865 = vmatmul.mubr.bf16.gmra.mxu0 %v5582
  %v5866 = vpop.f32.mrf.mxu0
  %v5867 = vadd.f32 0.0, %v5866
  %v5868 = vpop.f32.mrf.mxu0
  %v5869 = vpop.f32.mrf.mxu0
  %v5870 = vadd.f32 0.0, %v5869
  %v5871 = vpop.f32.mrf.mxu0
  %5872 = vdwg.mxu0
  %v5873 = vld [vmem:[%s8] sm:$0x1]
  %v5874 = vld [vmem:[%s9] sm:$0x1]
  %vm5875 = vcmask 64512
  %v5876 = vsel %vm5875, %v5619, 0.0
  %v5877 = vsel %vm5875, %v5622, 0.0
  %v5878 = vadd.f32 %v5876, %v5877
  %v5879 = vsel %vm5875, %v5627, 0.0
  %v5880 = vadd.f32 %v5878, %v5879
  %v5881 = vsel %vm5875, %v5630, 0.0
  %v5882 = vadd.f32 %v5880, %v5881
  %v5883 = vsel %vm5875, %v5635, 0.0
  %v5884 = vadd.f32 %v5882, %v5883
  %v5885 = vsel %vm5875, %v5638, 0.0
  %v5886 = vadd.f32 %v5884, %v5885
  %v5887 = vsel %vm5875, %v5643, 0.0
  %v5888 = vadd.f32 %v5886, %v5887
  %v5889 = vsel %vm5875, %v5646, 0.0
  %v5890 = vadd.f32 %v5888, %v5889
  %v5891 = vsel %vm5875, %v5651, 0.0
  %v5892 = vadd.f32 %v5890, %v5891
  %v5893 = vsel %vm5875, %v5654, 0.0
  %v5894 = vadd.f32 %v5892, %v5893
  %v5895 = vsel %vm5875, %v5659, 0.0
  %v5896 = vadd.f32 %v5894, %v5895
  %v5897 = vsel %vm5875, %v5662, 0.0
  %v5898 = vadd.f32 %v5896, %v5897
  %v5899 = vsel %vm5875, %v5667, 0.0
  %v5900 = vadd.f32 %v5898, %v5899
  %v5901 = vsel %vm5875, %v5670, 0.0
  %v5902 = vadd.f32 %v5900, %v5901
  %v5903 = vsel %vm5875, %v5675, 0.0
  %v5904 = vadd.f32 %v5902, %v5903
  %v5905 = vsel %vm5875, %v5678, 0.0
  %v5906 = vadd.f32 %v5904, %v5905
  %v5907 = vsel %vm5875, %v5683, 0.0
  %v5908 = vadd.f32 %v5906, %v5907
  %v5909 = vsel %vm5875, %v5686, 0.0
  %v5910 = vadd.f32 %v5908, %v5909
  %v5911 = vsel %vm5875, %v5691, 0.0
  %v5912 = vadd.f32 %v5910, %v5911
  %v5913 = vsel %vm5875, %v5694, 0.0
  %v5914 = vadd.f32 %v5912, %v5913
  %v5915 = vsel %vm5875, %v5699, 0.0
  %v5916 = vadd.f32 %v5914, %v5915
  %v5917 = vsel %vm5875, %v5702, 0.0
  %v5918 = vadd.f32 %v5916, %v5917
  %v5919 = vsel %vm5875, %v5707, 0.0
  %v5920 = vadd.f32 %v5918, %v5919
  %v5921 = vsel %vm5875, %v5710, 0.0
  %v5922 = vadd.f32 %v5920, %v5921
  %v5923 = vsel %vm5875, %v5715, 0.0
  %v5924 = vadd.f32 %v5922, %v5923
  %v5925 = vsel %vm5875, %v5718, 0.0
  %v5926 = vadd.f32 %v5924, %v5925
  %v5927 = vsel %vm5875, %v5723, 0.0
  %v5928 = vadd.f32 %v5926, %v5927
  %v5929 = vsel %vm5875, %v5726, 0.0
  %v5930 = vadd.f32 %v5928, %v5929
  %v5931 = vsel %vm5875, %v5731, 0.0
  %v5932 = vadd.f32 %v5930, %v5931
  %v5933 = vsel %vm5875, %v5734, 0.0
  %v5934 = vadd.f32 %v5932, %v5933
  %v5935 = vsel %vm5875, %v5739, 0.0
  %v5936 = vadd.f32 %v5934, %v5935
  %v5937 = vsel %vm5875, %v5742, 0.0
  %v5938 = vadd.f32 %v5936, %v5937
  %v5939 = vsel %vm5875, %v5747, 0.0
  %v5940 = vadd.f32 %v5938, %v5939
  %v5941 = vsel %vm5875, %v5750, 0.0
  %v5942 = vadd.f32 %v5940, %v5941
  %v5943 = vsel %vm5875, %v5755, 0.0
  %v5944 = vadd.f32 %v5942, %v5943
  %v5945 = vsel %vm5875, %v5758, 0.0
  %v5946 = vadd.f32 %v5944, %v5945
  %v5947 = vsel %vm5875, %v5763, 0.0
  %v5948 = vadd.f32 %v5946, %v5947
  %v5949 = vsel %vm5875, %v5766, 0.0
  %v5950 = vadd.f32 %v5948, %v5949
  %v5951 = vsel %vm5875, %v5771, 0.0
  %v5952 = vadd.f32 %v5950, %v5951
  %v5953 = vsel %vm5875, %v5774, 0.0
  %v5954 = vadd.f32 %v5952, %v5953
  %v5955 = vsel %vm5875, %v5779, 0.0
  %v5956 = vadd.f32 %v5954, %v5955
  %v5957 = vsel %vm5875, %v5782, 0.0
  %v5958 = vadd.f32 %v5956, %v5957
  %v5959 = vsel %vm5875, %v5787, 0.0
  %v5960 = vadd.f32 %v5958, %v5959
  %v5961 = vsel %vm5875, %v5790, 0.0
  %v5962 = vadd.f32 %v5960, %v5961
  %v5963 = vsel %vm5875, %v5795, 0.0
  %v5964 = vadd.f32 %v5962, %v5963
  %v5965 = vsel %vm5875, %v5798, 0.0
  %v5966 = vadd.f32 %v5964, %v5965
  %v5967 = vsel %vm5875, %v5803, 0.0
  %v5968 = vadd.f32 %v5966, %v5967
  %v5969 = vsel %vm5875, %v5806, 0.0
  %v5970 = vadd.f32 %v5968, %v5969
  %v5971 = vsel %vm5875, %v5811, 0.0
  %v5972 = vadd.f32 %v5970, %v5971
  %v5973 = vsel %vm5875, %v5814, 0.0
  %v5974 = vadd.f32 %v5972, %v5973
  %v5975 = vsel %vm5875, %v5819, 0.0
  %v5976 = vadd.f32 %v5974, %v5975
  %v5977 = vsel %vm5875, %v5822, 0.0
  %v5978 = vadd.f32 %v5976, %v5977
  %v5979 = vsel %vm5875, %v5827, 0.0
  %v5980 = vadd.f32 %v5978, %v5979
  %v5981 = vsel %vm5875, %v5830, 0.0
  %v5982 = vadd.f32 %v5980, %v5981
  %v5983 = vsel %vm5875, %v5835, 0.0
  %v5984 = vadd.f32 %v5982, %v5983
  %v5985 = vsel %vm5875, %v5838, 0.0
  %v5986 = vadd.f32 %v5984, %v5985
  %v5987 = vsel %vm5875, %v5843, 0.0
  %v5988 = vadd.f32 %v5986, %v5987
  %v5989 = vsel %vm5875, %v5846, 0.0
  %v5990 = vadd.f32 %v5988, %v5989
  %v5991 = vsel %vm5875, %v5851, 0.0
  %v5992 = vadd.f32 %v5990, %v5991
  %v5993 = vsel %vm5875, %v5854, 0.0
  %v5994 = vadd.f32 %v5992, %v5993
  %v5995 = vsel %vm5875, %v5859, 0.0
  %v5996 = vadd.f32 %v5994, %v5995
  %v5997 = vsel %vm5875, %v5862, 0.0
  %v5998 = vadd.f32 %v5996, %v5997
  %v5999 = vsel %vm5875, %v5867, 0.0
  %v6000 = vadd.f32 %v5998, %v5999
  %v6001 = vsel %vm5875, %v5870, 0.0
  %v6002 = vadd.f32 %v6000, %v6001
  %v6003 = vrot.slane %v6002, 4
  %v6004 = vadd.f32 %v6002, %v6003
  %v6005 = vrot.slane %v6004, 2
  %v6006 = vadd.f32 %v6004, %v6005
  %v6007 = vrot.slane %v6006, 1
  %v6008 = vadd.f32 %v6006, %v6007
  %v6009 = vmul.f32 %v6008, %v659
  %v6010 = vsub.f32 %v5619, %v6009
  %v6011 = vsub.f32 %v5622, %v6009
  %v6012 = vsub.f32 %v5627, %v6009
  %v6013 = vsub.f32 %v5630, %v6009
  %v6014 = vsub.f32 %v5635, %v6009
  %v6015 = vsub.f32 %v5638, %v6009
  %v6016 = vsub.f32 %v5643, %v6009
  %v6017 = vsub.f32 %v5646, %v6009
  %v6018 = vsub.f32 %v5651, %v6009
  %v6019 = vsub.f32 %v5654, %v6009
  %v6020 = vsub.f32 %v5659, %v6009
  %v6021 = vsub.f32 %v5662, %v6009
  %v6022 = vsub.f32 %v5667, %v6009
  %v6023 = vsub.f32 %v5670, %v6009
  %v6024 = vsub.f32 %v5675, %v6009
  %v6025 = vsub.f32 %v5678, %v6009
  %v6026 = vsub.f32 %v5683, %v6009
  %v6027 = vsub.f32 %v5686, %v6009
  %v6028 = vsub.f32 %v5691, %v6009
  %v6029 = vsub.f32 %v5694, %v6009
  %v6030 = vsub.f32 %v5699, %v6009
  %v6031 = vsub.f32 %v5702, %v6009
  %v6032 = vsub.f32 %v5707, %v6009
  %v6033 = vsub.f32 %v5710, %v6009
  %v6034 = vsub.f32 %v5715, %v6009
  %v6035 = vsub.f32 %v5718, %v6009
  %v6036 = vsub.f32 %v5723, %v6009
  %v6037 = vsub.f32 %v5726, %v6009
  %v6038 = vsub.f32 %v5731, %v6009
  %v6039 = vsub.f32 %v5734, %v6009
  %v6040 = vsub.f32 %v5739, %v6009
  %v6041 = vsub.f32 %v5742, %v6009
  %v6042 = vsub.f32 %v5747, %v6009
  %v6043 = vsub.f32 %v5750, %v6009
  %v6044 = vsub.f32 %v5755, %v6009
  %v6045 = vsub.f32 %v5758, %v6009
  %v6046 = vsub.f32 %v5763, %v6009
  %v6047 = vsub.f32 %v5766, %v6009
  %v6048 = vsub.f32 %v5771, %v6009
  %v6049 = vsub.f32 %v5774, %v6009
  %v6050 = vsub.f32 %v5779, %v6009
  %v6051 = vsub.f32 %v5782, %v6009
  %v6052 = vsub.f32 %v5787, %v6009
  %v6053 = vsub.f32 %v5790, %v6009
  %v6054 = vsub.f32 %v5795, %v6009
  %v6055 = vsub.f32 %v5798, %v6009
  %v6056 = vsub.f32 %v5803, %v6009
  %v6057 = vsub.f32 %v5806, %v6009
  %v6058 = vsub.f32 %v5811, %v6009
  %v6059 = vsub.f32 %v5814, %v6009
  %v6060 = vsub.f32 %v5819, %v6009
  %v6061 = vsub.f32 %v5822, %v6009
  %v6062 = vsub.f32 %v5827, %v6009
  %v6063 = vsub.f32 %v5830, %v6009
  %v6064 = vsub.f32 %v5835, %v6009
  %v6065 = vsub.f32 %v5838, %v6009
  %v6066 = vsub.f32 %v5843, %v6009
  %v6067 = vsub.f32 %v5846, %v6009
  %v6068 = vsub.f32 %v5851, %v6009
  %v6069 = vsub.f32 %v5854, %v6009
  %v6070 = vsub.f32 %v5859, %v6009
  %v6071 = vsub.f32 %v5862, %v6009
  %v6072 = vsub.f32 %v5867, %v6009
  %v6073 = vsub.f32 %v5870, %v6009
  %v6074 = vmul.f32 %v6010, %v6010
  %v6075 = vmul.f32 %v6011, %v6011
  %v6076 = vmul.f32 %v6012, %v6012
  %v6077 = vmul.f32 %v6013, %v6013
  %v6078 = vmul.f32 %v6014, %v6014
  %v6079 = vmul.f32 %v6015, %v6015
  %v6080 = vmul.f32 %v6016, %v6016
  %v6081 = vmul.f32 %v6017, %v6017
  %v6082 = vmul.f32 %v6018, %v6018
  %v6083 = vmul.f32 %v6019, %v6019
  %v6084 = vmul.f32 %v6020, %v6020
  %v6085 = vmul.f32 %v6021, %v6021
  %v6086 = vmul.f32 %v6022, %v6022
  %v6087 = vmul.f32 %v6023, %v6023
  %v6088 = vmul.f32 %v6024, %v6024
  %v6089 = vmul.f32 %v6025, %v6025
  %v6090 = vmul.f32 %v6026, %v6026
  %v6091 = vmul.f32 %v6027, %v6027
  %v6092 = vmul.f32 %v6028, %v6028
  %v6093 = vmul.f32 %v6029, %v6029
  %v6094 = vmul.f32 %v6030, %v6030
  %v6095 = vmul.f32 %v6031, %v6031
  %v6096 = vmul.f32 %v6032, %v6032
  %v6097 = vmul.f32 %v6033, %v6033
  %v6098 = vmul.f32 %v6034, %v6034
  %v6099 = vmul.f32 %v6035, %v6035
  %v6100 = vmul.f32 %v6036, %v6036
  %v6101 = vmul.f32 %v6037, %v6037
  %v6102 = vmul.f32 %v6038, %v6038
  %v6103 = vmul.f32 %v6039, %v6039
  %v6104 = vmul.f32 %v6040, %v6040
  %v6105 = vmul.f32 %v6041, %v6041
  %v6106 = vmul.f32 %v6042, %v6042
  %v6107 = vmul.f32 %v6043, %v6043
  %v6108 = vmul.f32 %v6044, %v6044
  %v6109 = vmul.f32 %v6045, %v6045
  %v6110 = vmul.f32 %v6046, %v6046
  %v6111 = vmul.f32 %v6047, %v6047
  %v6112 = vmul.f32 %v6048, %v6048
  %v6113 = vmul.f32 %v6049, %v6049
  %v6114 = vmul.f32 %v6050, %v6050
  %v6115 = vmul.f32 %v6051, %v6051
  %v6116 = vmul.f32 %v6052, %v6052
  %v6117 = vmul.f32 %v6053, %v6053
  %v6118 = vmul.f32 %v6054, %v6054
  %v6119 = vmul.f32 %v6055, %v6055
  %v6120 = vmul.f32 %v6056, %v6056
  %v6121 = vmul.f32 %v6057, %v6057
  %v6122 = vmul.f32 %v6058, %v6058
  %v6123 = vmul.f32 %v6059, %v6059
  %v6124 = vmul.f32 %v6060, %v6060
  %v6125 = vmul.f32 %v6061, %v6061
  %v6126 = vmul.f32 %v6062, %v6062
  %v6127 = vmul.f32 %v6063, %v6063
  %v6128 = vmul.f32 %v6064, %v6064
  %v6129 = vmul.f32 %v6065, %v6065
  %v6130 = vmul.f32 %v6066, %v6066
  %v6131 = vmul.f32 %v6067, %v6067
  %v6132 = vmul.f32 %v6068, %v6068
  %v6133 = vmul.f32 %v6069, %v6069
  %v6134 = vmul.f32 %v6070, %v6070
  %v6135 = vmul.f32 %v6071, %v6071
  %v6136 = vmul.f32 %v6072, %v6072
  %v6137 = vmul.f32 %v6073, %v6073
  %v6138 = vsel %vm5875, %v6074, 0.0
  %v6139 = vsel %vm5875, %v6075, 0.0
  %v6140 = vadd.f32 %v6138, %v6139
  %v6141 = vsel %vm5875, %v6076, 0.0
  %v6142 = vadd.f32 %v6140, %v6141
  %v6143 = vsel %vm5875, %v6077, 0.0
  %v6144 = vadd.f32 %v6142, %v6143
  %v6145 = vsel %vm5875, %v6078, 0.0
  %v6146 = vadd.f32 %v6144, %v6145
  %v6147 = vsel %vm5875, %v6079, 0.0
  %v6148 = vadd.f32 %v6146, %v6147
  %v6149 = vsel %vm5875, %v6080, 0.0
  %v6150 = vadd.f32 %v6148, %v6149
  %v6151 = vsel %vm5875, %v6081, 0.0
  %v6152 = vadd.f32 %v6150, %v6151
  %v6153 = vsel %vm5875, %v6082, 0.0
  %v6154 = vadd.f32 %v6152, %v6153
  %v6155 = vsel %vm5875, %v6083, 0.0
  %v6156 = vadd.f32 %v6154, %v6155
  %v6157 = vsel %vm5875, %v6084, 0.0
  %v6158 = vadd.f32 %v6156, %v6157
  %v6159 = vsel %vm5875, %v6085, 0.0
  %v6160 = vadd.f32 %v6158, %v6159
  %v6161 = vsel %vm5875, %v6086, 0.0
  %v6162 = vadd.f32 %v6160, %v6161
  %v6163 = vsel %vm5875, %v6087, 0.0
  %v6164 = vadd.f32 %v6162, %v6163
  %v6165 = vsel %vm5875, %v6088, 0.0
  %v6166 = vadd.f32 %v6164, %v6165
  %v6167 = vsel %vm5875, %v6089, 0.0
  %v6168 = vadd.f32 %v6166, %v6167
  %v6169 = vsel %vm5875, %v6090, 0.0
  %v6170 = vadd.f32 %v6168, %v6169
  %v6171 = vsel %vm5875, %v6091, 0.0
  %v6172 = vadd.f32 %v6170, %v6171
  %v6173 = vsel %vm5875, %v6092, 0.0
  %v6174 = vadd.f32 %v6172, %v6173
  %v6175 = vsel %vm5875, %v6093, 0.0
  %v6176 = vadd.f32 %v6174, %v6175
  %v6177 = vsel %vm5875, %v6094, 0.0
  %v6178 = vadd.f32 %v6176, %v6177
  %v6179 = vsel %vm5875, %v6095, 0.0
  %v6180 = vadd.f32 %v6178, %v6179
  %v6181 = vsel %vm5875, %v6096, 0.0
  %v6182 = vadd.f32 %v6180, %v6181
  %v6183 = vsel %vm5875, %v6097, 0.0
  %v6184 = vadd.f32 %v6182, %v6183
  %v6185 = vsel %vm5875, %v6098, 0.0
  %v6186 = vadd.f32 %v6184, %v6185
  %v6187 = vsel %vm5875, %v6099, 0.0
  %v6188 = vadd.f32 %v6186, %v6187
  %v6189 = vsel %vm5875, %v6100, 0.0
  %v6190 = vadd.f32 %v6188, %v6189
  %v6191 = vsel %vm5875, %v6101, 0.0
  %v6192 = vadd.f32 %v6190, %v6191
  %v6193 = vsel %vm5875, %v6102, 0.0
  %v6194 = vadd.f32 %v6192, %v6193
  %v6195 = vsel %vm5875, %v6103, 0.0
  %v6196 = vadd.f32 %v6194, %v6195
  %v6197 = vsel %vm5875, %v6104, 0.0
  %v6198 = vadd.f32 %v6196, %v6197
  %v6199 = vsel %vm5875, %v6105, 0.0
  %v6200 = vadd.f32 %v6198, %v6199
  %v6201 = vsel %vm5875, %v6106, 0.0
  %v6202 = vadd.f32 %v6200, %v6201
  %v6203 = vsel %vm5875, %v6107, 0.0
  %v6204 = vadd.f32 %v6202, %v6203
  %v6205 = vsel %vm5875, %v6108, 0.0
  %v6206 = vadd.f32 %v6204, %v6205
  %v6207 = vsel %vm5875, %v6109, 0.0
  %v6208 = vadd.f32 %v6206, %v6207
  %v6209 = vsel %vm5875, %v6110, 0.0
  %v6210 = vadd.f32 %v6208, %v6209
  %v6211 = vsel %vm5875, %v6111, 0.0
  %v6212 = vadd.f32 %v6210, %v6211
  %v6213 = vsel %vm5875, %v6112, 0.0
  %v6214 = vadd.f32 %v6212, %v6213
  %v6215 = vsel %vm5875, %v6113, 0.0
  %v6216 = vadd.f32 %v6214, %v6215
  %v6217 = vsel %vm5875, %v6114, 0.0
  %v6218 = vadd.f32 %v6216, %v6217
  %v6219 = vsel %vm5875, %v6115, 0.0
  %v6220 = vadd.f32 %v6218, %v6219
  %v6221 = vsel %vm5875, %v6116, 0.0
  %v6222 = vadd.f32 %v6220, %v6221
  %v6223 = vsel %vm5875, %v6117, 0.0
  %v6224 = vadd.f32 %v6222, %v6223
  %v6225 = vsel %vm5875, %v6118, 0.0
  %v6226 = vadd.f32 %v6224, %v6225
  %v6227 = vsel %vm5875, %v6119, 0.0
  %v6228 = vadd.f32 %v6226, %v6227
  %v6229 = vsel %vm5875, %v6120, 0.0
  %v6230 = vadd.f32 %v6228, %v6229
  %v6231 = vsel %vm5875, %v6121, 0.0
  %v6232 = vadd.f32 %v6230, %v6231
  %v6233 = vsel %vm5875, %v6122, 0.0
  %v6234 = vadd.f32 %v6232, %v6233
  %v6235 = vsel %vm5875, %v6123, 0.0
  %v6236 = vadd.f32 %v6234, %v6235
  %v6237 = vsel %vm5875, %v6124, 0.0
  %v6238 = vadd.f32 %v6236, %v6237
  %v6239 = vsel %vm5875, %v6125, 0.0
  %v6240 = vadd.f32 %v6238, %v6239
  %v6241 = vsel %vm5875, %v6126, 0.0
  %v6242 = vadd.f32 %v6240, %v6241
  %v6243 = vsel %vm5875, %v6127, 0.0
  %v6244 = vadd.f32 %v6242, %v6243
  %v6245 = vsel %vm5875, %v6128, 0.0
  %v6246 = vadd.f32 %v6244, %v6245
  %v6247 = vsel %vm5875, %v6129, 0.0
  %v6248 = vadd.f32 %v6246, %v6247
  %v6249 = vsel %vm5875, %v6130, 0.0
  %v6250 = vadd.f32 %v6248, %v6249
  %v6251 = vsel %vm5875, %v6131, 0.0
  %v6252 = vadd.f32 %v6250, %v6251
  %v6253 = vsel %vm5875, %v6132, 0.0
  %v6254 = vadd.f32 %v6252, %v6253
  %v6255 = vsel %vm5875, %v6133, 0.0
  %v6256 = vadd.f32 %v6254, %v6255
  %v6257 = vsel %vm5875, %v6134, 0.0
  %v6258 = vadd.f32 %v6256, %v6257
  %v6259 = vsel %vm5875, %v6135, 0.0
  %v6260 = vadd.f32 %v6258, %v6259
  %v6261 = vsel %vm5875, %v6136, 0.0
  %v6262 = vadd.f32 %v6260, %v6261
  %v6263 = vsel %vm5875, %v6137, 0.0
  %v6264 = vadd.f32 %v6262, %v6263
  %v6265 = vrot.slane %v6264, 4
  %v6266 = vadd.f32 %v6264, %v6265
  %v6267 = vrot.slane %v6266, 2
  %v6268 = vadd.f32 %v6266, %v6267
  %v6269 = vrot.slane %v6268, 1
  %v6270 = vadd.f32 %v6268, %v6269
  %v6271 = vmul.f32 %v6270, %v659
  %v6272 = vadd.f32 %v6271, 1e-05
  %v6273 = vrsqrt.pop %v6272
  %v6274 = vmul.f32 %v6010, %v6273
  %v6275 = vmul.f32 %v6011, %v6273
  %v6276 = vmul.f32 %v6012, %v6273
  %v6277 = vmul.f32 %v6013, %v6273
  %v6278 = vmul.f32 %v6014, %v6273
  %v6279 = vmul.f32 %v6015, %v6273
  %v6280 = vmul.f32 %v6016, %v6273
  %v6281 = vmul.f32 %v6017, %v6273
  %v6282 = vmul.f32 %v6018, %v6273
  %v6283 = vmul.f32 %v6019, %v6273
  %v6284 = vmul.f32 %v6020, %v6273
  %v6285 = vmul.f32 %v6021, %v6273
  %v6286 = vmul.f32 %v6022, %v6273
  %v6287 = vmul.f32 %v6023, %v6273
  %v6288 = vmul.f32 %v6024, %v6273
  %v6289 = vmul.f32 %v6025, %v6273
  %v6290 = vmul.f32 %v6026, %v6273
  %v6291 = vmul.f32 %v6027, %v6273
  %v6292 = vmul.f32 %v6028, %v6273
  %v6293 = vmul.f32 %v6029, %v6273
  %v6294 = vmul.f32 %v6030, %v6273
  %v6295 = vmul.f32 %v6031, %v6273
  %v6296 = vmul.f32 %v6032, %v6273
  %v6297 = vmul.f32 %v6033, %v6273
  %v6298 = vmul.f32 %v6034, %v6273
  %v6299 = vmul.f32 %v6035, %v6273
  %v6300 = vmul.f32 %v6036, %v6273
  %v6301 = vmul.f32 %v6037, %v6273
  %v6302 = vmul.f32 %v6038, %v6273
  %v6303 = vmul.f32 %v6039, %v6273
  %v6304 = vmul.f32 %v6040, %v6273
  %v6305 = vmul.f32 %v6041, %v6273
  %v6306 = vmul.f32 %v6042, %v6273
  %v6307 = vmul.f32 %v6043, %v6273
  %v6308 = vmul.f32 %v6044, %v6273
  %v6309 = vmul.f32 %v6045, %v6273
  %v6310 = vmul.f32 %v6046, %v6273
  %v6311 = vmul.f32 %v6047, %v6273
  %v6312 = vmul.f32 %v6048, %v6273
  %v6313 = vmul.f32 %v6049, %v6273
  %v6314 = vmul.f32 %v6050, %v6273
  %v6315 = vmul.f32 %v6051, %v6273
  %v6316 = vmul.f32 %v6052, %v6273
  %v6317 = vmul.f32 %v6053, %v6273
  %v6318 = vmul.f32 %v6054, %v6273
  %v6319 = vmul.f32 %v6055, %v6273
  %v6320 = vmul.f32 %v6056, %v6273
  %v6321 = vmul.f32 %v6057, %v6273
  %v6322 = vmul.f32 %v6058, %v6273
  %v6323 = vmul.f32 %v6059, %v6273
  %v6324 = vmul.f32 %v6060, %v6273
  %v6325 = vmul.f32 %v6061, %v6273
  %v6326 = vmul.f32 %v6062, %v6273
  %v6327 = vmul.f32 %v6063, %v6273
  %v6328 = vmul.f32 %v6064, %v6273
  %v6329 = vmul.f32 %v6065, %v6273
  %v6330 = vmul.f32 %v6066, %v6273
  %v6331 = vmul.f32 %v6067, %v6273
  %v6332 = vmul.f32 %v6068, %v6273
  %v6333 = vmul.f32 %v6069, %v6273
  %v6334 = vmul.f32 %v6070, %v6273
  %v6335 = vmul.f32 %v6071, %v6273
  %v6336 = vmul.f32 %v6072, %v6273
  %v6337 = vmul.f32 %v6073, %v6273
  %v6339 = vlaneseq
  %v6340 = vshrl.u32 %v6339, 7
  %v6341 = vsub.s32 0, %v6340
  %v6342 = vrot.slane %v5873, %v6341
  %v6344 = vmul.f32 %v6274, %v6342
  %v6345 = vmul.f32 %v6275, %v6342
  %v6346 = vmul.f32 %v6276, %v6342
  %v6347 = vmul.f32 %v6277, %v6342
  %v6348 = vmul.f32 %v6278, %v6342
  %v6349 = vmul.f32 %v6279, %v6342
  %v6350 = vmul.f32 %v6280, %v6342
  %v6351 = vmul.f32 %v6281, %v6342
  %v6352 = vmul.f32 %v6282, %v6342
  %v6353 = vmul.f32 %v6283, %v6342
  %v6354 = vmul.f32 %v6284, %v6342
  %v6355 = vmul.f32 %v6285, %v6342
  %v6356 = vmul.f32 %v6286, %v6342
  %v6357 = vmul.f32 %v6287, %v6342
  %v6358 = vmul.f32 %v6288, %v6342
  %v6359 = vmul.f32 %v6289, %v6342
  %v6360 = vmul.f32 %v6290, %v6342
  %v6361 = vmul.f32 %v6291, %v6342
  %v6362 = vmul.f32 %v6292, %v6342
  %v6363 = vmul.f32 %v6293, %v6342
  %v6364 = vmul.f32 %v6294, %v6342
  %v6365 = vmul.f32 %v6295, %v6342
  %v6366 = vmul.f32 %v6296, %v6342
  %v6367 = vmul.f32 %v6297, %v6342
  %v6368 = vmul.f32 %v6298, %v6342
  %v6369 = vmul.f32 %v6299, %v6342
  %v6370 = vmul.f32 %v6300, %v6342
  %v6371 = vmul.f32 %v6301, %v6342
  %v6372 = vmul.f32 %v6302, %v6342
  %v6373 = vmul.f32 %v6303, %v6342
  %v6374 = vmul.f32 %v6304, %v6342
  %v6375 = vmul.f32 %v6305, %v6342
  %v6376 = vmul.f32 %v6306, %v6342
  %v6377 = vmul.f32 %v6307, %v6342
  %v6378 = vmul.f32 %v6308, %v6342
  %v6379 = vmul.f32 %v6309, %v6342
  %v6380 = vmul.f32 %v6310, %v6342
  %v6381 = vmul.f32 %v6311, %v6342
  %v6382 = vmul.f32 %v6312, %v6342
  %v6383 = vmul.f32 %v6313, %v6342
  %v6384 = vmul.f32 %v6314, %v6342
  %v6385 = vmul.f32 %v6315, %v6342
  %v6386 = vmul.f32 %v6316, %v6342
  %v6387 = vmul.f32 %v6317, %v6342
  %v6388 = vmul.f32 %v6318, %v6342
  %v6389 = vmul.f32 %v6319, %v6342
  %v6390 = vmul.f32 %v6320, %v6342
  %v6391 = vmul.f32 %v6321, %v6342
  %v6392 = vmul.f32 %v6322, %v6342
  %v6393 = vmul.f32 %v6323, %v6342
  %v6394 = vmul.f32 %v6324, %v6342
  %v6395 = vmul.f32 %v6325, %v6342
  %v6396 = vmul.f32 %v6326, %v6342
  %v6397 = vmul.f32 %v6327, %v6342
  %v6398 = vmul.f32 %v6328, %v6342
  %v6399 = vmul.f32 %v6329, %v6342
  %v6400 = vmul.f32 %v6330, %v6342
  %v6401 = vmul.f32 %v6331, %v6342
  %v6402 = vmul.f32 %v6332, %v6342
  %v6403 = vmul.f32 %v6333, %v6342
  %v6404 = vmul.f32 %v6334, %v6342
  %v6405 = vmul.f32 %v6335, %v6342
  %v6406 = vmul.f32 %v6336, %v6342
  %v6407 = vmul.f32 %v6337, %v6342
  %v6409 = vlaneseq
  %v6410 = vshrl.u32 %v6409, 7
  %v6411 = vsub.s32 0, %v6410
  %v6412 = vrot.slane %v5874, %v6411
  %v6414 = vadd.f32 %v6344, %v6412
  %v6415 = vadd.f32 %v6345, %v6412
  %v6416 = vadd.f32 %v6346, %v6412
  %v6417 = vadd.f32 %v6347, %v6412
  %v6418 = vadd.f32 %v6348, %v6412
  %v6419 = vadd.f32 %v6349, %v6412
  %v6420 = vadd.f32 %v6350, %v6412
  %v6421 = vadd.f32 %v6351, %v6412
  %v6422 = vadd.f32 %v6352, %v6412
  %v6423 = vadd.f32 %v6353, %v6412
  %v6424 = vadd.f32 %v6354, %v6412
  %v6425 = vadd.f32 %v6355, %v6412
  %v6426 = vadd.f32 %v6356, %v6412
  %v6427 = vadd.f32 %v6357, %v6412
  %v6428 = vadd.f32 %v6358, %v6412
  %v6429 = vadd.f32 %v6359, %v6412
  %v6430 = vadd.f32 %v6360, %v6412
  %v6431 = vadd.f32 %v6361, %v6412
  %v6432 = vadd.f32 %v6362, %v6412
  %v6433 = vadd.f32 %v6363, %v6412
  %v6434 = vadd.f32 %v6364, %v6412
  %v6435 = vadd.f32 %v6365, %v6412
  %v6436 = vadd.f32 %v6366, %v6412
  %v6437 = vadd.f32 %v6367, %v6412
  %v6438 = vadd.f32 %v6368, %v6412
  %v6439 = vadd.f32 %v6369, %v6412
  %v6440 = vadd.f32 %v6370, %v6412
  %v6441 = vadd.f32 %v6371, %v6412
  %v6442 = vadd.f32 %v6372, %v6412
  %v6443 = vadd.f32 %v6373, %v6412
  %v6444 = vadd.f32 %v6374, %v6412
  %v6445 = vadd.f32 %v6375, %v6412
  %v6446 = vadd.f32 %v6376, %v6412
  %v6447 = vadd.f32 %v6377, %v6412
  %v6448 = vadd.f32 %v6378, %v6412
  %v6449 = vadd.f32 %v6379, %v6412
  %v6450 = vadd.f32 %v6380, %v6412
  %v6451 = vadd.f32 %v6381, %v6412
  %v6452 = vadd.f32 %v6382, %v6412
  %v6453 = vadd.f32 %v6383, %v6412
  %v6454 = vadd.f32 %v6384, %v6412
  %v6455 = vadd.f32 %v6385, %v6412
  %v6456 = vadd.f32 %v6386, %v6412
  %v6457 = vadd.f32 %v6387, %v6412
  %v6458 = vadd.f32 %v6388, %v6412
  %v6459 = vadd.f32 %v6389, %v6412
  %v6460 = vadd.f32 %v6390, %v6412
  %v6461 = vadd.f32 %v6391, %v6412
  %v6462 = vadd.f32 %v6392, %v6412
  %v6463 = vadd.f32 %v6393, %v6412
  %v6464 = vadd.f32 %v6394, %v6412
  %v6465 = vadd.f32 %v6395, %v6412
  %v6466 = vadd.f32 %v6396, %v6412
  %v6467 = vadd.f32 %v6397, %v6412
  %v6468 = vadd.f32 %v6398, %v6412
  %v6469 = vadd.f32 %v6399, %v6412
  %v6470 = vadd.f32 %v6400, %v6412
  %v6471 = vadd.f32 %v6401, %v6412
  %v6472 = vadd.f32 %v6402, %v6412
  %v6473 = vadd.f32 %v6403, %v6412
  %v6474 = vadd.f32 %v6404, %v6412
  %v6475 = vadd.f32 %v6405, %v6412
  %v6476 = vadd.f32 %v6406, %v6412
  %v6477 = vadd.f32 %v6407, %v6412
  %v6478 = vmax.f32 %v6414, 0.0
  %v6479 = vmax.f32 %v6415, 0.0
  %v6480 = vmax.f32 %v6416, 0.0
  %v6481 = vmax.f32 %v6417, 0.0
  %v6482 = vmax.f32 %v6418, 0.0
  %v6483 = vmax.f32 %v6419, 0.0
  %v6484 = vmax.f32 %v6420, 0.0
  %v6485 = vmax.f32 %v6421, 0.0
  %v6486 = vmax.f32 %v6422, 0.0
  %v6487 = vmax.f32 %v6423, 0.0
  %v6488 = vmax.f32 %v6424, 0.0
  %v6489 = vmax.f32 %v6425, 0.0
  %v6490 = vmax.f32 %v6426, 0.0
  %v6491 = vmax.f32 %v6427, 0.0
  %v6492 = vmax.f32 %v6428, 0.0
  %v6493 = vmax.f32 %v6429, 0.0
  %v6494 = vmax.f32 %v6430, 0.0
  %v6495 = vmax.f32 %v6431, 0.0
  %v6496 = vmax.f32 %v6432, 0.0
  %v6497 = vmax.f32 %v6433, 0.0
  %v6498 = vmax.f32 %v6434, 0.0
  %v6499 = vmax.f32 %v6435, 0.0
  %v6500 = vmax.f32 %v6436, 0.0
  %v6501 = vmax.f32 %v6437, 0.0
  %v6502 = vmax.f32 %v6438, 0.0
  %v6503 = vmax.f32 %v6439, 0.0
  %v6504 = vmax.f32 %v6440, 0.0
  %v6505 = vmax.f32 %v6441, 0.0
  %v6506 = vmax.f32 %v6442, 0.0
  %v6507 = vmax.f32 %v6443, 0.0
  %v6508 = vmax.f32 %v6444, 0.0
  %v6509 = vmax.f32 %v6445, 0.0
  %v6510 = vmax.f32 %v6446, 0.0
  %v6511 = vmax.f32 %v6447, 0.0
  %v6512 = vmax.f32 %v6448, 0.0
  %v6513 = vmax.f32 %v6449, 0.0
  %v6514 = vmax.f32 %v6450, 0.0
  %v6515 = vmax.f32 %v6451, 0.0
  %v6516 = vmax.f32 %v6452, 0.0
  %v6517 = vmax.f32 %v6453, 0.0
  %v6518 = vmax.f32 %v6454, 0.0
  %v6519 = vmax.f32 %v6455, 0.0
  %v6520 = vmax.f32 %v6456, 0.0
  %v6521 = vmax.f32 %v6457, 0.0
  %v6522 = vmax.f32 %v6458, 0.0
  %v6523 = vmax.f32 %v6459, 0.0
  %v6524 = vmax.f32 %v6460, 0.0
  %v6525 = vmax.f32 %v6461, 0.0
  %v6526 = vmax.f32 %v6462, 0.0
  %v6527 = vmax.f32 %v6463, 0.0
  %v6528 = vmax.f32 %v6464, 0.0
  %v6529 = vmax.f32 %v6465, 0.0
  %v6530 = vmax.f32 %v6466, 0.0
  %v6531 = vmax.f32 %v6467, 0.0
  %v6532 = vmax.f32 %v6468, 0.0
  %v6533 = vmax.f32 %v6469, 0.0
  %v6534 = vmax.f32 %v6470, 0.0
  %v6535 = vmax.f32 %v6471, 0.0
  %v6536 = vmax.f32 %v6472, 0.0
  %v6537 = vmax.f32 %v6473, 0.0
  %v6538 = vmax.f32 %v6474, 0.0
  %v6539 = vmax.f32 %v6475, 0.0
  %v6540 = vmax.f32 %v6476, 0.0
  %v6541 = vmax.f32 %v6477, 0.0
  %6542 = vst.msk [vmem:[%s10] sm:$0xff] %vm5875, %v6478
  %6543 = vst.msk [vmem:[%s10 + $0x8] sm:$0xff] %vm5875, %v6479
  %6544 = vst.msk [vmem:[%s10 + $0x10] sm:$0xff] %vm5875, %v6480
  %6545 = vst.msk [vmem:[%s10 + $0x18] sm:$0xff] %vm5875, %v6481
  %6546 = vst.msk [vmem:[%s10 + $0x20] sm:$0xff] %vm5875, %v6482
  %6547 = vst.msk [vmem:[%s10 + $0x28] sm:$0xff] %vm5875, %v6483
  %6548 = vst.msk [vmem:[%s10 + $0x30] sm:$0xff] %vm5875, %v6484
  %6549 = vst.msk [vmem:[%s10 + $0x38] sm:$0xff] %vm5875, %v6485
  %6550 = vst.msk [vmem:[%s10 + $0x40] sm:$0xff] %vm5875, %v6486
  %6551 = vst.msk [vmem:[%s10 + $0x48] sm:$0xff] %vm5875, %v6487
  %6552 = vst.msk [vmem:[%s10 + $0x50] sm:$0xff] %vm5875, %v6488
  %6553 = vst.msk [vmem:[%s10 + $0x58] sm:$0xff] %vm5875, %v6489
  %6554 = vst.msk [vmem:[%s10 + $0x60] sm:$0xff] %vm5875, %v6490
  %6555 = vst.msk [vmem:[%s10 + $0x68] sm:$0xff] %vm5875, %v6491
  %6556 = vst.msk [vmem:[%s10 + $0x70] sm:$0xff] %vm5875, %v6492
  %6557 = vst.msk [vmem:[%s10 + $0x78] sm:$0xff] %vm5875, %v6493
  %6558 = vst.msk [vmem:[%s10 + $0x80] sm:$0xff] %vm5875, %v6494
  %6559 = vst.msk [vmem:[%s10 + $0x88] sm:$0xff] %vm5875, %v6495
  %6560 = vst.msk [vmem:[%s10 + $0x90] sm:$0xff] %vm5875, %v6496
  %6561 = vst.msk [vmem:[%s10 + $0x98] sm:$0xff] %vm5875, %v6497
  %6562 = vst.msk [vmem:[%s10 + $0xa0] sm:$0xff] %vm5875, %v6498
  %6563 = vst.msk [vmem:[%s10 + $0xa8] sm:$0xff] %vm5875, %v6499
  %6564 = vst.msk [vmem:[%s10 + $0xb0] sm:$0xff] %vm5875, %v6500
  %6565 = vst.msk [vmem:[%s10 + $0xb8] sm:$0xff] %vm5875, %v6501
  %6566 = vst.msk [vmem:[%s10 + $0xc0] sm:$0xff] %vm5875, %v6502
  %6567 = vst.msk [vmem:[%s10 + $0xc8] sm:$0xff] %vm5875, %v6503
  %6568 = vst.msk [vmem:[%s10 + $0xd0] sm:$0xff] %vm5875, %v6504
  %6569 = vst.msk [vmem:[%s10 + $0xd8] sm:$0xff] %vm5875, %v6505
  %6570 = vst.msk [vmem:[%s10 + $0xe0] sm:$0xff] %vm5875, %v6506
  %6571 = vst.msk [vmem:[%s10 + $0xe8] sm:$0xff] %vm5875, %v6507
  %6572 = vst.msk [vmem:[%s10 + $0xf0] sm:$0xff] %vm5875, %v6508
  %6573 = vst.msk [vmem:[%s10 + $0xf8] sm:$0xff] %vm5875, %v6509
  %6574 = vst.msk [vmem:[%s10 + $0x100] sm:$0xff] %vm5875, %v6510
  %6575 = vst.msk [vmem:[%s10 + $0x108] sm:$0xff] %vm5875, %v6511
  %6576 = vst.msk [vmem:[%s10 + $0x110] sm:$0xff] %vm5875, %v6512
  %6577 = vst.msk [vmem:[%s10 + $0x118] sm:$0xff] %vm5875, %v6513
  %6578 = vst.msk [vmem:[%s10 + $0x120] sm:$0xff] %vm5875, %v6514
  %6579 = vst.msk [vmem:[%s10 + $0x128] sm:$0xff] %vm5875, %v6515
  %6580 = vst.msk [vmem:[%s10 + $0x130] sm:$0xff] %vm5875, %v6516
  %6581 = vst.msk [vmem:[%s10 + $0x138] sm:$0xff] %vm5875, %v6517
  %6582 = vst.msk [vmem:[%s10 + $0x140] sm:$0xff] %vm5875, %v6518
  %6583 = vst.msk [vmem:[%s10 + $0x148] sm:$0xff] %vm5875, %v6519
  %6584 = vst.msk [vmem:[%s10 + $0x150] sm:$0xff] %vm5875, %v6520
  %6585 = vst.msk [vmem:[%s10 + $0x158] sm:$0xff] %vm5875, %v6521
  %6586 = vst.msk [vmem:[%s10 + $0x160] sm:$0xff] %vm5875, %v6522
  %6587 = vst.msk [vmem:[%s10 + $0x168] sm:$0xff] %vm5875, %v6523
  %6588 = vst.msk [vmem:[%s10 + $0x170] sm:$0xff] %vm5875, %v6524
  %6589 = vst.msk [vmem:[%s10 + $0x178] sm:$0xff] %vm5875, %v6525
  %6590 = vst.msk [vmem:[%s10 + $0x180] sm:$0xff] %vm5875, %v6526
  %6591 = vst.msk [vmem:[%s10 + $0x188] sm:$0xff] %vm5875, %v6527
  %6592 = vst.msk [vmem:[%s10 + $0x190] sm:$0xff] %vm5875, %v6528
  %6593 = vst.msk [vmem:[%s10 + $0x198] sm:$0xff] %vm5875, %v6529
  %6594 = vst.msk [vmem:[%s10 + $0x1a0] sm:$0xff] %vm5875, %v6530
  %6595 = vst.msk [vmem:[%s10 + $0x1a8] sm:$0xff] %vm5875, %v6531
  %6596 = vst.msk [vmem:[%s10 + $0x1b0] sm:$0xff] %vm5875, %v6532
  %6597 = vst.msk [vmem:[%s10 + $0x1b8] sm:$0xff] %vm5875, %v6533
  %6598 = vst.msk [vmem:[%s10 + $0x1c0] sm:$0xff] %vm5875, %v6534
  %6599 = vst.msk [vmem:[%s10 + $0x1c8] sm:$0xff] %vm5875, %v6535
  %6600 = vst.msk [vmem:[%s10 + $0x1d0] sm:$0xff] %vm5875, %v6536
  %6601 = vst.msk [vmem:[%s10 + $0x1d8] sm:$0xff] %vm5875, %v6537
  %6602 = vst.msk [vmem:[%s10 + $0x1e0] sm:$0xff] %vm5875, %v6538
  %6603 = vst.msk [vmem:[%s10 + $0x1e8] sm:$0xff] %vm5875, %v6539
  %6604 = vst.msk [vmem:[%s10 + $0x1f0] sm:$0xff] %vm5875, %v6540
  %6605 = vst.msk [vmem:[%s10 + $0x1f8] sm:$0xff] %vm5875, %v6541
  // Predicated region
  $region42: #{tpu_custom_call.1} parent=0 // pred_check
    _
  $region43: #{tpu_custom_call.1} parent=0 // pred_check_branch
    %6607 = sbr.rel (0) target = $region45
  $region44: #{tpu_custom_call.1} parent=0 // pred_region
    _
  $region45: #{tpu_custom_call.1} parent=0 // pred_fallthru
    _
  // Predicated region
  $region46: #{tpu_custom_call.1} parent=0 // pred_check
    _
  $region47: #{tpu_custom_call.1} parent=0 // pred_check_branch
    %6609 = sbr.rel (0) target = $region49
  $region48: #{tpu_custom_call.1} parent=0 // pred_region
    _
  $region49: #{tpu_custom_call.1} parent=0 // pred_fallthru
    _

</llo_original>
